<compile_context>
chip_gen: v7x
topology: tpu7x:2x2x1
jax: 0.10.0
libtpu: 0.0.40
codegen_flags: <defaults>
</compile_context>

<pallas_src>
import functools
import math

import jax
import jax.numpy as jnp
from jax import lax
from jax.experimental import pallas as pl
from jax.experimental.pallas import tpu as pltpu

NEG_SLOPE = 0.1
CIN_BLOCK = 512


def _round_up(v, m):
    return (v + m - 1) // m * m


@functools.lru_cache(maxsize=None)
def _tpu_tuning():
    """Returns (vmem_limit_bytes, two_tensorcores) with a safe fallback."""
    vmem = None
    try:
        info = pltpu.get_tpu_info()
        vmem = getattr(info, "vmem_capacity_bytes", None)
    except Exception:
        vmem = None
    kind = ""
    try:
        kind = jax.devices()[0].device_kind.lower()
    except Exception:
        pass
    if not vmem or vmem <= 0:
        vmem = 64 << 20                      # conservative: assume v7x-sized VMEM
    if "7" in kind:                          # belt-and-suspenders for v7x
        vmem = min(vmem, 64 << 20)
    two_tc = vmem <= (80 << 20)              # v7x: 64 MiB/TC, 2 TCs; v5e/v6e: 128 MiB
    vmem_limit = min(int(vmem * 3 // 4), 100 << 20)
    return vmem_limit, two_tc


def _s2_grouped(cin):
    # stride-2 conv uses original (non zero-padded) taps when the per-tap
    # channel-group slice of the space-to-depth input is lane aligned.
    return cin % 128 == 0


# ----------------------------------------------------------------------------
# Conv2d kernel (stride handled via space-to-depth), bias + LeakyReLU fused
# ----------------------------------------------------------------------------
def _conv_kernel(x_ref, w_ref, b_ref, o_ref, acc_ref, *,
                 dx_groups, Ho, Wo, Wop, nC, leaky):
    ci = pl.program_id(2)
    Bb, Hp = x_ref.shape[0], x_ref.shape[1]
    tap_k = w_ref.shape[1]
    coutb = o_ref.shape[-1]
    M = Bb * Ho * Wop

    @pl.when(ci == 0)
    def _init():
        acc_ref[...] = jnp.zeros_like(acc_ref)

    # One dx-shifted slab per distinct dx (hoists the unaligned W-window
    # relayout out of the per-tap loop: KW copies instead of KH*KW), then every
    # dy tap takes an 8-sublane-aligned H range and (for grouped stride-2) a
    # 128-lane-aligned channel group of that slab.
    for dx, taps in dx_groups:
        slab = x_ref[:, :, dx:dx + Wop, :]              # (Bb, Hp, Wop, Cxb)
        for widx, dy, coff in taps:
            patch = slab[:, dy:dy + Ho, :, coff:coff + tap_k]
            acc_ref[...] += jnp.dot(patch.reshape(M, tap_k), w_ref[widx],
                                    preferred_element_type=jnp.float32)

    @pl.when(ci == nC - 1)
    def _fin():
        y = acc_ref[...].reshape(Bb, Ho, Wop, coutb)[:, :, :Wo, :] + b_ref[...]
        if leaky:
            y = jnp.where(y > 0, y, NEG_SLOPE * y)
        o_ref[...] = y.astype(o_ref.dtype)


@functools.lru_cache(maxsize=None)
def _build_conv_call(B, Hp, Wpn, Cx, Kw, Cout, Ho, Wo, Wop,
                     dx_groups, grouped, leaky):
    vmem_limit, two_tc = _tpu_tuning()
    ntaps = sum(len(g[1]) for g in dx_groups)

    if grouped:                         # full s2d channel block, Kw per tap
        cxb, kwb, nC = Cx, Kw, 1
    else:
        assert Cx == Kw
        kwb = Kw if Kw <= CIN_BLOCK else CIN_BLOCK
        assert Kw % kwb == 0
        nC = Kw // kwb
        cxb = kwb

    # Fold batch into the matmul M dim for small-spatial (weight-heavy) layers
    # so conv weights are streamed once per layer; keep B as a parallel grid
    # axis for the large-spatial early layers.  On 2-TC chips (v7x) make sure
    # there are >= 2 parallel grid iterations.
    fold_batch = (Ho * Wo <= 1024) or (B == 1)
    coutb = Cout
    if two_tc and (1 if fold_batch else B) < 2:
        if Cout >= 256:
            coutb = Cout // 2           # lane-dense (>=128) split feeds the 2nd TC
        elif B > 1:
            fold_batch = False          # small-Cout layer: use the batch axis
    nB = 1 if fold_batch else B
    Bb = B // nB
    nCo = Cout // coutb

    kernel = functools.partial(_conv_kernel, dx_groups=dx_groups, Ho=Ho,
                               Wo=Wo, Wop=Wop, nC=nC, leaky=leaky)
    return pl.pallas_call(
        kernel,
        out_shape=jax.ShapeDtypeStruct((B, Ho, Wo, Cout), jnp.bfloat16),
        grid_spec=pltpu.PrefetchScalarGridSpec(
            num_scalar_prefetch=0,
            grid=(nB, nCo, nC),                          # Cin reduction innermost
            in_specs=[
                pl.BlockSpec((Bb, Hp, Wpn, cxb), lambda bi, co, ci: (bi, 0, 0, ci)),
                pl.BlockSpec((ntaps, kwb, coutb), lambda bi, co, ci: (0, ci, co)),
                pl.BlockSpec((1, coutb), lambda bi, co, ci: (0, co)),
            ],
            out_specs=pl.BlockSpec((Bb, Ho, Wo, coutb),
                                   lambda bi, co, ci: (bi, 0, 0, co)),
            scratch_shapes=[pltpu.VMEM((Bb * Ho * Wop, coutb), jnp.float32)],
        ),
        compiler_params=pltpu.CompilerParams(
            dimension_semantics=("parallel", "parallel", "arbitrary"),
            vmem_limit_bytes=vmem_limit),
    )


def _dx_group(taps):
    """taps: list of (weight_index, dy, dx, channel_offset) -> dx-major groups."""
    by_dx = {}
    for widx, dy, dx, coff in taps:
        by_dx.setdefault(dx, []).append((widx, dy, coff))
    return tuple((dx, tuple(v)) for dx, v in sorted(by_dx.items()))


def prepare_conv(w, b, stride):
    """Pre-pack torch-layout conv params (HWIO weight) for the Pallas kernel.

    Runs OUTSIDE the jitted forward so weights are cast / remapped exactly once.
    """
    KH, KW, Cin, Cout = w.shape
    if stride == 2 and not _s2_grouped(Cin):
        # Tiny-Cin stride-2 (layer 1): zero-padded space-to-depth weight remap.
        K2 = (KH + 1) // 2
        Cg = _round_up(Cin, 4)
        wq = jnp.pad(w, ((0, 2 * K2 - KH), (0, 2 * K2 - KW),
                         (0, Cg - Cin), (0, 0)))
        wq = wq.reshape(K2, 2, K2, 2, Cg, Cout).transpose(0, 2, 1, 3, 4, 5)
        wq = wq.reshape(K2 * K2, 4 * Cg, Cout)
    else:
        wq = w.reshape(KH * KW, Cin, Cout)
    return wq.astype(jnp.bfloat16), b.reshape(1, Cout).astype(jnp.float32)


def conv2d(x, wp, bp, *, k, stride, padding, leaky=True):
    """x: (B,H,W,Cin) NHWC.  wp/bp: params packed by prepare_conv.  Torch Conv2d
    (+ optional LeakyReLU(0.1)) semantics."""
    B, H, W, C = x.shape
    Cout = wp.shape[-1]
    Ho = (H + 2 * padding - k) // stride + 1
    Wo = (W + 2 * padding - k) // stride + 1
    Wop = _round_up(Wo, 8)               # tile-aligned (B,Ho,Wop,c)->(M,c) merge
    x = x.astype(jnp.bfloat16)

    if stride == 1:
        Hp, Wpn = Ho + k - 1, Wop + k - 1
        xin = jnp.pad(x, ((0, 0), (padding, Hp - H - padding),
                          (padding, Wpn - W - padding), (0, 0)))
        taps = [(ky * k + kx, ky, kx, 0) for ky in range(k) for kx in range(k)]
        grouped, Cx = False, C
    elif stride == 2:
        if _s2_grouped(C):
            # Original taps; per-tap channel group of the s2d input is sliced
            # in-kernel (no zero-padded weight inflation).
            mdy, mdx = (k - 1) // 2, (k - 1) // 2
            Hp, Wpn = Ho + mdy, Wop + mdx
            xin = jnp.pad(x, ((0, 0), (padding, 2 * Hp - H - padding),
                              (padding, 2 * Wpn - W - padding), (0, 0)))
            xin = xin.reshape(B, Hp, 2, Wpn, 2, C).transpose(0, 1, 3, 2, 4, 5)
            xin = xin.reshape(B, Hp, Wpn, 4 * C)
            taps = [(ky * k + kx, ky // 2, kx // 2, (2 * (ky % 2) + kx % 2) * C)
                    for ky in range(k) for kx in range(k)]
            grouped, Cx = True, 4 * C
        else:
            # Tiny-Cin (layer 1): stride-1 conv on the s2d input with the
            # zero-padded remapped weights from prepare_conv.
            K2 = (k + 1) // 2
            Cg = _round_up(C, 4)
            Hp, Wpn = Ho + K2 - 1, Wop + K2 - 1
            xin = jnp.pad(x, ((0, 0), (padding, 2 * Hp - H - padding),
                              (padding, 2 * Wpn - W - padding), (0, Cg - C)))
            xin = xin.reshape(B, Hp, 2, Wpn, 2, Cg).transpose(0, 1, 3, 2, 4, 5)
            xin = xin.reshape(B, Hp, Wpn, 4 * Cg)
            taps = [(dy * K2 + dx, dy, dx, 0)
                    for dy in range(K2) for dx in range(K2)]
            grouped, Cx = False, 4 * Cg
    else:
        raise NotImplementedError("YOLO_v1 only uses stride 1 and 2")

    call = _build_conv_call(B, Hp, Wpn, Cx, wp.shape[1], Cout, Ho, Wo, Wop,
                            _dx_group(taps), grouped, leaky)
    return call(xin, wp, bp)


# ----------------------------------------------------------------------------
# MaxPool2d(2, 2) kernel: native NHWC blocks, W pixels paired along lanes via a
# free HBM reshape (no XLA transpose staging pass).
# ----------------------------------------------------------------------------
def _maxpool_kernel(x_ref, o_ref, *, C):
    x = x_ref[...]                                   # (1, H, W2, 2*C)
    _, H, W2, _ = x.shape
    xh = x.reshape(1, H // 2, 2, W2, 2 * C)          # split leading H dim (free)
    xh = jnp.maximum(xh[:, :, 0], xh[:, :, 1])       # pool over H pairs
    o_ref[...] = jnp.maximum(xh[..., :C], xh[..., C:])   # pool over W pairs


@functools.lru_cache(maxsize=None)
def _build_pool_call(B, H, W2, C):
    vmem_limit, _ = _tpu_tuning()
    return pl.pallas_call(
        functools.partial(_maxpool_kernel, C=C),
        out_shape=jax.ShapeDtypeStruct((B, H // 2, W2, C), jnp.bfloat16),
        grid_spec=pltpu.PrefetchScalarGridSpec(
            num_scalar_prefetch=0,
            grid=(B,),
            in_specs=[pl.BlockSpec((1, H, W2, 2 * C), lambda b: (b, 0, 0, 0))],
            out_specs=pl.BlockSpec((1, H // 2, W2, C), lambda b: (b, 0, 0, 0)),
        ),
        compiler_params=pltpu.CompilerParams(
            dimension_semantics=("parallel",), vmem_limit_bytes=vmem_limit),
    )


def maxpool2x2(x):
    B, H, W, C = x.shape
    # Row-major HBM reshape (free): adjacent W pixels paired along the lane dim.
    xr = x.reshape(B, H, W // 2, 2 * C).astype(jnp.bfloat16)
    return _build_pool_call(B, H, W // 2, C)(xr)


# ----------------------------------------------------------------------------
# Linear (fc) kernel: y = x @ Wt + b, K tiled on the grid, N padded lane-dense
# ----------------------------------------------------------------------------
def _linear_kernel(x_ref, w_ref, b_ref, o_ref, acc_ref, *, nK):
    k = pl.program_id(1)

    @pl.when(k == 0)
    def _init():
        acc_ref[...] = jnp.zeros_like(acc_ref)

    acc_ref[...] += jnp.dot(x_ref[...], w_ref[...],
                            preferred_element_type=jnp.float32)

    @pl.when(k == nK - 1)
    def _fin():
        o_ref[...] = acc_ref[...] + b_ref[...]


@functools.lru_cache(maxsize=None)
def _build_linear_call(B, K, Np, tk, nb):
    vmem_limit, _ = _tpu_tuning()
    nK = K // tk
    nN = Np // nb
    return pl.pallas_call(
        functools.partial(_linear_kernel, nK=nK),
        out_shape=jax.ShapeDtypeStruct((B, Np), jnp.float32),
        grid_spec=pltpu.PrefetchScalarGridSpec(
            num_scalar_prefetch=0,
            grid=(nN, nK),                            # K reduction innermost
            in_specs=[
                pl.BlockSpec((B, tk), lambda n, k: (0, k)),
                pl.BlockSpec((tk, nb), lambda n, k: (k, n)),
                pl.BlockSpec((1, nb), lambda n, k: (0, n)),
            ],
            out_specs=pl.BlockSpec((B, nb), lambda n, k: (0, n)),
            scratch_shapes=[pltpu.VMEM((B, nb), jnp.float32)],
        ),
        compiler_params=pltpu.CompilerParams(
            dimension_semantics=("parallel", "arbitrary"),
            vmem_limit_bytes=vmem_limit),
    )


def prepare_fc(fc_w, fc_b):
    """Pre-transpose / N-pad / bf16-cast the fc params (outside the jit)."""
    N, K = fc_w.shape
    Np = _round_up(N, 128)
    wt = jnp.pad(fc_w.T, ((0, 0), (0, Np - N))).astype(jnp.bfloat16)
    bt = jnp.pad(fc_b, (0, Np - N)).reshape(1, Np).astype(jnp.float32)
    return wt, bt


def linear(x, wt_p, b_p, n_out):
    """y = x @ wt_p + b_p (prepped params), sliced back to n_out columns."""
    B, K = x.shape
    Np = wt_p.shape[1]
    tk = 4096
    while K % tk:
        tk //= 2
    _, two_tc = _tpu_tuning()
    nb = 512 if (two_tc and Np > 512 and Np % 512 == 0) else Np
    out = _build_linear_call(B, K, Np, tk, nb)(x.astype(jnp.bfloat16), wt_p, b_p)
    return out[:, :n_out]


# ----------------------------------------------------------------------------
# YOLO_v1 definition (pre=False path; layer6/fc1/fc2 are unused in forward)
# ----------------------------------------------------------------------------
CONV_CFG = [
    # (cin, cout, k, stride, pad, maxpool_after)
    (3, 64, 7, 2, 3, True),                                              # layer1
    (64, 192, 3, 1, 1, True),                                            # layer2
    (192, 128, 1, 1, 0, False), (128, 256, 3, 1, 1, False),              # layer3
    (256, 256, 1, 1, 0, False), (256, 512, 3, 1, 1, True),
    (512, 256, 1, 1, 0, False), (256, 512, 3, 1, 1, False),              # layer4
    (512, 256, 1, 1, 0, False), (256, 512, 3, 1, 1, False),
    (512, 256, 1, 1, 0, False), (256, 512, 3, 1, 1, False),
    (512, 256, 1, 1, 0, False), (256, 512, 3, 1, 1, False),
    (512, 512, 1, 1, 0, False), (512, 1024, 3, 1, 1, True),
    (1024, 512, 1, 1, 0, False), (512, 1024, 3, 1, 1, False),            # layer5
    (1024, 512, 1, 1, 0, False), (512, 1024, 3, 1, 1, False),
    (1024, 1024, 3, 1, 1, False), (1024, 1024, 3, 2, 2, False),
]
FC_IN, FC_OUT = 4 * 4 * 1024, 1000


def init_params(key):
    convs = []
    for (cin, cout, k, _, _, _) in CONV_CFG:
        key, kw, kb = jax.random.split(key, 3)
        fan_in = cin * k * k
        w = jax.random.normal(kw, (k, k, cin, cout), jnp.float32) * math.sqrt(2.0 / fan_in)
        bias = jax.random.normal(kb, (cout,), jnp.float32) * 0.01
        convs.append((w, bias))
    key, kw, kb = jax.random.split(key, 3)
    fc_w = jax.random.normal(kw, (FC_OUT, FC_IN), jnp.float32) / math.sqrt(FC_IN)
    fc_b = jax.random.normal(kb, (FC_OUT,), jnp.float32) * 0.01
    return convs, (fc_w, fc_b)


def prepare_params(convs, fc):
    """One-time (outside jit) weight packing: bf16, tap repack, fc transpose."""
    conv_p = [prepare_conv(w, b, s)
              for (w, b), (_, _, _, s, _, _) in zip(convs, CONV_CFG)]
    return conv_p, prepare_fc(*fc)


def yolo_v1_forward(x_nchw, params):
    conv_p, (fc_w_t, fc_b_p) = params
    x = jnp.transpose(x_nchw, (0, 2, 3, 1)).astype(jnp.bfloat16)   # NCHW -> NHWC
    for (_, _, k, s, p, pool), (wp, bp) in zip(CONV_CFG, conv_p):
        x = conv2d(x, wp, bp, k=k, stride=s, padding=p, leaky=True)
        if pool:
            x = maxpool2x2(x)
    # pre=False branch: x.view(-1, 4*4*1024) in torch NCHW order, then fc.
    B = x.shape[0]
    x_flat = jnp.transpose(x, (0, 3, 1, 2)).reshape(B, FC_IN)
    return linear(x_flat, fc_w_t, fc_b_p, FC_OUT)
    # TODO(synk): pre=True branch (fc1/fc2 applied to a 4-D conv tensor) is
    # shape-inconsistent in the reference module and is not implemented.


# ----------------------------------------------------------------------------
# Correctness checks against XLA references (bf16-quantized operands)
# ----------------------------------------------------------------------------
def _conv_ref(x, w, stride, padding):
    xq = x.astype(jnp.bfloat16).astype(jnp.float32)
    wq = w.astype(jnp.bfloat16).astype(jnp.float32)
    return lax.conv_general_dilated(
        xq, wq, (stride, stride), [(padding, padding)] * 2,
        dimension_numbers=("NHWC", "HWIO", "NHWC"),
        precision=lax.Precision.HIGHEST)


def _run_conv(x, w, b, stride, padding):
    wp, bp = prepare_conv(w, b, stride)
    return conv2d(x, wp, bp, k=w.shape[0], stride=stride, padding=padding,
                  leaky=False)


def _check_against_xla(key):
    ks = jax.random.split(key, 12)
    # 1) stride-1 3x3, Wo not a multiple of 8 (exercises Wop padding).
    x = jax.random.normal(ks[0], (2, 10, 10, 8), jnp.float32)
    w = jax.random.normal(ks[1], (3, 3, 8, 16), jnp.float32) * 0.1
    got = _run_conv(x, w, jnp.zeros((16,), jnp.float32), 1, 1)
    assert jnp.allclose(got.astype(jnp.float32), _conv_ref(x, w, 1, 1),
                        atol=3e-2, rtol=3e-2)
    # 2) stride-2 7x7 small-Cin (zero-padded s2d remap path, layer1 style).
    x = jax.random.normal(ks[2], (1, 12, 12, 3), jnp.float32)
    w = jax.random.normal(ks[3], (7, 7, 3, 16), jnp.float32) * 0.1
    got = _run_conv(x, w, jnp.zeros((16,), jnp.float32), 2, 3)
    assert jnp.allclose(got.astype(jnp.float32), _conv_ref(x, w, 2, 3),
                        atol=3e-2, rtol=3e-2)
    # 3) stride-2 3x3 pad2 small-Cin (odd-size remap path).
    x = jax.random.normal(ks[4], (1, 5, 5, 8), jnp.float32)
    w = jax.random.normal(ks[5], (3, 3, 8, 32), jnp.float32) * 0.1
    got = _run_conv(x, w, jnp.zeros((32,), jnp.float32), 2, 2)
    assert jnp.allclose(got.astype(jnp.float32), _conv_ref(x, w, 2, 2),
                        atol=3e-2, rtol=3e-2)
    # 4) stride-2 3x3 pad2 with lane-aligned Cin (grouped-tap path = layer5 tail).
    x = jax.random.normal(ks[6], (2, 5, 5, 128), jnp.float32)
    w = jax.random.normal(ks[7], (3, 3, 128, 256), jnp.float32) * 0.05
    bb = jax.random.normal(ks[8], (256,), jnp.float32) * 0.1
    got = _run_conv(x, w, bb, 2, 2)
    ref = _conv_ref(x, w, 2, 2) + bb
    assert jnp.allclose(got.astype(jnp.float32), ref, atol=5e-2, rtol=5e-2)
    # 5) maxpool 2x2 (C=64 and C=192 lane-pairing cases).
    for shape, kk in (((1, 8, 8, 64), ks[9]), ((2, 4, 4, 192), ks[10])):
        xp_ = jax.random.normal(kk, shape, jnp.float32).astype(jnp.bfloat16)
        got = maxpool2x2(xp_)
        Bq, Hq, Wq, Cq = shape
        ref = xp_.reshape(Bq, Hq // 2, 2, Wq // 2, 2, Cq).max(axis=(2, 4))
        assert jnp.array_equal(got, ref)
    # 6) linear with N padding (100 -> 128).
    xl = jax.random.normal(ks[0], (2, 4096), jnp.float32)
    wl = jax.random.normal(ks[1], (100, 4096), jnp.float32) * 0.02
    bl = jax.random.normal(ks[2], (100,), jnp.float32) * 0.1
    wt_p, b_p = prepare_fc(wl, bl)
    got = linear(xl, wt_p, b_p, 100)
    ref = jnp.dot(xl.astype(jnp.bfloat16).astype(jnp.float32),
                  wl.T.astype(jnp.bfloat16).astype(jnp.float32),
                  precision=lax.Precision.HIGHEST) + bl
    assert jnp.allclose(got, ref, atol=3e-2, rtol=3e-2)


if __name__ == "__main__":
    key = jax.random.PRNGKey(0)
    pkey, xkey, ckey = jax.random.split(key, 3)

    _check_against_xla(ckey)

    convs, fc = init_params(pkey)
    params = prepare_params(convs, fc)       # one-time weight packing, outside jit
    # Smallest spatial size consistent with fc = Linear(4*4*1024, 1000): 160x160 RGB.
    x = jax.random.normal(xkey, (2, 3, 160, 160), jnp.float32)

    fwd = jax.jit(yolo_v1_forward)
    out = jax.block_until_ready(fwd(x, params))

    assert out.shape == (2, 1000), out.shape
    assert bool(jnp.all(jnp.isfinite(out)))
    print("KERNEL_OK")
</pallas_src>

<mosaic_0001>
module attributes {stable_mosaic.version = 11 : i64} {
  func.func @_conv_kernel(%arg0: i32, %arg1: i32, %arg2: i32, %arg3: memref<1x12x18x8xbf16, #tpu.memory_space<vmem>>, %arg4: memref<9x8x16xbf16, #tpu.memory_space<vmem>>, %arg5: memref<1x16xf32, #tpu.memory_space<vmem>>, %arg6: memref<1x10x10x16xbf16, #tpu.memory_space<vmem>>, %arg7: memref<160x16xf32, #tpu.memory_space<vmem>>) attributes {dimension_semantics = [#tpu.dimension_semantics<parallel>, #tpu.dimension_semantics<parallel>, #tpu.dimension_semantics<arbitrary>], iteration_bounds = array<i64: 2, 1, 1>, scalar_prefetch = 0 : i64, scratch_operands = 1 : i64, tpu.core_type = #tpu.core_type<tc>, window_params = [{transform_indices = @transform_0, window_bounds = array<i64: 1, 12, 18, 8>}, {transform_indices = @transform_1, window_bounds = array<i64: 9, 8, 16>}, {transform_indices = @transform_2, window_bounds = array<i64: 1, 16>}, {transform_indices = @transform_3, window_bounds = array<i64: 1, 10, 10, 16>}]} {
    %c0_i32 = arith.constant 0 : i32
    %0 = arith.cmpi eq, %arg2, %c0_i32 : i32
    %1 = arith.extui %0 : i1 to i32
    %c0_i32_0 = arith.constant 0 : i32
    %2 = arith.cmpi ne, %1, %c0_i32_0 : i32
    scf.if %2 {
      %cst_77 = arith.constant 0.000000e+00 : f32
      %81 = vector.broadcast %cst_77 : f32 to vector<160x16xf32>
      %c0_78 = arith.constant 0 : index
      %c0_79 = arith.constant 0 : index
      %82 = vector.load %arg7[%c0_78, %c0_79] : memref<160x16xf32, #tpu.memory_space<vmem>>, vector<160x16xf32>
      tpu.vector_store %arg7[%c0_78, %c0_79], %81 {strides = array<i32>} : memref<160x16xf32, #tpu.memory_space<vmem>>, vector<160x16xf32>,
    } else {
    }
    %c0 = arith.constant 0 : index
    %c0_1 = arith.constant 0 : index
    %c0_2 = arith.constant 0 : index
    %c0_3 = arith.constant 0 : index
    %3 = vector.load %arg3[%c0, %c0_1, %c0_2, %c0_3] : memref<1x12x18x8xbf16, #tpu.memory_space<vmem>>, vector<1x12x16x8xbf16>
    %4 = vector.extract_strided_slice %3 {offsets = [0, 0, 0, 0], sizes = [1, 10, 16, 8], strides = [1, 1, 1, 1]} : vector<1x12x16x8xbf16> to vector<1x10x16x8xbf16>
    %c0_4 = arith.constant 0 : index
    %c0_5 = arith.constant 0 : index
    %5 = vector.load %arg7[%c0_4, %c0_5] : memref<160x16xf32, #tpu.memory_space<vmem>>, vector<160x16xf32>
    %6 = vector.shape_cast %4 : vector<1x10x16x8xbf16> to vector<160x8xbf16>
    %c0_6 = arith.constant 0 : index
    %c0_7 = arith.constant 0 : index
    %c0_8 = arith.constant 0 : index
    %7 = vector.load %arg4[%c0_6, %c0_7, %c0_8] : memref<9x8x16xbf16, #tpu.memory_space<vmem>>, vector<1x8x16xbf16>
    %8 = vector.shape_cast %7 : vector<1x8x16xbf16> to vector<8x16xbf16>
    %cst = arith.constant dense<0.000000e+00> : vector<160x16xf32>
    %9 = tpu.matmul %6, %8, %cst {dimension_numbers = #tpu.dot_dimension_numbers<[1], [0], [0], [1], [0, 0, 1, 1], [], []>} : vector<160x8xbf16>, vector<8x16xbf16>, vector<160x16xf32> -> vector<160x16xf32>
    %10 = arith.addf %5, %9 : vector<160x16xf32>
    %c0_9 = arith.constant 0 : index
    %c0_10 = arith.constant 0 : index
    %11 = vector.load %arg7[%c0_9, %c0_10] : memref<160x16xf32, #tpu.memory_space<vmem>>, vector<160x16xf32>
    tpu.vector_store %arg7[%c0_9, %c0_10], %10 {strides = array<i32>} : memref<160x16xf32, #tpu.memory_space<vmem>>, vector<160x16xf32>,
    %12 = vector.extract_strided_slice %3 {offsets = [0, 1, 0, 0], sizes = [1, 10, 16, 8], strides = [1, 1, 1, 1]} : vector<1x12x16x8xbf16> to vector<1x10x16x8xbf16>
    %c0_11 = arith.constant 0 : index
    %c0_12 = arith.constant 0 : index
    %13 = vector.load %arg7[%c0_11, %c0_12] : memref<160x16xf32, #tpu.memory_space<vmem>>, vector<160x16xf32>
    %14 = vector.shape_cast %12 : vector<1x10x16x8xbf16> to vector<160x8xbf16>
    %c3 = arith.constant 3 : index
    %c0_13 = arith.constant 0 : index
    %c0_14 = arith.constant 0 : index
    %15 = vector.load %arg4[%c3, %c0_13, %c0_14] : memref<9x8x16xbf16, #tpu.memory_space<vmem>>, vector<1x8x16xbf16>
    %16 = vector.shape_cast %15 : vector<1x8x16xbf16> to vector<8x16xbf16>
    %cst_15 = arith.constant dense<0.000000e+00> : vector<160x16xf32>
    %17 = tpu.matmul %14, %16, %cst_15 {dimension_numbers = #tpu.dot_dimension_numbers<[1], [0], [0], [1], [0, 0, 1, 1], [], []>} : vector<160x8xbf16>, vector<8x16xbf16>, vector<160x16xf32> -> vector<160x16xf32>
    %18 = arith.addf %13, %17 : vector<160x16xf32>
    %c0_16 = arith.constant 0 : index
    %c0_17 = arith.constant 0 : index
    %19 = vector.load %arg7[%c0_16, %c0_17] : memref<160x16xf32, #tpu.memory_space<vmem>>, vector<160x16xf32>
    tpu.vector_store %arg7[%c0_16, %c0_17], %18 {strides = array<i32>} : memref<160x16xf32, #tpu.memory_space<vmem>>, vector<160x16xf32>,
    %20 = vector.extract_strided_slice %3 {offsets = [0, 2, 0, 0], sizes = [1, 10, 16, 8], strides = [1, 1, 1, 1]} : vector<1x12x16x8xbf16> to vector<1x10x16x8xbf16>
    %c0_18 = arith.constant 0 : index
    %c0_19 = arith.constant 0 : index
    %21 = vector.load %arg7[%c0_18, %c0_19] : memref<160x16xf32, #tpu.memory_space<vmem>>, vector<160x16xf32>
    %22 = vector.shape_cast %20 : vector<1x10x16x8xbf16> to vector<160x8xbf16>
    %c6 = arith.constant 6 : index
    %c0_20 = arith.constant 0 : index
    %c0_21 = arith.constant 0 : index
    %23 = vector.load %arg4[%c6, %c0_20, %c0_21] : memref<9x8x16xbf16, #tpu.memory_space<vmem>>, vector<1x8x16xbf16>
    %24 = vector.shape_cast %23 : vector<1x8x16xbf16> to vector<8x16xbf16>
    %cst_22 = arith.constant dense<0.000000e+00> : vector<160x16xf32>
    %25 = tpu.matmul %22, %24, %cst_22 {dimension_numbers = #tpu.dot_dimension_numbers<[1], [0], [0], [1], [0, 0, 1, 1], [], []>} : vector<160x8xbf16>, vector<8x16xbf16>, vector<160x16xf32> -> vector<160x16xf32>
    %26 = arith.addf %21, %25 : vector<160x16xf32>
    %c0_23 = arith.constant 0 : index
    %c0_24 = arith.constant 0 : index
    %27 = vector.load %arg7[%c0_23, %c0_24] : memref<160x16xf32, #tpu.memory_space<vmem>>, vector<160x16xf32>
    tpu.vector_store %arg7[%c0_23, %c0_24], %26 {strides = array<i32>} : memref<160x16xf32, #tpu.memory_space<vmem>>, vector<160x16xf32>,
    %c0_25 = arith.constant 0 : index
    %c0_26 = arith.constant 0 : index
    %c1 = arith.constant 1 : index
    %c0_27 = arith.constant 0 : index
    %28 = vector.load %arg3[%c0_25, %c0_26, %c1, %c0_27] : memref<1x12x18x8xbf16, #tpu.memory_space<vmem>>, vector<1x12x16x8xbf16>
    %29 = vector.extract_strided_slice %28 {offsets = [0, 0, 0, 0], sizes = [1, 10, 16, 8], strides = [1, 1, 1, 1]} : vector<1x12x16x8xbf16> to vector<1x10x16x8xbf16>
    %c0_28 = arith.constant 0 : index
    %c0_29 = arith.constant 0 : index
    %30 = vector.load %arg7[%c0_28, %c0_29] : memref<160x16xf32, #tpu.memory_space<vmem>>, vector<160x16xf32>
    %31 = vector.shape_cast %29 : vector<1x10x16x8xbf16> to vector<160x8xbf16>
    %c1_30 = arith.constant 1 : index
    %c0_31 = arith.constant 0 : index
    %c0_32 = arith.constant 0 : index
    %32 = vector.load %arg4[%c1_30, %c0_31, %c0_32] : memref<9x8x16xbf16, #tpu.memory_space<vmem>>, vector<1x8x16xbf16>
    %33 = vector.shape_cast %32 : vector<1x8x16xbf16> to vector<8x16xbf16>
    %cst_33 = arith.constant dense<0.000000e+00> : vector<160x16xf32>
    %34 = tpu.matmul %31, %33, %cst_33 {dimension_numbers = #tpu.dot_dimension_numbers<[1], [0], [0], [1], [0, 0, 1, 1], [], []>} : vector<160x8xbf16>, vector<8x16xbf16>, vector<160x16xf32> -> vector<160x16xf32>
    %35 = arith.addf %30, %34 : vector<160x16xf32>
    %c0_34 = arith.constant 0 : index
    %c0_35 = arith.constant 0 : index
    %36 = vector.load %arg7[%c0_34, %c0_35] : memref<160x16xf32, #tpu.memory_space<vmem>>, vector<160x16xf32>
    tpu.vector_store %arg7[%c0_34, %c0_35], %35 {strides = array<i32>} : memref<160x16xf32, #tpu.memory_space<vmem>>, vector<160x16xf32>,
    %37 = vector.extract_strided_slice %28 {offsets = [0, 1, 0, 0], sizes = [1, 10, 16, 8], strides = [1, 1, 1, 1]} : vector<1x12x16x8xbf16> to vector<1x10x16x8xbf16>
    %c0_36 = arith.constant 0 : index
    %c0_37 = arith.constant 0 : index
    %38 = vector.load %arg7[%c0_36, %c0_37] : memref<160x16xf32, #tpu.memory_space<vmem>>, vector<160x16xf32>
    %39 = vector.shape_cast %37 : vector<1x10x16x8xbf16> to vector<160x8xbf16>
    %c4 = arith.constant 4 : index
    %c0_38 = arith.constant 0 : index
    %c0_39 = arith.constant 0 : index
    %40 = vector.load %arg4[%c4, %c0_38, %c0_39] : memref<9x8x16xbf16, #tpu.memory_space<vmem>>, vector<1x8x16xbf16>
    %41 = vector.shape_cast %40 : vector<1x8x16xbf16> to vector<8x16xbf16>
    %cst_40 = arith.constant dense<0.000000e+00> : vector<160x16xf32>
    %42 = tpu.matmul %39, %41, %cst_40 {dimension_numbers = #tpu.dot_dimension_numbers<[1], [0], [0], [1], [0, 0, 1, 1], [], []>} : vector<160x8xbf16>, vector<8x16xbf16>, vector<160x16xf32> -> vector<160x16xf32>
    %43 = arith.addf %38, %42 : vector<160x16xf32>
    %c0_41 = arith.constant 0 : index
    %c0_42 = arith.constant 0 : index
    %44 = vector.load %arg7[%c0_41, %c0_42] : memref<160x16xf32, #tpu.memory_space<vmem>>, vector<160x16xf32>
    tpu.vector_store %arg7[%c0_41, %c0_42], %43 {strides = array<i32>} : memref<160x16xf32, #tpu.memory_space<vmem>>, vector<160x16xf32>,
    %45 = vector.extract_strided_slice %28 {offsets = [0, 2, 0, 0], sizes = [1, 10, 16, 8], strides = [1, 1, 1, 1]} : vector<1x12x16x8xbf16> to vector<1x10x16x8xbf16>
    %c0_43 = arith.constant 0 : index
    %c0_44 = arith.constant 0 : index
    %46 = vector.load %arg7[%c0_43, %c0_44] : memref<160x16xf32, #tpu.memory_space<vmem>>, vector<160x16xf32>
    %47 = vector.shape_cast %45 : vector<1x10x16x8xbf16> to vector<160x8xbf16>
    %c7 = arith.constant 7 : index
    %c0_45 = arith.constant 0 : index
    %c0_46 = arith.constant 0 : index
    %48 = vector.load %arg4[%c7, %c0_45, %c0_46] : memref<9x8x16xbf16, #tpu.memory_space<vmem>>, vector<1x8x16xbf16>
    %49 = vector.shape_cast %48 : vector<1x8x16xbf16> to vector<8x16xbf16>
    %cst_47 = arith.constant dense<0.000000e+00> : vector<160x16xf32>
    %50 = tpu.matmul %47, %49, %cst_47 {dimension_numbers = #tpu.dot_dimension_numbers<[1], [0], [0], [1], [0, 0, 1, 1], [], []>} : vector<160x8xbf16>, vector<8x16xbf16>, vector<160x16xf32> -> vector<160x16xf32>
    %51 = arith.addf %46, %50 : vector<160x16xf32>
    %c0_48 = arith.constant 0 : index
    %c0_49 = arith.constant 0 : index
    %52 = vector.load %arg7[%c0_48, %c0_49] : memref<160x16xf32, #tpu.memory_space<vmem>>, vector<160x16xf32>
    tpu.vector_store %arg7[%c0_48, %c0_49], %51 {strides = array<i32>} : memref<160x16xf32, #tpu.memory_space<vmem>>, vector<160x16xf32>,
    %c0_50 = arith.constant 0 : index
    %c0_51 = arith.constant 0 : index
    %c2 = arith.constant 2 : index
    %c0_52 = arith.constant 0 : index
    %53 = vector.load %arg3[%c0_50, %c0_51, %c2, %c0_52] : memref<1x12x18x8xbf16, #tpu.memory_space<vmem>>, vector<1x12x16x8xbf16>
    %54 = vector.extract_strided_slice %53 {offsets = [0, 0, 0, 0], sizes = [1, 10, 16, 8], strides = [1, 1, 1, 1]} : vector<1x12x16x8xbf16> to vector<1x10x16x8xbf16>
    %c0_53 = arith.constant 0 : index
    %c0_54 = arith.constant 0 : index
    %55 = vector.load %arg7[%c0_53, %c0_54] : memref<160x16xf32, #tpu.memory_space<vmem>>, vector<160x16xf32>
    %56 = vector.shape_cast %54 : vector<1x10x16x8xbf16> to vector<160x8xbf16>
    %c2_55 = arith.constant 2 : index
    %c0_56 = arith.constant 0 : index
    %c0_57 = arith.constant 0 : index
    %57 = vector.load %arg4[%c2_55, %c0_56, %c0_57] : memref<9x8x16xbf16, #tpu.memory_space<vmem>>, vector<1x8x16xbf16>
    %58 = vector.shape_cast %57 : vector<1x8x16xbf16> to vector<8x16xbf16>
    %cst_58 = arith.constant dense<0.000000e+00> : vector<160x16xf32>
    %59 = tpu.matmul %56, %58, %cst_58 {dimension_numbers = #tpu.dot_dimension_numbers<[1], [0], [0], [1], [0, 0, 1, 1], [], []>} : vector<160x8xbf16>, vector<8x16xbf16>, vector<160x16xf32> -> vector<160x16xf32>
    %60 = arith.addf %55, %59 : vector<160x16xf32>
    %c0_59 = arith.constant 0 : index
    %c0_60 = arith.constant 0 : index
    %61 = vector.load %arg7[%c0_59, %c0_60] : memref<160x16xf32, #tpu.memory_space<vmem>>, vector<160x16xf32>
    tpu.vector_store %arg7[%c0_59, %c0_60], %60 {strides = array<i32>} : memref<160x16xf32, #tpu.memory_space<vmem>>, vector<160x16xf32>,
    %62 = vector.extract_strided_slice %53 {offsets = [0, 1, 0, 0], sizes = [1, 10, 16, 8], strides = [1, 1, 1, 1]} : vector<1x12x16x8xbf16> to vector<1x10x16x8xbf16>
    %c0_61 = arith.constant 0 : index
    %c0_62 = arith.constant 0 : index
    %63 = vector.load %arg7[%c0_61, %c0_62] : memref<160x16xf32, #tpu.memory_space<vmem>>, vector<160x16xf32>
    %64 = vector.shape_cast %62 : vector<1x10x16x8xbf16> to vector<160x8xbf16>
    %c5 = arith.constant 5 : index
    %c0_63 = arith.constant 0 : index
    %c0_64 = arith.constant 0 : index
    %65 = vector.load %arg4[%c5, %c0_63, %c0_64] : memref<9x8x16xbf16, #tpu.memory_space<vmem>>, vector<1x8x16xbf16>
    %66 = vector.shape_cast %65 : vector<1x8x16xbf16> to vector<8x16xbf16>
    %cst_65 = arith.constant dense<0.000000e+00> : vector<160x16xf32>
    %67 = tpu.matmul %64, %66, %cst_65 {dimension_numbers = #tpu.dot_dimension_numbers<[1], [0], [0], [1], [0, 0, 1, 1], [], []>} : vector<160x8xbf16>, vector<8x16xbf16>, vector<160x16xf32> -> vector<160x16xf32>
    %68 = arith.addf %63, %67 : vector<160x16xf32>
    %c0_66 = arith.constant 0 : index
    %c0_67 = arith.constant 0 : index
    %69 = vector.load %arg7[%c0_66, %c0_67] : memref<160x16xf32, #tpu.memory_space<vmem>>, vector<160x16xf32>
    tpu.vector_store %arg7[%c0_66, %c0_67], %68 {strides = array<i32>} : memref<160x16xf32, #tpu.memory_space<vmem>>, vector<160x16xf32>,
    %70 = vector.extract_strided_slice %53 {offsets = [0, 2, 0, 0], sizes = [1, 10, 16, 8], strides = [1, 1, 1, 1]} : vector<1x12x16x8xbf16> to vector<1x10x16x8xbf16>
    %c0_68 = arith.constant 0 : index
    %c0_69 = arith.constant 0 : index
    %71 = vector.load %arg7[%c0_68, %c0_69] : memref<160x16xf32, #tpu.memory_space<vmem>>, vector<160x16xf32>
    %72 = vector.shape_cast %70 : vector<1x10x16x8xbf16> to vector<160x8xbf16>
    %c8 = arith.constant 8 : index
    %c0_70 = arith.constant 0 : index
    %c0_71 = arith.constant 0 : index
    %73 = vector.load %arg4[%c8, %c0_70, %c0_71] : memref<9x8x16xbf16, #tpu.memory_space<vmem>>, vector<1x8x16xbf16>
    %74 = vector.shape_cast %73 : vector<1x8x16xbf16> to vector<8x16xbf16>
    %cst_72 = arith.constant dense<0.000000e+00> : vector<160x16xf32>
    %75 = tpu.matmul %72, %74, %cst_72 {dimension_numbers = #tpu.dot_dimension_numbers<[1], [0], [0], [1], [0, 0, 1, 1], [], []>} : vector<160x8xbf16>, vector<8x16xbf16>, vector<160x16xf32> -> vector<160x16xf32>
    %76 = arith.addf %71, %75 : vector<160x16xf32>
    %c0_73 = arith.constant 0 : index
    %c0_74 = arith.constant 0 : index
    %77 = vector.load %arg7[%c0_73, %c0_74] : memref<160x16xf32, #tpu.memory_space<vmem>>, vector<160x16xf32>
    tpu.vector_store %arg7[%c0_73, %c0_74], %76 {strides = array<i32>} : memref<160x16xf32, #tpu.memory_space<vmem>>, vector<160x16xf32>,
    %c0_i32_75 = arith.constant 0 : i32
    %78 = arith.cmpi eq, %arg2, %c0_i32_75 : i32
    %79 = arith.extui %78 : i1 to i32
    %c0_i32_76 = arith.constant 0 : i32
    %80 = arith.cmpi ne, %79, %c0_i32_76 : i32
    scf.if %80 {
      %c0_77 = arith.constant 0 : index
      %c0_78 = arith.constant 0 : index
      %81 = vector.load %arg7[%c0_77, %c0_78] : memref<160x16xf32, #tpu.memory_space<vmem>>, vector<160x16xf32>
      %82 = vector.shape_cast %81 : vector<160x16xf32> to vector<1x10x16x16xf32>
      %83 = vector.extract_strided_slice %82 {offsets = [0, 0, 0, 0], sizes = [1, 10, 10, 16], strides = [1, 1, 1, 1]} : vector<1x10x16x16xf32> to vector<1x10x10x16xf32>
      %c0_79 = arith.constant 0 : index
      %c0_80 = arith.constant 0 : index
      %84 = vector.load %arg5[%c0_79, %c0_80] : memref<1x16xf32, #tpu.memory_space<vmem>>, vector<1x16xf32>
      %85 = vector.shape_cast %84 : vector<1x16xf32> to vector<1x1x1x16xf32>
      %86 = vector.broadcast %85 : vector<1x1x1x16xf32> to vector<1x10x10x16xf32>
      %87 = arith.addf %83, %86 : vector<1x10x10x16xf32>
      %88 = arith.truncf %87 : vector<1x10x10x16xf32> to vector<1x10x10x16xbf16>
      %c0_81 = arith.constant 0 : index
      %c0_82 = arith.constant 0 : index
      %c0_83 = arith.constant 0 : index
      %c0_84 = arith.constant 0 : index
      %89 = vector.load %arg6[%c0_81, %c0_82, %c0_83, %c0_84] : memref<1x10x10x16xbf16, #tpu.memory_space<vmem>>, vector<1x10x10x16xbf16>
      tpu.vector_store %arg6[%c0_81, %c0_82, %c0_83, %c0_84], %88 {strides = array<i32>} : memref<1x10x10x16xbf16, #tpu.memory_space<vmem>>, vector<1x10x10x16xbf16>,
    } else {
    }
    return
  }
  func.func @transform_0(%arg0: i32, %arg1: i32, %arg2: i32) -> (i32, i32, i32, i32) {
    %c0_i32 = arith.constant 0 : i32
    %c0_i32_0 = arith.constant 0 : i32
    %c0_i32_1 = arith.constant 0 : i32
    return %arg0, %c0_i32, %c0_i32_0, %arg2 : i32, i32, i32, i32
  }
  func.func @transform_1(%arg0: i32, %arg1: i32, %arg2: i32) -> (i32, i32, i32) {
    %c0_i32 = arith.constant 0 : i32
    %c0_i32_0 = arith.constant 0 : i32
    return %c0_i32, %arg2, %arg1 : i32, i32, i32
  }
  func.func @transform_2(%arg0: i32, %arg1: i32, %arg2: i32) -> (i32, i32) {
    %c0_i32 = arith.constant 0 : i32
    %c0_i32_0 = arith.constant 0 : i32
    return %c0_i32, %arg1 : i32, i32
  }
  func.func @transform_3(%arg0: i32, %arg1: i32, %arg2: i32) -> (i32, i32, i32, i32) {
    %c0_i32 = arith.constant 0 : i32
    %c0_i32_0 = arith.constant 0 : i32
    %c0_i32_1 = arith.constant 0 : i32
    return %arg0, %c0_i32, %c0_i32_0, %arg1 : i32, i32, i32, i32
  }
}

</mosaic_0001>

<llo_original>
// kernel: tpu_custom_call.1
$region0: #{tpu_custom_call.1}
  #allocation0 [shape = 'u32[]', space=smem, size = 0x4, offset = 0x4, fixed_abs, tag = 'smem constant byte address 0x4 - core index']
  #allocation1 [shape = 'u32[144,128]{1,0:T(1,128)}', space=vmem, size = 0x12000, scoped, tag = 'internal scratch']
  #allocation2 [shape = 'f32[160,16]{1,0:T(8,128)}', space=vmem, size = 0x14000, scoped, tag = 'scratch operand']
  %s0 = inlined_call_operand.vmem [shape: bf16[2,12,18,8], index: 0, kind: input, shape index: {}]
  %s1 = inlined_call_operand.vmem [shape: bf16[9,8,16], index: 1, kind: input, shape index: {}]
  %s2 = inlined_call_operand.vmem [shape: f32[1,16], index: 2, kind: input, shape index: {}]
  %s3 = inlined_call_operand.vmem [shape: bf16[2,10,10,16], index: 3, kind: output, shape index: {}]
  %s4 = sld [smem:[#allocation0]]
  $region53: #{tpu_custom_call.1} parent=0
    _
  %s6 = ssub.s32 1, %s4
  %s7 = scalar_select 0, %s6, %s4
  loop: start=0, step=1, limit=4
  $region2: #{tpu_custom_call.1} parent=0 // loop_pre_header
    _
  $region3: #{tpu_custom_call.1} parent=0 // loop_header
    %s9 = sphi 0, %s13
    %p10 = scmp.ge.s32.totalorder %s9, 4
    %s16 = sphi 0, %s35
    %s17 = sphi 0, %s31
    %s18 = sphi 0, %s27
    %s19 = sphi 0, %s16
    %s20 = sphi 0, %s17
    %s21 = sphi 0, %s18
    %s22 = sphi 0, %s19
    %s23 = sphi 0, %s20
    %s24 = sphi 0, %s21
    %s40 = sphi 0, %s42
    %s43 = sphi 0, %s40
    %s44 = sphi 0, %s43
    %s60 = sphi 0, %s44
    %s68 = sphi 0, %s70
    %s71 = sphi 0, %s68
    %s72 = sphi 0, %s71
    %s88 = sphi 0, %s72
    %s94 = sphi 0, %s96
    %s97 = sphi 0, %s94
    %s98 = sphi 0, %s97
    %s114 = sphi 0, %s98
    %s122 = sphi 0, %s124
    %s125 = sphi 0, %s122
    %s126 = sphi 0, %s125
    %s142 = sphi 0, %s126
  $region4: #{tpu_custom_call.1} parent=0 // loop_header_branch
    %12 = sbr.rel (%p10) target = $region8
  $region5: #{tpu_custom_call.1} parent=0 // loop_body
    %s14 = ssub.s32 %s9, 1
    %s15 = ssub.s32 %s9, 2
    %s25 = sadd.s32 1, %s18
    %p26 = scmp.ge.s32.totalorder %s25, 1
    %s27 = scalar_select %p26, 0, %s25
    %s28 = sadd.s32 1, %s17
    %s29 = scalar_select %p26, %s28, %s17
    %p30 = scmp.ge.s32.totalorder %s29, 1
    %s31 = scalar_select %p30, 0, %s29
    %s32 = sadd.s32 1, %s16
    %s33 = scalar_select %p30, %s32, %s16
    %p34 = scmp.ge.s32.totalorder %s33, 2
    %s35 = scalar_select %p34, 0, %s33
    %s36 = ssub.s32 %s16, %s35
    %s37 = ssub.s32 %s18, %s27
    %s38 = sor.u32 %s36, %s37
    %p39 = scmp.eq.s32.totalorder %s38, 0
    %s41 = sadd.s32 %s40, 1
    %s42 = scalar_select %p39, %s40, %s41
    %p45 = pneg %p39
    %p46 = scmp.eq.s32.totalorder %s9, 1
    %p47 = por %p45, %p46
    %p48 = scmp.ne.s32.totalorder %s40, %s43
    %p49 = scmp.eq.s32.totalorder %s9, 0
    %p50 = por %p48, %p49
    %p51 = scmp.ne.s32.totalorder %s40, %s43
    %p52 = scmp.eq.s32.totalorder %s14, 1
    %p53 = por %p51, %p52
    %p54 = scmp.ne.s32.totalorder %s43, %s44
    %p55 = scmp.eq.s32.totalorder %s14, 0
    %p56 = por %p54, %p55
    %p57 = scmp.ne.s32.totalorder %s43, %s44
    %p58 = scmp.eq.s32.totalorder %s15, 1
    %p59 = por %p57, %p58
    %p61 = scmp.ne.s32.totalorder %s44, %s60
    %p62 = scmp.eq.s32.totalorder %s15, 0
    %p63 = por %p61, %p62
    %s64 = ssub.s32 %s18, %s27
    %s65 = ssub.s32 %s17, %s31
    %s66 = sor.u32 %s64, %s65
    %p67 = scmp.eq.s32.totalorder %s66, 0
    %s69 = sadd.s32 %s68, 1
    %s70 = scalar_select %p67, %s68, %s69
    %p73 = pneg %p67
    %p74 = scmp.eq.s32.totalorder %s9, 1
    %p75 = por %p73, %p74
    %p76 = scmp.ne.s32.totalorder %s68, %s71
    %p77 = scmp.eq.s32.totalorder %s9, 0
    %p78 = por %p76, %p77
    %p79 = scmp.ne.s32.totalorder %s68, %s71
    %p80 = scmp.eq.s32.totalorder %s14, 1
    %p81 = por %p79, %p80
    %p82 = scmp.ne.s32.totalorder %s71, %s72
    %p83 = scmp.eq.s32.totalorder %s14, 0
    %p84 = por %p82, %p83
    %p85 = scmp.ne.s32.totalorder %s71, %s72
    %p86 = scmp.eq.s32.totalorder %s15, 1
    %p87 = por %p85, %p86
    %p89 = scmp.ne.s32.totalorder %s72, %s88
    %p90 = scmp.eq.s32.totalorder %s15, 0
    %p91 = por %p89, %p90
    %s92 = ssub.s32 %s17, %s31
    %p93 = scmp.eq.s32.totalorder %s92, 0
    %s95 = sadd.s32 %s94, 1
    %s96 = scalar_select %p93, %s94, %s95
    %p99 = pneg %p93
    %p100 = scmp.eq.s32.totalorder %s9, 1
    %p101 = por %p99, %p100
    %p102 = scmp.ne.s32.totalorder %s94, %s97
    %p103 = scmp.eq.s32.totalorder %s9, 0
    %p104 = por %p102, %p103
    %p105 = scmp.ne.s32.totalorder %s94, %s97
    %p106 = scmp.eq.s32.totalorder %s14, 1
    %p107 = por %p105, %p106
    %p108 = scmp.ne.s32.totalorder %s97, %s98
    %p109 = scmp.eq.s32.totalorder %s14, 0
    %p110 = por %p108, %p109
    %p111 = scmp.ne.s32.totalorder %s97, %s98
    %p112 = scmp.eq.s32.totalorder %s15, 1
    %p113 = por %p111, %p112
    %p115 = scmp.ne.s32.totalorder %s98, %s114
    %p116 = scmp.eq.s32.totalorder %s15, 0
    %p117 = por %p115, %p116
    %s118 = ssub.s32 %s16, %s35
    %s119 = ssub.s32 %s17, %s31
    %s120 = sor.u32 %s118, %s119
    %p121 = scmp.eq.s32.totalorder %s120, 0
    %s123 = sadd.s32 %s122, 1
    %s124 = scalar_select %p121, %s122, %s123
    %p127 = pneg %p121
    %p128 = scmp.eq.s32.totalorder %s9, 1
    %p129 = por %p127, %p128
    %p130 = scmp.ne.s32.totalorder %s122, %s125
    %p131 = scmp.eq.s32.totalorder %s9, 0
    %p132 = por %p130, %p131
    %p133 = scmp.ne.s32.totalorder %s122, %s125
    %p134 = scmp.eq.s32.totalorder %s14, 1
    %p135 = por %p133, %p134
    %p136 = scmp.ne.s32.totalorder %s125, %s126
    %p137 = scmp.eq.s32.totalorder %s14, 0
    %p138 = por %p136, %p137
    %p139 = scmp.ne.s32.totalorder %s125, %s126
    %p140 = scmp.eq.s32.totalorder %s15, 1
    %p141 = por %p139, %p140
    %p143 = scmp.ne.s32.totalorder %s126, %s142
    %p144 = scmp.eq.s32.totalorder %s15, 0
    %p145 = por %p143, %p144
    %p146 = scmp.le.s32.totalorder 1, %s9
    %p147 = scmp.lt.s32.totalorder %s9, 3
    %p148 = pnand %p146, %p147
    %p149 = pneg %p148
    // Predicated region
    $region9: #{tpu_custom_call.1} parent=5 // pred_check
      _
    $region10: #{tpu_custom_call.1} parent=5 // pred_check_branch
      %151 = sbr.rel (%p148) target = $region12
    $region11: #{tpu_custom_call.1} parent=5 // pred_region
      %s152 = ssub.s32 %s9, 1
      // Predicated region
      $region13: #{tpu_custom_call.1} parent=11 // pred_check
        %p153 = pneg %p84
      $region14: #{tpu_custom_call.1} parent=11 // pred_check_branch
        %155 = sbr.rel (%p153) target = $region16
      $region15: #{tpu_custom_call.1} parent=11 // pred_region
        %p156 = scmp.lt.s32.totalorder %s21, 0
        %s157 = scalar_select %p156, %s21, 0
        %p158 = scmp.lt.s32.totalorder %s20, 0
        %s159 = scalar_select %p158, %s20, 0
        %s160 = sadd.s32 %s159, %s157
        %s161 = smul.addr %s160, 4
        %s162 = scalar_lea.vmem %s1, %s161
      $region16: #{tpu_custom_call.1} parent=11 // pred_fallthru
        _
      // Predicated region
      $region17: #{tpu_custom_call.1} parent=11 // pred_check
        %p163 = pneg %p110
      $region18: #{tpu_custom_call.1} parent=11 // pred_check_branch
        %165 = sbr.rel (%p163) target = $region20
      $region19: #{tpu_custom_call.1} parent=11 // pred_region
        %p166 = scmp.lt.s32.totalorder %s20, 0
        %s167 = scalar_select %p166, %s20, 0
        %s168 = scalar_lea.vmem %s2, %s167
      $region20: #{tpu_custom_call.1} parent=11 // pred_fallthru
        _
    $region12: #{tpu_custom_call.1} parent=5 // pred_fallthru
      _
    %p169 = scmp.lt.s32.totalorder %s9, 2
    // Predicated region
    $region21: #{tpu_custom_call.1} parent=5 // pred_check
      %p170 = pneg %p169
    $region22: #{tpu_custom_call.1} parent=5 // pred_check_branch
      %172 = sbr.rel (%p170) target = $region24
    $region23: #{tpu_custom_call.1} parent=5 // pred_region
      // Predicated region
      $region25: #{tpu_custom_call.1} parent=23 // pred_check
        %p173 = pneg %p50
      $region26: #{tpu_custom_call.1} parent=23 // pred_check_branch
        %175 = sbr.rel (%p173) target = $region28
      $region27: #{tpu_custom_call.1} parent=23 // pred_region
        %p176 = scmp.lt.s32.totalorder %s16, 1
        %s177 = scalar_select %p176, %s16, 1
        %p178 = scmp.lt.s32.totalorder %s18, 0
        %s179 = scalar_select %p178, %s18, 0
        %s180 = smul.addr %s177, 36
        %s181 = sadd.s32 %s179, %s180
        %s182 = smul.addr %s181, 4
        %s183 = scalar_lea.vmem %s0, %s182
      $region28: #{tpu_custom_call.1} parent=23 // pred_fallthru
        _
    $region24: #{tpu_custom_call.1} parent=5 // pred_fallthru
      _
    %p184 = scmp.le.s32.totalorder 1, %s9
    %p185 = scmp.lt.s32.totalorder %s9, 3
    %p186 = pnand %p184, %p185
    %p187 = pneg %p186
    // Predicated region
    $region29: #{tpu_custom_call.1} parent=5 // pred_check
      _
    $region30: #{tpu_custom_call.1} parent=5 // pred_check_branch
      %189 = sbr.rel (%p186) target = $region32
    $region31: #{tpu_custom_call.1} parent=5 // pred_region
      %s190 = ssub.s32 %s9, 1
      %p191 = scmp.lt.s32.totalorder %s19, 1
      %s192 = scalar_select %p191, %s19, 1
      %p193 = scmp.lt.s32.totalorder %s21, 0
      %s194 = scalar_select %p193, %s21, 0
      %s195 = smul.addr %s192, 36
      %s196 = sadd.s32 %s194, %s195
      %s197 = smul.addr %s196, 4
      %s198 = scalar_lea.vmem %s0, %s197
      %p199 = pneg %p56
      %p200 = pneg %p53
      %p201 = scmp.lt.s32.totalorder %s21, 0
      %s202 = scalar_select %p201, %s21, 0
      %p203 = scmp.lt.s32.totalorder %s20, 0
      %s204 = scalar_select %p203, %s20, 0
      %s205 = sadd.s32 %s204, %s202
      %s206 = smul.addr %s205, 4
      %s207 = scalar_lea.vmem %s1, %s206
      %p208 = pneg %p84
      %p209 = pneg %p81
      %p210 = scmp.lt.s32.totalorder %s20, 0
      %s211 = scalar_select %p210, %s20, 0
      %s212 = scalar_lea.vmem %s2, %s211
      %p213 = pneg %p110
      %p214 = pneg %p107
      %p215 = pneg %p138
      %p216 = pneg %p135
      %p217 = scmp.lt.s32.totalorder %s19, 1
      %s218 = scalar_select %p217, %s19, 1
      %p219 = scmp.lt.s32.totalorder %s20, 0
      %s220 = scalar_select %p219, %s20, 0
      %s221 = smul.addr %s218, 20
      %s222 = sadd.s32 %s220, %s221
      %s223 = smul.addr %s222, 4
      %s224 = scalar_lea.vmem %s3, %s223
      %p225 = scmp.lt.s32.totalorder %s19, 1
      %s226 = scalar_select %p225, %s19, 1
      %p227 = scmp.lt.s32.totalorder %s21, 0
      %s228 = scalar_select %p227, %s21, 0
      %s229 = smul.addr %s226, 36
      %s230 = sadd.s32 %s228, %s229
      %s231 = smul.addr %s230, 4
      %s232 = scalar_lea.vmem %s0, %s231
      %p233 = scmp.lt.s32.totalorder %s21, 0
      %s234 = scalar_select %p233, %s21, 0
      %p235 = scmp.lt.s32.totalorder %s20, 0
      %s236 = scalar_select %p235, %s20, 0
      %s237 = sadd.s32 %s236, %s234
      %s238 = smul.addr %s237, 4
      %s239 = scalar_lea.vmem %s1, %s238
      %p240 = scmp.lt.s32.totalorder %s20, 0
      %s241 = scalar_select %p240, %s20, 0
      %s242 = scalar_lea.vmem %s2, %s241
      %p243 = scmp.lt.s32.totalorder %s19, 1
      %s244 = scalar_select %p243, %s19, 1
      %p245 = scmp.lt.s32.totalorder %s20, 0
      %s246 = scalar_select %p245, %s20, 0
      %s247 = smul.addr %s244, 20
      %s248 = sadd.s32 %s246, %s247
      %s249 = smul.addr %s248, 4
      %s250 = scalar_lea.vmem %s3, %s249
      %p252 = scmp.eq.s32.totalorder %s21, 0
      // Predicated region
      $region33: #{tpu_custom_call.1} parent=31 // pred_check
        %p253 = pneg %p252
      $region34: #{tpu_custom_call.1} parent=31 // pred_check_branch
        %255 = sbr.rel (%p253) target = $region36
      $region35: #{tpu_custom_call.1} parent=31 // pred_region
        %vm256 = vcmask 130048
        %257 = vst.msk [vmem:[#allocation2] sm:$0xff] %vm256, 0.0
        %258 = vst.msk [vmem:[#allocation2 + $0x8] sm:$0xff] %vm256, 0.0
        %259 = vst.msk [vmem:[#allocation2 + $0x10] sm:$0xff] %vm256, 0.0
        %260 = vst.msk [vmem:[#allocation2 + $0x18] sm:$0xff] %vm256, 0.0
        %261 = vst.msk [vmem:[#allocation2 + $0x20] sm:$0xff] %vm256, 0.0
        %262 = vst.msk [vmem:[#allocation2 + $0x28] sm:$0xff] %vm256, 0.0
        %263 = vst.msk [vmem:[#allocation2 + $0x30] sm:$0xff] %vm256, 0.0
        %264 = vst.msk [vmem:[#allocation2 + $0x38] sm:$0xff] %vm256, 0.0
        %265 = vst.msk [vmem:[#allocation2 + $0x40] sm:$0xff] %vm256, 0.0
        %266 = vst.msk [vmem:[#allocation2 + $0x48] sm:$0xff] %vm256, 0.0
        %267 = vst.msk [vmem:[#allocation2 + $0x50] sm:$0xff] %vm256, 0.0
        %268 = vst.msk [vmem:[#allocation2 + $0x58] sm:$0xff] %vm256, 0.0
        %269 = vst.msk [vmem:[#allocation2 + $0x60] sm:$0xff] %vm256, 0.0
        %270 = vst.msk [vmem:[#allocation2 + $0x68] sm:$0xff] %vm256, 0.0
        %271 = vst.msk [vmem:[#allocation2 + $0x70] sm:$0xff] %vm256, 0.0
        %272 = vst.msk [vmem:[#allocation2 + $0x78] sm:$0xff] %vm256, 0.0
        %273 = vst.msk [vmem:[#allocation2 + $0x80] sm:$0xff] %vm256, 0.0
        %274 = vst.msk [vmem:[#allocation2 + $0x88] sm:$0xff] %vm256, 0.0
        %275 = vst.msk [vmem:[#allocation2 + $0x90] sm:$0xff] %vm256, 0.0
        %276 = vst.msk [vmem:[#allocation2 + $0x98] sm:$0xff] %vm256, 0.0
      $region36: #{tpu_custom_call.1} parent=31 // pred_fallthru
        _
      %v277 = vld [vmem:[%s232] sm:$0xf]
      %v278 = vld [vmem:[%s232 + $0x4] sm:$0xf]
      %v279 = vld [vmem:[%s232 + $0xc] sm:$0xf]
      %v280 = vld [vmem:[%s232 + $0x10] sm:$0xf]
      %v281 = vld [vmem:[%s232 + $0x18] sm:$0xf]
      %v282 = vld [vmem:[%s232 + $0x1c] sm:$0xf]
      %v283 = vld [vmem:[%s232 + $0x24] sm:$0xf]
      %v284 = vld [vmem:[%s232 + $0x28] sm:$0xf]
      %v285 = vld [vmem:[%s232 + $0x30] sm:$0xf]
      %v286 = vld [vmem:[%s232 + $0x34] sm:$0xf]
      %v287 = vld [vmem:[%s232 + $0x3c] sm:$0xf]
      %v288 = vld [vmem:[%s232 + $0x40] sm:$0xf]
      %v289 = vld [vmem:[%s232 + $0x48] sm:$0xf]
      %v290 = vld [vmem:[%s232 + $0x4c] sm:$0xf]
      %v291 = vld [vmem:[%s232 + $0x54] sm:$0xf]
      %v292 = vld [vmem:[%s232 + $0x58] sm:$0xf]
      %v293 = vld [vmem:[%s232 + $0x60] sm:$0xf]
      %v294 = vld [vmem:[%s232 + $0x64] sm:$0xf]
      %v295 = vld [vmem:[%s232 + $0x6c] sm:$0xf]
      %v296 = vld [vmem:[%s232 + $0x70] sm:$0xf]
      %v297 = vld [vmem:[%s232 + $0x78] sm:$0xf]
      %v298 = vld [vmem:[%s232 + $0x7c] sm:$0xf]
      %v299 = vld [vmem:[%s232 + $0x84] sm:$0xf]
      %v300 = vld [vmem:[%s232 + $0x88] sm:$0xf]
      %v301 = vld [vmem:[#allocation2] sm:$0xff]
      %v302 = vld [vmem:[#allocation2 + $0x8] sm:$0xff]
      %v303 = vld [vmem:[#allocation2 + $0x10] sm:$0xff]
      %v304 = vld [vmem:[#allocation2 + $0x18] sm:$0xff]
      %v305 = vld [vmem:[#allocation2 + $0x20] sm:$0xff]
      %v306 = vld [vmem:[#allocation2 + $0x28] sm:$0xff]
      %v307 = vld [vmem:[#allocation2 + $0x30] sm:$0xff]
      %v308 = vld [vmem:[#allocation2 + $0x38] sm:$0xff]
      %v309 = vld [vmem:[#allocation2 + $0x40] sm:$0xff]
      %v310 = vld [vmem:[#allocation2 + $0x48] sm:$0xff]
      %v311 = vld [vmem:[#allocation2 + $0x50] sm:$0xff]
      %v312 = vld [vmem:[#allocation2 + $0x58] sm:$0xff]
      %v313 = vld [vmem:[#allocation2 + $0x60] sm:$0xff]
      %v314 = vld [vmem:[#allocation2 + $0x68] sm:$0xff]
      %v315 = vld [vmem:[#allocation2 + $0x70] sm:$0xff]
      %v316 = vld [vmem:[#allocation2 + $0x78] sm:$0xff]
      %v317 = vld [vmem:[#allocation2 + $0x80] sm:$0xff]
      %v318 = vld [vmem:[#allocation2 + $0x88] sm:$0xff]
      %v319 = vld [vmem:[#allocation2 + $0x90] sm:$0xff]
      %v320 = vld [vmem:[#allocation2 + $0x98] sm:$0xff]
      %v321 = vld [vmem:[%s239] sm:$0xf]
      %v342 = vunpack.c.l.b16 %v277
      %v343 = vunpack.c.l.b16 %v278
      %v344 = vunpack.c.l.b16 %v279
      %v345 = vunpack.c.l.b16 %v280
      %v346 = vunpack.c.l.b16 %v281
      %v347 = vunpack.c.l.b16 %v282
      %v348 = vunpack.c.l.b16 %v283
      %v349 = vunpack.c.l.b16 %v284
      %v350 = vunpack.c.l.b16 %v285
      %v351 = vunpack.c.l.b16 %v286
      %v352 = vunpack.c.l.b16 %v287
      %v353 = vunpack.c.l.b16 %v288
      %v354 = vunpack.c.l.b16 %v289
      %v355 = vunpack.c.l.b16 %v290
      %v356 = vunpack.c.l.b16 %v291
      %v357 = vunpack.c.l.b16 %v292
      %v358 = vunpack.c.l.b16 %v293
      %v359 = vunpack.c.l.b16 %v294
      %v360 = vunpack.c.l.b16 %v295
      %v361 = vunpack.c.l.b16 %v296
      %v362 = vpack.c.b16 %v343, %v342
      %v363 = vpack.c.b16 %v345, %v344
      %v364 = vpack.c.b16 %v347, %v346
      %v365 = vpack.c.b16 %v349, %v348
      %v366 = vpack.c.b16 %v351, %v350
      %v367 = vpack.c.b16 %v353, %v352
      %v368 = vpack.c.b16 %v355, %v354
      %v369 = vpack.c.b16 %v357, %v356
      %v370 = vpack.c.b16 %v359, %v358
      %v371 = vpack.c.b16 %v361, %v360
      %vm372 = vcmask 64512
      %v374 = vsel %vm372, %v362, 0
      %v377 = vsel %vm372, %v363, 0
      %v380 = vsel %vm372, %v364, 0
      %v383 = vsel %vm372, %v365, 0
      %v386 = vsel %vm372, %v366, 0
      %v389 = vsel %vm372, %v367, 0
      %v392 = vsel %vm372, %v368, 0
      %v395 = vsel %vm372, %v369, 0
      %v398 = vsel %vm372, %v370, 0
      %v401 = vsel %vm372, %v371, 0
      %vm403 = vcmask 1043456
      %v405 = vsel %vm403, %v321, 0
      %407 = vmatprep.subr.bf16.mxu0 0
      %408 = vmatpush1.bf16.msra.mxu0 %v405
      %409 = vmatprep.subr.bf16.mxu0 0
      %410 = vmatpush1.bf16.msra.mxu0 0
      %411 = vmatprep.subr.bf16.mxu0 0
      %412 = vmatpush1.bf16.msra.mxu0 0
      %413 = vmatprep.subr.bf16.mxu0 0
      %414 = vmatpush1.bf16.msra.mxu0 0
      %415 = vmatprep.subr.bf16.mxu0 0
      %416 = vmatpush1.bf16.msra.mxu0 0
      %417 = vmatprep.subr.bf16.mxu0 0
      %418 = vmatpush1.bf16.msra.mxu0 0
      %419 = vmatprep.subr.bf16.mxu0 0
      %420 = vmatpush1.bf16.msra.mxu0 0
      %421 = vmatprep.subr.bf16.mxu0 0
      %422 = vmatpush1.bf16.msra.mxu0 0
      %423 = vmatprep.subr.bf16.mxu0 0
      %424 = vmatpush1.bf16.msra.mxu0 0
      %425 = vmatprep.subr.bf16.mxu0 0
      %426 = vmatpush1.bf16.msra.mxu0 0
      %427 = vmatprep.subr.bf16.mxu0 0
      %428 = vmatpush1.bf16.msra.mxu0 0
      %429 = vmatprep.subr.bf16.mxu0 0
      %430 = vmatpush1.bf16.msra.mxu0 0
      %431 = vmatprep.subr.bf16.mxu0 0
      %432 = vmatpush1.bf16.msra.mxu0 0
      %433 = vmatprep.subr.bf16.mxu0 0
      %434 = vmatpush1.bf16.msra.mxu0 0
      %435 = vmatprep.subr.bf16.mxu0 0
      %436 = vmatpush1.bf16.msra.mxu0 0
      %437 = vmatprep.subr.bf16.mxu0 0
      %438 = vmatpush1.bf16.msra.mxu0 0
      %439 = vmatprep.mubr.bf16.mxu0 0
      %440 = vmatmul.mubr.bf16.gmra.mrb[0].mxu0 %v374
      %v441 = vpop.f32.mrb[0].mxu0
      %v442 = vadd.f32 0.0, %v441
      %v443 = vpop.f32.mrb[0].mxu0
      %v444 = vpop.f32.mrb[0].mxu0
      %v445 = vadd.f32 0.0, %v444
      %v446 = vpop.f32.mrb[0].mxu0
      %447 = vmatprep.mubr.bf16.mxu0 0
      %448 = vmatmul.mubr.bf16.gmra.mrb[0].mxu0 %v377
      %v449 = vpop.f32.mrb[0].mxu0
      %v450 = vadd.f32 0.0, %v449
      %v451 = vpop.f32.mrb[0].mxu0
      %v452 = vpop.f32.mrb[0].mxu0
      %v453 = vadd.f32 0.0, %v452
      %v454 = vpop.f32.mrb[0].mxu0
      %455 = vmatprep.mubr.bf16.mxu0 0
      %456 = vmatmul.mubr.bf16.gmra.mrb[0].mxu0 %v380
      %v457 = vpop.f32.mrb[0].mxu0
      %v458 = vadd.f32 0.0, %v457
      %v459 = vpop.f32.mrb[0].mxu0
      %v460 = vpop.f32.mrb[0].mxu0
      %v461 = vadd.f32 0.0, %v460
      %v462 = vpop.f32.mrb[0].mxu0
      %463 = vmatprep.mubr.bf16.mxu0 0
      %464 = vmatmul.mubr.bf16.gmra.mrb[0].mxu0 %v383
      %v465 = vpop.f32.mrb[0].mxu0
      %v466 = vadd.f32 0.0, %v465
      %v467 = vpop.f32.mrb[0].mxu0
      %v468 = vpop.f32.mrb[0].mxu0
      %v469 = vadd.f32 0.0, %v468
      %v470 = vpop.f32.mrb[0].mxu0
      %471 = vmatprep.mubr.bf16.mxu0 0
      %472 = vmatmul.mubr.bf16.gmra.mrb[0].mxu0 %v386
      %v473 = vpop.f32.mrb[0].mxu0
      %v474 = vadd.f32 0.0, %v473
      %v475 = vpop.f32.mrb[0].mxu0
      %v476 = vpop.f32.mrb[0].mxu0
      %v477 = vadd.f32 0.0, %v476
      %v478 = vpop.f32.mrb[0].mxu0
      %479 = vmatprep.mubr.bf16.mxu0 0
      %480 = vmatmul.mubr.bf16.gmra.mrb[0].mxu0 %v389
      %v481 = vpop.f32.mrb[0].mxu0
      %v482 = vadd.f32 0.0, %v481
      %v483 = vpop.f32.mrb[0].mxu0
      %v484 = vpop.f32.mrb[0].mxu0
      %v485 = vadd.f32 0.0, %v484
      %v486 = vpop.f32.mrb[0].mxu0
      %487 = vmatprep.mubr.bf16.mxu0 0
      %488 = vmatmul.mubr.bf16.gmra.mrb[0].mxu0 %v392
      %v489 = vpop.f32.mrb[0].mxu0
      %v490 = vadd.f32 0.0, %v489
      %v491 = vpop.f32.mrb[0].mxu0
      %v492 = vpop.f32.mrb[0].mxu0
      %v493 = vadd.f32 0.0, %v492
      %v494 = vpop.f32.mrb[0].mxu0
      %495 = vmatprep.mubr.bf16.mxu0 0
      %496 = vmatmul.mubr.bf16.gmra.mrb[0].mxu0 %v395
      %v497 = vpop.f32.mrb[0].mxu0
      %v498 = vadd.f32 0.0, %v497
      %v499 = vpop.f32.mrb[0].mxu0
      %v500 = vpop.f32.mrb[0].mxu0
      %v501 = vadd.f32 0.0, %v500
      %v502 = vpop.f32.mrb[0].mxu0
      %503 = vmatprep.mubr.bf16.mxu0 0
      %504 = vmatmul.mubr.bf16.gmra.mrb[0].mxu0 %v398
      %v505 = vpop.f32.mrb[0].mxu0
      %v506 = vadd.f32 0.0, %v505
      %v507 = vpop.f32.mrb[0].mxu0
      %v508 = vpop.f32.mrb[0].mxu0
      %v509 = vadd.f32 0.0, %v508
      %v510 = vpop.f32.mrb[0].mxu0
      %511 = vmatprep.mubr.bf16.mxu0 0
      %512 = vmatmul.mubr.bf16.gmra.mrb[0].mxu0 %v401
      %v513 = vpop.f32.mrb[0].mxu0
      %v514 = vadd.f32 0.0, %v513
      %v515 = vpop.f32.mrb[0].mxu0
      %v516 = vpop.f32.mrb[0].mxu0
      %v517 = vadd.f32 0.0, %v516
      %v518 = vpop.f32.mrb[0].mxu0
      %519 = vdwg.mxu0
      %v520 = vadd.f32 %v301, %v442
      %v521 = vadd.f32 %v302, %v445
      %v522 = vadd.f32 %v303, %v450
      %v523 = vadd.f32 %v304, %v453
      %v524 = vadd.f32 %v305, %v458
      %v525 = vadd.f32 %v306, %v461
      %v526 = vadd.f32 %v307, %v466
      %v527 = vadd.f32 %v308, %v469
      %v528 = vadd.f32 %v309, %v474
      %v529 = vadd.f32 %v310, %v477
      %v530 = vadd.f32 %v311, %v482
      %v531 = vadd.f32 %v312, %v485
      %v532 = vadd.f32 %v313, %v490
      %v533 = vadd.f32 %v314, %v493
      %v534 = vadd.f32 %v315, %v498
      %v535 = vadd.f32 %v316, %v501
      %v536 = vadd.f32 %v317, %v506
      %v537 = vadd.f32 %v318, %v509
      %v538 = vadd.f32 %v319, %v514
      %v539 = vadd.f32 %v320, %v517
      %vm540 = vcmask 130048
      %541 = vst.msk [vmem:[#allocation2] sm:$0xff] %vm540, %v520
      %542 = vst.msk [vmem:[#allocation2 + $0x8] sm:$0xff] %vm540, %v521
      %543 = vst.msk [vmem:[#allocation2 + $0x10] sm:$0xff] %vm540, %v522
      %544 = vst.msk [vmem:[#allocation2 + $0x18] sm:$0xff] %vm540, %v523
      %545 = vst.msk [vmem:[#allocation2 + $0x20] sm:$0xff] %vm540, %v524
      %546 = vst.msk [vmem:[#allocation2 + $0x28] sm:$0xff] %vm540, %v525
      %547 = vst.msk [vmem:[#allocation2 + $0x30] sm:$0xff] %vm540, %v526
      %548 = vst.msk [vmem:[#allocation2 + $0x38] sm:$0xff] %vm540, %v527
      %549 = vst.msk [vmem:[#allocation2 + $0x40] sm:$0xff] %vm540, %v528
      %550 = vst.msk [vmem:[#allocation2 + $0x48] sm:$0xff] %vm540, %v529
      %551 = vst.msk [vmem:[#allocation2 + $0x50] sm:$0xff] %vm540, %v530
      %552 = vst.msk [vmem:[#allocation2 + $0x58] sm:$0xff] %vm540, %v531
      %553 = vst.msk [vmem:[#allocation2 + $0x60] sm:$0xff] %vm540, %v532
      %554 = vst.msk [vmem:[#allocation2 + $0x68] sm:$0xff] %vm540, %v533
      %555 = vst.msk [vmem:[#allocation2 + $0x70] sm:$0xff] %vm540, %v534
      %556 = vst.msk [vmem:[#allocation2 + $0x78] sm:$0xff] %vm540, %v535
      %557 = vst.msk [vmem:[#allocation2 + $0x80] sm:$0xff] %vm540, %v536
      %558 = vst.msk [vmem:[#allocation2 + $0x88] sm:$0xff] %vm540, %v537
      %559 = vst.msk [vmem:[#allocation2 + $0x90] sm:$0xff] %vm540, %v538
      %560 = vst.msk [vmem:[#allocation2 + $0x98] sm:$0xff] %vm540, %v539
      %v561 = vld [vmem:[#allocation2] sm:$0xff]
      %v562 = vld [vmem:[#allocation2 + $0x8] sm:$0xff]
      %v563 = vld [vmem:[#allocation2 + $0x10] sm:$0xff]
      %v564 = vld [vmem:[#allocation2 + $0x18] sm:$0xff]
      %v565 = vld [vmem:[#allocation2 + $0x20] sm:$0xff]
      %v566 = vld [vmem:[#allocation2 + $0x28] sm:$0xff]
      %v567 = vld [vmem:[#allocation2 + $0x30] sm:$0xff]
      %v568 = vld [vmem:[#allocation2 + $0x38] sm:$0xff]
      %v569 = vld [vmem:[#allocation2 + $0x40] sm:$0xff]
      %v570 = vld [vmem:[#allocation2 + $0x48] sm:$0xff]
      %v571 = vld [vmem:[#allocation2 + $0x50] sm:$0xff]
      %v572 = vld [vmem:[#allocation2 + $0x58] sm:$0xff]
      %v573 = vld [vmem:[#allocation2 + $0x60] sm:$0xff]
      %v574 = vld [vmem:[#allocation2 + $0x68] sm:$0xff]
      %v575 = vld [vmem:[#allocation2 + $0x70] sm:$0xff]
      %v576 = vld [vmem:[#allocation2 + $0x78] sm:$0xff]
      %v577 = vld [vmem:[#allocation2 + $0x80] sm:$0xff]
      %v578 = vld [vmem:[#allocation2 + $0x88] sm:$0xff]
      %v579 = vld [vmem:[#allocation2 + $0x90] sm:$0xff]
      %v580 = vld [vmem:[#allocation2 + $0x98] sm:$0xff]
      %s581 = scalar_lea.vmem %s239, 12
      %v582 = vld [vmem:[%s581] sm:$0xf]
      %v585 = vunpack.c.l.b16 %v297
      %v586 = vunpack.c.l.b16 %v298
      %v587 = vpack.c.b16 %v586, %v585
      %v589 = vsel %vm372, %v587, 0
      %v592 = vsel %vm403, %v582, 0
      %594 = vmatprep.subr.bf16.mxu0 0
      %595 = vmatpush1.bf16.msra.mxu0 %v592
      %596 = vmatprep.subr.bf16.mxu0 0
      %597 = vmatpush1.bf16.msra.mxu0 0
      %598 = vmatprep.subr.bf16.mxu0 0
      %599 = vmatpush1.bf16.msra.mxu0 0
      %600 = vmatprep.subr.bf16.mxu0 0
      %601 = vmatpush1.bf16.msra.mxu0 0
      %602 = vmatprep.subr.bf16.mxu0 0
      %603 = vmatpush1.bf16.msra.mxu0 0
      %604 = vmatprep.subr.bf16.mxu0 0
      %605 = vmatpush1.bf16.msra.mxu0 0
      %606 = vmatprep.subr.bf16.mxu0 0
      %607 = vmatpush1.bf16.msra.mxu0 0
      %608 = vmatprep.subr.bf16.mxu0 0
      %609 = vmatpush1.bf16.msra.mxu0 0
      %610 = vmatprep.subr.bf16.mxu0 0
      %611 = vmatpush1.bf16.msra.mxu0 0
      %612 = vmatprep.subr.bf16.mxu0 0
      %613 = vmatpush1.bf16.msra.mxu0 0
      %614 = vmatprep.subr.bf16.mxu0 0
      %615 = vmatpush1.bf16.msra.mxu0 0
      %616 = vmatprep.subr.bf16.mxu0 0
      %617 = vmatpush1.bf16.msra.mxu0 0
      %618 = vmatprep.subr.bf16.mxu0 0
      %619 = vmatpush1.bf16.msra.mxu0 0
      %620 = vmatprep.subr.bf16.mxu0 0
      %621 = vmatpush1.bf16.msra.mxu0 0
      %622 = vmatprep.subr.bf16.mxu0 0
      %623 = vmatpush1.bf16.msra.mxu0 0
      %624 = vmatprep.subr.bf16.mxu0 0
      %625 = vmatpush1.bf16.msra.mxu0 0
      %626 = vmatprep.mubr.bf16.mxu0 0
      %627 = vmatmul.mubr.bf16.gmra.mrb[0].mxu0 %v377
      %v628 = vpop.f32.mrb[0].mxu0
      %v629 = vadd.f32 0.0, %v628
      %v630 = vpop.f32.mrb[0].mxu0
      %v631 = vpop.f32.mrb[0].mxu0
      %v632 = vadd.f32 0.0, %v631
      %v633 = vpop.f32.mrb[0].mxu0
      %634 = vmatprep.mubr.bf16.mxu0 0
      %635 = vmatmul.mubr.bf16.gmra.mrb[0].mxu0 %v380
      %v636 = vpop.f32.mrb[0].mxu0
      %v637 = vadd.f32 0.0, %v636
      %v638 = vpop.f32.mrb[0].mxu0
      %v639 = vpop.f32.mrb[0].mxu0
      %v640 = vadd.f32 0.0, %v639
      %v641 = vpop.f32.mrb[0].mxu0
      %642 = vmatprep.mubr.bf16.mxu0 0
      %643 = vmatmul.mubr.bf16.gmra.mrb[0].mxu0 %v383
      %v644 = vpop.f32.mrb[0].mxu0
      %v645 = vadd.f32 0.0, %v644
      %v646 = vpop.f32.mrb[0].mxu0
      %v647 = vpop.f32.mrb[0].mxu0
      %v648 = vadd.f32 0.0, %v647
      %v649 = vpop.f32.mrb[0].mxu0
      %650 = vmatprep.mubr.bf16.mxu0 0
      %651 = vmatmul.mubr.bf16.gmra.mrb[0].mxu0 %v386
      %v652 = vpop.f32.mrb[0].mxu0
      %v653 = vadd.f32 0.0, %v652
      %v654 = vpop.f32.mrb[0].mxu0
      %v655 = vpop.f32.mrb[0].mxu0
      %v656 = vadd.f32 0.0, %v655
      %v657 = vpop.f32.mrb[0].mxu0
      %658 = vmatprep.mubr.bf16.mxu0 0
      %659 = vmatmul.mubr.bf16.gmra.mrb[0].mxu0 %v389
      %v660 = vpop.f32.mrb[0].mxu0
      %v661 = vadd.f32 0.0, %v660
      %v662 = vpop.f32.mrb[0].mxu0
      %v663 = vpop.f32.mrb[0].mxu0
      %v664 = vadd.f32 0.0, %v663
      %v665 = vpop.f32.mrb[0].mxu0
      %666 = vmatprep.mubr.bf16.mxu0 0
      %667 = vmatmul.mubr.bf16.gmra.mrb[0].mxu0 %v392
      %v668 = vpop.f32.mrb[0].mxu0
      %v669 = vadd.f32 0.0, %v668
      %v670 = vpop.f32.mrb[0].mxu0
      %v671 = vpop.f32.mrb[0].mxu0
      %v672 = vadd.f32 0.0, %v671
      %v673 = vpop.f32.mrb[0].mxu0
      %674 = vmatprep.mubr.bf16.mxu0 0
      %675 = vmatmul.mubr.bf16.gmra.mrb[0].mxu0 %v395
      %v676 = vpop.f32.mrb[0].mxu0
      %v677 = vadd.f32 0.0, %v676
      %v678 = vpop.f32.mrb[0].mxu0
      %v679 = vpop.f32.mrb[0].mxu0
      %v680 = vadd.f32 0.0, %v679
      %v681 = vpop.f32.mrb[0].mxu0
      %682 = vmatprep.mubr.bf16.mxu0 0
      %683 = vmatmul.mubr.bf16.gmra.mrb[0].mxu0 %v398
      %v684 = vpop.f32.mrb[0].mxu0
      %v685 = vadd.f32 0.0, %v684
      %v686 = vpop.f32.mrb[0].mxu0
      %v687 = vpop.f32.mrb[0].mxu0
      %v688 = vadd.f32 0.0, %v687
      %v689 = vpop.f32.mrb[0].mxu0
      %690 = vmatprep.mubr.bf16.mxu0 0
      %691 = vmatmul.mubr.bf16.gmra.mrb[0].mxu0 %v401
      %v692 = vpop.f32.mrb[0].mxu0
      %v693 = vadd.f32 0.0, %v692
      %v694 = vpop.f32.mrb[0].mxu0
      %v695 = vpop.f32.mrb[0].mxu0
      %v696 = vadd.f32 0.0, %v695
      %v697 = vpop.f32.mrb[0].mxu0
      %698 = vmatprep.mubr.bf16.mxu0 0
      %699 = vmatmul.mubr.bf16.gmra.mrb[0].mxu0 %v589
      %v700 = vpop.f32.mrb[0].mxu0
      %v701 = vadd.f32 0.0, %v700
      %v702 = vpop.f32.mrb[0].mxu0
      %v703 = vpop.f32.mrb[0].mxu0
      %v704 = vadd.f32 0.0, %v703
      %v705 = vpop.f32.mrb[0].mxu0
      %706 = vdwg.mxu0
      %v707 = vadd.f32 %v561, %v629
      %v708 = vadd.f32 %v562, %v632
      %v709 = vadd.f32 %v563, %v637
      %v710 = vadd.f32 %v564, %v640
      %v711 = vadd.f32 %v565, %v645
      %v712 = vadd.f32 %v566, %v648
      %v713 = vadd.f32 %v567, %v653
      %v714 = vadd.f32 %v568, %v656
      %v715 = vadd.f32 %v569, %v661
      %v716 = vadd.f32 %v570, %v664
      %v717 = vadd.f32 %v571, %v669
      %v718 = vadd.f32 %v572, %v672
      %v719 = vadd.f32 %v573, %v677
      %v720 = vadd.f32 %v574, %v680
      %v721 = vadd.f32 %v575, %v685
      %v722 = vadd.f32 %v576, %v688
      %v723 = vadd.f32 %v577, %v693
      %v724 = vadd.f32 %v578, %v696
      %v725 = vadd.f32 %v579, %v701
      %v726 = vadd.f32 %v580, %v704
      %727 = vst.msk [vmem:[#allocation2] sm:$0xff] %vm540, %v707
      %728 = vst.msk [vmem:[#allocation2 + $0x8] sm:$0xff] %vm540, %v708
      %729 = vst.msk [vmem:[#allocation2 + $0x10] sm:$0xff] %vm540, %v709
      %730 = vst.msk [vmem:[#allocation2 + $0x18] sm:$0xff] %vm540, %v710
      %731 = vst.msk [vmem:[#allocation2 + $0x20] sm:$0xff] %vm540, %v711
      %732 = vst.msk [vmem:[#allocation2 + $0x28] sm:$0xff] %vm540, %v712
      %733 = vst.msk [vmem:[#allocation2 + $0x30] sm:$0xff] %vm540, %v713
      %734 = vst.msk [vmem:[#allocation2 + $0x38] sm:$0xff] %vm540, %v714
      %735 = vst.msk [vmem:[#allocation2 + $0x40] sm:$0xff] %vm540, %v715
      %736 = vst.msk [vmem:[#allocation2 + $0x48] sm:$0xff] %vm540, %v716
      %737 = vst.msk [vmem:[#allocation2 + $0x50] sm:$0xff] %vm540, %v717
      %738 = vst.msk [vmem:[#allocation2 + $0x58] sm:$0xff] %vm540, %v718
      %739 = vst.msk [vmem:[#allocation2 + $0x60] sm:$0xff] %vm540, %v719
      %740 = vst.msk [vmem:[#allocation2 + $0x68] sm:$0xff] %vm540, %v720
      %741 = vst.msk [vmem:[#allocation2 + $0x70] sm:$0xff] %vm540, %v721
      %742 = vst.msk [vmem:[#allocation2 + $0x78] sm:$0xff] %vm540, %v722
      %743 = vst.msk [vmem:[#allocation2 + $0x80] sm:$0xff] %vm540, %v723
      %744 = vst.msk [vmem:[#allocation2 + $0x88] sm:$0xff] %vm540, %v724
      %745 = vst.msk [vmem:[#allocation2 + $0x90] sm:$0xff] %vm540, %v725
      %746 = vst.msk [vmem:[#allocation2 + $0x98] sm:$0xff] %vm540, %v726
      %v747 = vld [vmem:[#allocation2] sm:$0xff]
      %v748 = vld [vmem:[#allocation2 + $0x8] sm:$0xff]
      %v749 = vld [vmem:[#allocation2 + $0x10] sm:$0xff]
      %v750 = vld [vmem:[#allocation2 + $0x18] sm:$0xff]
      %v751 = vld [vmem:[#allocation2 + $0x20] sm:$0xff]
      %v752 = vld [vmem:[#allocation2 + $0x28] sm:$0xff]
      %v753 = vld [vmem:[#allocation2 + $0x30] sm:$0xff]
      %v754 = vld [vmem:[#allocation2 + $0x38] sm:$0xff]
      %v755 = vld [vmem:[#allocation2 + $0x40] sm:$0xff]
      %v756 = vld [vmem:[#allocation2 + $0x48] sm:$0xff]
      %v757 = vld [vmem:[#allocation2 + $0x50] sm:$0xff]
      %v758 = vld [vmem:[#allocation2 + $0x58] sm:$0xff]
      %v759 = vld [vmem:[#allocation2 + $0x60] sm:$0xff]
      %v760 = vld [vmem:[#allocation2 + $0x68] sm:$0xff]
      %v761 = vld [vmem:[#allocation2 + $0x70] sm:$0xff]
      %v762 = vld [vmem:[#allocation2 + $0x78] sm:$0xff]
      %v763 = vld [vmem:[#allocation2 + $0x80] sm:$0xff]
      %v764 = vld [vmem:[#allocation2 + $0x88] sm:$0xff]
      %v765 = vld [vmem:[#allocation2 + $0x90] sm:$0xff]
      %v766 = vld [vmem:[#allocation2 + $0x98] sm:$0xff]
      %s767 = scalar_lea.vmem %s239, 24
      %v768 = vld [vmem:[%s767] sm:$0xf]
      %v771 = vunpack.c.l.b16 %v299
      %v772 = vunpack.c.l.b16 %v300
      %v773 = vpack.c.b16 %v772, %v771
      %v775 = vsel %vm372, %v773, 0
      %v778 = vsel %vm403, %v768, 0
      %780 = vmatprep.subr.bf16.mxu0 0
      %781 = vmatpush1.bf16.msra.mxu0 %v778
      %782 = vmatprep.subr.bf16.mxu0 0
      %783 = vmatpush1.bf16.msra.mxu0 0
      %784 = vmatprep.subr.bf16.mxu0 0
      %785 = vmatpush1.bf16.msra.mxu0 0
      %786 = vmatprep.subr.bf16.mxu0 0
      %787 = vmatpush1.bf16.msra.mxu0 0
      %788 = vmatprep.subr.bf16.mxu0 0
      %789 = vmatpush1.bf16.msra.mxu0 0
      %790 = vmatprep.subr.bf16.mxu0 0
      %791 = vmatpush1.bf16.msra.mxu0 0
      %792 = vmatprep.subr.bf16.mxu0 0
      %793 = vmatpush1.bf16.msra.mxu0 0
      %794 = vmatprep.subr.bf16.mxu0 0
      %795 = vmatpush1.bf16.msra.mxu0 0
      %796 = vmatprep.subr.bf16.mxu0 0
      %797 = vmatpush1.bf16.msra.mxu0 0
      %798 = vmatprep.subr.bf16.mxu0 0
      %799 = vmatpush1.bf16.msra.mxu0 0
      %800 = vmatprep.subr.bf16.mxu0 0
      %801 = vmatpush1.bf16.msra.mxu0 0
      %802 = vmatprep.subr.bf16.mxu0 0
      %803 = vmatpush1.bf16.msra.mxu0 0
      %804 = vmatprep.subr.bf16.mxu0 0
      %805 = vmatpush1.bf16.msra.mxu0 0
      %806 = vmatprep.subr.bf16.mxu0 0
      %807 = vmatpush1.bf16.msra.mxu0 0
      %808 = vmatprep.subr.bf16.mxu0 0
      %809 = vmatpush1.bf16.msra.mxu0 0
      %810 = vmatprep.subr.bf16.mxu0 0
      %811 = vmatpush1.bf16.msra.mxu0 0
      %812 = vmatprep.mubr.bf16.mxu0 0
      %813 = vmatmul.mubr.bf16.gmra.mrb[0].mxu0 %v380
      %v814 = vpop.f32.mrb[0].mxu0
      %v815 = vadd.f32 0.0, %v814
      %v816 = vpop.f32.mrb[0].mxu0
      %v817 = vpop.f32.mrb[0].mxu0
      %v818 = vadd.f32 0.0, %v817
      %v819 = vpop.f32.mrb[0].mxu0
      %820 = vmatprep.mubr.bf16.mxu0 0
      %821 = vmatmul.mubr.bf16.gmra.mrb[0].mxu0 %v383
      %v822 = vpop.f32.mrb[0].mxu0
      %v823 = vadd.f32 0.0, %v822
      %v824 = vpop.f32.mrb[0].mxu0
      %v825 = vpop.f32.mrb[0].mxu0
      %v826 = vadd.f32 0.0, %v825
      %v827 = vpop.f32.mrb[0].mxu0
      %828 = vmatprep.mubr.bf16.mxu0 0
      %829 = vmatmul.mubr.bf16.gmra.mrb[0].mxu0 %v386
      %v830 = vpop.f32.mrb[0].mxu0
      %v831 = vadd.f32 0.0, %v830
      %v832 = vpop.f32.mrb[0].mxu0
      %v833 = vpop.f32.mrb[0].mxu0
      %v834 = vadd.f32 0.0, %v833
      %v835 = vpop.f32.mrb[0].mxu0
      %836 = vmatprep.mubr.bf16.mxu0 0
      %837 = vmatmul.mubr.bf16.gmra.mrb[0].mxu0 %v389
      %v838 = vpop.f32.mrb[0].mxu0
      %v839 = vadd.f32 0.0, %v838
      %v840 = vpop.f32.mrb[0].mxu0
      %v841 = vpop.f32.mrb[0].mxu0
      %v842 = vadd.f32 0.0, %v841
      %v843 = vpop.f32.mrb[0].mxu0
      %844 = vmatprep.mubr.bf16.mxu0 0
      %845 = vmatmul.mubr.bf16.gmra.mrb[0].mxu0 %v392
      %v846 = vpop.f32.mrb[0].mxu0
      %v847 = vadd.f32 0.0, %v846
      %v848 = vpop.f32.mrb[0].mxu0
      %v849 = vpop.f32.mrb[0].mxu0
      %v850 = vadd.f32 0.0, %v849
      %v851 = vpop.f32.mrb[0].mxu0
      %852 = vmatprep.mubr.bf16.mxu0 0
      %853 = vmatmul.mubr.bf16.gmra.mrb[0].mxu0 %v395
      %v854 = vpop.f32.mrb[0].mxu0
      %v855 = vadd.f32 0.0, %v854
      %v856 = vpop.f32.mrb[0].mxu0
      %v857 = vpop.f32.mrb[0].mxu0
      %v858 = vadd.f32 0.0, %v857
      %v859 = vpop.f32.mrb[0].mxu0
      %860 = vmatprep.mubr.bf16.mxu0 0
      %861 = vmatmul.mubr.bf16.gmra.mrb[0].mxu0 %v398
      %v862 = vpop.f32.mrb[0].mxu0
      %v863 = vadd.f32 0.0, %v862
      %v864 = vpop.f32.mrb[0].mxu0
      %v865 = vpop.f32.mrb[0].mxu0
      %v866 = vadd.f32 0.0, %v865
      %v867 = vpop.f32.mrb[0].mxu0
      %868 = vmatprep.mubr.bf16.mxu0 0
      %869 = vmatmul.mubr.bf16.gmra.mrb[0].mxu0 %v401
      %v870 = vpop.f32.mrb[0].mxu0
      %v871 = vadd.f32 0.0, %v870
      %v872 = vpop.f32.mrb[0].mxu0
      %v873 = vpop.f32.mrb[0].mxu0
      %v874 = vadd.f32 0.0, %v873
      %v875 = vpop.f32.mrb[0].mxu0
      %876 = vmatprep.mubr.bf16.mxu0 0
      %877 = vmatmul.mubr.bf16.gmra.mrb[0].mxu0 %v589
      %v878 = vpop.f32.mrb[0].mxu0
      %v879 = vadd.f32 0.0, %v878
      %v880 = vpop.f32.mrb[0].mxu0
      %v881 = vpop.f32.mrb[0].mxu0
      %v882 = vadd.f32 0.0, %v881
      %v883 = vpop.f32.mrb[0].mxu0
      %884 = vmatprep.mubr.bf16.mxu0 0
      %885 = vmatmul.mubr.bf16.gmra.mrb[0].mxu0 %v775
      %v886 = vpop.f32.mrb[0].mxu0
      %v887 = vadd.f32 0.0, %v886
      %v888 = vpop.f32.mrb[0].mxu0
      %v889 = vpop.f32.mrb[0].mxu0
      %v890 = vadd.f32 0.0, %v889
      %v891 = vpop.f32.mrb[0].mxu0
      %892 = vdwg.mxu0
      %v893 = vadd.f32 %v747, %v815
      %v894 = vadd.f32 %v748, %v818
      %v895 = vadd.f32 %v749, %v823
      %v896 = vadd.f32 %v750, %v826
      %v897 = vadd.f32 %v751, %v831
      %v898 = vadd.f32 %v752, %v834
      %v899 = vadd.f32 %v753, %v839
      %v900 = vadd.f32 %v754, %v842
      %v901 = vadd.f32 %v755, %v847
      %v902 = vadd.f32 %v756, %v850
      %v903 = vadd.f32 %v757, %v855
      %v904 = vadd.f32 %v758, %v858
      %v905 = vadd.f32 %v759, %v863
      %v906 = vadd.f32 %v760, %v866
      %v907 = vadd.f32 %v761, %v871
      %v908 = vadd.f32 %v762, %v874
      %v909 = vadd.f32 %v763, %v879
      %v910 = vadd.f32 %v764, %v882
      %v911 = vadd.f32 %v765, %v887
      %v912 = vadd.f32 %v766, %v890
      %913 = vst.msk [vmem:[#allocation2] sm:$0xff] %vm540, %v893
      %914 = vst.msk [vmem:[#allocation2 + $0x8] sm:$0xff] %vm540, %v894
      %915 = vst.msk [vmem:[#allocation2 + $0x10] sm:$0xff] %vm540, %v895
      %916 = vst.msk [vmem:[#allocation2 + $0x18] sm:$0xff] %vm540, %v896
      %917 = vst.msk [vmem:[#allocation2 + $0x20] sm:$0xff] %vm540, %v897
      %918 = vst.msk [vmem:[#allocation2 + $0x28] sm:$0xff] %vm540, %v898
      %919 = vst.msk [vmem:[#allocation2 + $0x30] sm:$0xff] %vm540, %v899
      %920 = vst.msk [vmem:[#allocation2 + $0x38] sm:$0xff] %vm540, %v900
      %921 = vst.msk [vmem:[#allocation2 + $0x40] sm:$0xff] %vm540, %v901
      %922 = vst.msk [vmem:[#allocation2 + $0x48] sm:$0xff] %vm540, %v902
      %923 = vst.msk [vmem:[#allocation2 + $0x50] sm:$0xff] %vm540, %v903
      %924 = vst.msk [vmem:[#allocation2 + $0x58] sm:$0xff] %vm540, %v904
      %925 = vst.msk [vmem:[#allocation2 + $0x60] sm:$0xff] %vm540, %v905
      %926 = vst.msk [vmem:[#allocation2 + $0x68] sm:$0xff] %vm540, %v906
      %927 = vst.msk [vmem:[#allocation2 + $0x70] sm:$0xff] %vm540, %v907
      %928 = vst.msk [vmem:[#allocation2 + $0x78] sm:$0xff] %vm540, %v908
      %929 = vst.msk [vmem:[#allocation2 + $0x80] sm:$0xff] %vm540, %v909
      %930 = vst.msk [vmem:[#allocation2 + $0x88] sm:$0xff] %vm540, %v910
      %931 = vst.msk [vmem:[#allocation2 + $0x90] sm:$0xff] %vm540, %v911
      %932 = vst.msk [vmem:[#allocation2 + $0x98] sm:$0xff] %vm540, %v912
      %v933 = vld [vmem:[%s232] sm:$0xf]
      %v934 = vld [vmem:[%s232 + $0x4] sm:$0xf]
      %v935 = vld [vmem:[%s232 + $0x8] sm:$0x1]
      %v936 = vld [vmem:[%s232 + $0xc] sm:$0xf]
      %v937 = vld [vmem:[%s232 + $0x10] sm:$0xf]
      %v938 = vld [vmem:[%s232 + $0x14] sm:$0x1]
      %v939 = vld [vmem:[%s232 + $0x18] sm:$0xf]
      %v940 = vld [vmem:[%s232 + $0x1c] sm:$0xf]
      %v941 = vld [vmem:[%s232 + $0x20] sm:$0x1]
      %v942 = vld [vmem:[%s232 + $0x24] sm:$0xf]
      %v943 = vld [vmem:[%s232 + $0x28] sm:$0xf]
      %v944 = vld [vmem:[%s232 + $0x2c] sm:$0x1]
      %v945 = vld [vmem:[%s232 + $0x30] sm:$0xf]
      %v946 = vld [vmem:[%s232 + $0x34] sm:$0xf]
      %v947 = vld [vmem:[%s232 + $0x38] sm:$0x1]
      %v948 = vld [vmem:[%s232 + $0x3c] sm:$0xf]
      %v949 = vld [vmem:[%s232 + $0x40] sm:$0xf]
      %v950 = vld [vmem:[%s232 + $0x44] sm:$0x1]
      %v951 = vld [vmem:[%s232 + $0x48] sm:$0xf]
      %v952 = vld [vmem:[%s232 + $0x4c] sm:$0xf]
      %v953 = vld [vmem:[%s232 + $0x50] sm:$0x1]
      %v954 = vld [vmem:[%s232 + $0x54] sm:$0xf]
      %v955 = vld [vmem:[%s232 + $0x58] sm:$0xf]
      %v956 = vld [vmem:[%s232 + $0x5c] sm:$0x1]
      %v957 = vld [vmem:[%s232 + $0x60] sm:$0xf]
      %v958 = vld [vmem:[%s232 + $0x64] sm:$0xf]
      %v959 = vld [vmem:[%s232 + $0x68] sm:$0x1]
      %v960 = vld [vmem:[%s232 + $0x6c] sm:$0xf]
      %v961 = vld [vmem:[%s232 + $0x70] sm:$0xf]
      %v962 = vld [vmem:[%s232 + $0x74] sm:$0x1]
      %v963 = vld [vmem:[%s232 + $0x78] sm:$0xf]
      %v964 = vld [vmem:[%s232 + $0x7c] sm:$0xf]
      %v965 = vld [vmem:[%s232 + $0x80] sm:$0x1]
      %v966 = vld [vmem:[%s232 + $0x84] sm:$0xf]
      %v967 = vld [vmem:[%s232 + $0x88] sm:$0xf]
      %v968 = vld [vmem:[%s232 + $0x8c] sm:$0x1]
      %v969 = vld [vmem:[#allocation2] sm:$0xff]
      %v970 = vld [vmem:[#allocation2 + $0x8] sm:$0xff]
      %v971 = vld [vmem:[#allocation2 + $0x10] sm:$0xff]
      %v972 = vld [vmem:[#allocation2 + $0x18] sm:$0xff]
      %v973 = vld [vmem:[#allocation2 + $0x20] sm:$0xff]
      %v974 = vld [vmem:[#allocation2 + $0x28] sm:$0xff]
      %v975 = vld [vmem:[#allocation2 + $0x30] sm:$0xff]
      %v976 = vld [vmem:[#allocation2 + $0x38] sm:$0xff]
      %v977 = vld [vmem:[#allocation2 + $0x40] sm:$0xff]
      %v978 = vld [vmem:[#allocation2 + $0x48] sm:$0xff]
      %v979 = vld [vmem:[#allocation2 + $0x50] sm:$0xff]
      %v980 = vld [vmem:[#allocation2 + $0x58] sm:$0xff]
      %v981 = vld [vmem:[#allocation2 + $0x60] sm:$0xff]
      %v982 = vld [vmem:[#allocation2 + $0x68] sm:$0xff]
      %v983 = vld [vmem:[#allocation2 + $0x70] sm:$0xff]
      %v984 = vld [vmem:[#allocation2 + $0x78] sm:$0xff]
      %v985 = vld [vmem:[#allocation2 + $0x80] sm:$0xff]
      %v986 = vld [vmem:[#allocation2 + $0x88] sm:$0xff]
      %v987 = vld [vmem:[#allocation2 + $0x90] sm:$0xff]
      %v988 = vld [vmem:[#allocation2 + $0x98] sm:$0xff]
      %vm989 = vsmask.f32 3328
      %vm990 = vsmask.f32 7440
      %vm991 = vmor %vm989, %vm990
      %v993 = vshrl.u32 %v933, 16
      %v995 = vrot.slane %v993, 4
      %v996 = vshll.u32 %v933, 16
      %v998 = vrot.slane %v996, 5
      %v999 = vor.u32 %v995, %v998
      %v1000 = vrot.slane %v999, 4
      %v1002 = vshll.u32 %v934, 16
      %v1004 = vrot.slane %v1002, 5
      %v1005 = vsel %vm991, %v1000, %v1004
      %v1006 = vshrl.u32 %v934, 16
      %v1008 = vrot.slane %v1006, 4
      %v1009 = vor.u32 %v1008, %v1004
      %v1010 = vrot.slane %v1009, 4
      %v1012 = vshll.u32 %v935, 16
      %v1014 = vrot.slane %v1012, 5
      %v1015 = vsel %vm991, %v1010, %v1014
      %v1017 = vshrl.u32 %v936, 16
      %v1019 = vrot.slane %v1017, 4
      %v1020 = vshll.u32 %v936, 16
      %v1022 = vrot.slane %v1020, 5
      %v1023 = vor.u32 %v1019, %v1022
      %v1024 = vrot.slane %v1023, 4
      %v1026 = vshll.u32 %v937, 16
      %v1028 = vrot.slane %v1026, 5
      %v1029 = vsel %vm991, %v1024, %v1028
      %v1030 = vshrl.u32 %v937, 16
      %v1032 = vrot.slane %v1030, 4
      %v1033 = vor.u32 %v1032, %v1028
      %v1034 = vrot.slane %v1033, 4
      %v1036 = vshll.u32 %v938, 16
      %v1038 = vrot.slane %v1036, 5
      %v1039 = vsel %vm991, %v1034, %v1038
      %v1041 = vshrl.u32 %v939, 16
      %v1043 = vrot.slane %v1041, 4
      %v1044 = vshll.u32 %v939, 16
      %v1046 = vrot.slane %v1044, 5
      %v1047 = vor.u32 %v1043, %v1046
      %v1048 = vrot.slane %v1047, 4
      %v1050 = vshll.u32 %v940, 16
      %v1052 = vrot.slane %v1050, 5
      %v1053 = vsel %vm991, %v1048, %v1052
      %v1054 = vshrl.u32 %v940, 16
      %v1056 = vrot.slane %v1054, 4
      %v1057 = vor.u32 %v1056, %v1052
      %v1058 = vrot.slane %v1057, 4
      %v1060 = vshll.u32 %v941, 16
      %v1062 = vrot.slane %v1060, 5
      %v1063 = vsel %vm991, %v1058, %v1062
      %v1065 = vshrl.u32 %v942, 16
      %v1067 = vrot.slane %v1065, 4
      %v1068 = vshll.u32 %v942, 16
      %v1070 = vrot.slane %v1068, 5
      %v1071 = vor.u32 %v1067, %v1070
      %v1072 = vrot.slane %v1071, 4
      %v1074 = vshll.u32 %v943, 16
      %v1076 = vrot.slane %v1074, 5
      %v1077 = vsel %vm991, %v1072, %v1076
      %v1078 = vshrl.u32 %v943, 16
      %v1080 = vrot.slane %v1078, 4
      %v1081 = vor.u32 %v1080, %v1076
      %v1082 = vrot.slane %v1081, 4
      %v1084 = vshll.u32 %v944, 16
      %v1086 = vrot.slane %v1084, 5
      %v1087 = vsel %vm991, %v1082, %v1086
      %v1089 = vshrl.u32 %v945, 16
      %v1091 = vrot.slane %v1089, 4
      %v1092 = vshll.u32 %v945, 16
      %v1094 = vrot.slane %v1092, 5
      %v1095 = vor.u32 %v1091, %v1094
      %v1096 = vrot.slane %v1095, 4
      %v1098 = vshll.u32 %v946, 16
      %v1100 = vrot.slane %v1098, 5
      %v1101 = vsel %vm991, %v1096, %v1100
      %v1102 = vshrl.u32 %v946, 16
      %v1104 = vrot.slane %v1102, 4
      %v1105 = vor.u32 %v1104, %v1100
      %v1106 = vrot.slane %v1105, 4
      %v1108 = vshll.u32 %v947, 16
      %v1110 = vrot.slane %v1108, 5
      %v1111 = vsel %vm991, %v1106, %v1110
      %v1113 = vshrl.u32 %v948, 16
      %v1115 = vrot.slane %v1113, 4
      %v1116 = vshll.u32 %v948, 16
      %v1118 = vrot.slane %v1116, 5
      %v1119 = vor.u32 %v1115, %v1118
      %v1120 = vrot.slane %v1119, 4
      %v1122 = vshll.u32 %v949, 16
      %v1124 = vrot.slane %v1122, 5
      %v1125 = vsel %vm991, %v1120, %v1124
      %v1126 = vshrl.u32 %v949, 16
      %v1128 = vrot.slane %v1126, 4
      %v1129 = vor.u32 %v1128, %v1124
      %v1130 = vrot.slane %v1129, 4
      %v1132 = vshll.u32 %v950, 16
      %v1134 = vrot.slane %v1132, 5
      %v1135 = vsel %vm991, %v1130, %v1134
      %v1137 = vshrl.u32 %v951, 16
      %v1139 = vrot.slane %v1137, 4
      %v1140 = vshll.u32 %v951, 16
      %v1142 = vrot.slane %v1140, 5
      %v1143 = vor.u32 %v1139, %v1142
      %v1144 = vrot.slane %v1143, 4
      %v1146 = vshll.u32 %v952, 16
      %v1148 = vrot.slane %v1146, 5
      %v1149 = vsel %vm991, %v1144, %v1148
      %v1150 = vshrl.u32 %v952, 16
      %v1152 = vrot.slane %v1150, 4
      %v1153 = vor.u32 %v1152, %v1148
      %v1154 = vrot.slane %v1153, 4
      %v1156 = vshll.u32 %v953, 16
      %v1158 = vrot.slane %v1156, 5
      %v1159 = vsel %vm991, %v1154, %v1158
      %v1161 = vshrl.u32 %v954, 16
      %v1163 = vrot.slane %v1161, 4
      %v1164 = vshll.u32 %v954, 16
      %v1166 = vrot.slane %v1164, 5
      %v1167 = vor.u32 %v1163, %v1166
      %v1168 = vrot.slane %v1167, 4
      %v1170 = vshll.u32 %v955, 16
      %v1172 = vrot.slane %v1170, 5
      %v1173 = vsel %vm991, %v1168, %v1172
      %v1174 = vshrl.u32 %v955, 16
      %v1176 = vrot.slane %v1174, 4
      %v1177 = vor.u32 %v1176, %v1172
      %v1178 = vrot.slane %v1177, 4
      %v1180 = vshll.u32 %v956, 16
      %v1182 = vrot.slane %v1180, 5
      %v1183 = vsel %vm991, %v1178, %v1182
      %v1185 = vshrl.u32 %v957, 16
      %v1187 = vrot.slane %v1185, 4
      %v1188 = vshll.u32 %v957, 16
      %v1190 = vrot.slane %v1188, 5
      %v1191 = vor.u32 %v1187, %v1190
      %v1192 = vrot.slane %v1191, 4
      %v1194 = vshll.u32 %v958, 16
      %v1196 = vrot.slane %v1194, 5
      %v1197 = vsel %vm991, %v1192, %v1196
      %v1198 = vshrl.u32 %v958, 16
      %v1200 = vrot.slane %v1198, 4
      %v1201 = vor.u32 %v1200, %v1196
      %v1202 = vrot.slane %v1201, 4
      %v1204 = vshll.u32 %v959, 16
      %v1206 = vrot.slane %v1204, 5
      %v1207 = vsel %vm991, %v1202, %v1206
      %v1209 = vshrl.u32 %v960, 16
      %v1211 = vrot.slane %v1209, 4
      %v1212 = vshll.u32 %v960, 16
      %v1214 = vrot.slane %v1212, 5
      %v1215 = vor.u32 %v1211, %v1214
      %v1216 = vrot.slane %v1215, 4
      %v1218 = vshll.u32 %v961, 16
      %v1220 = vrot.slane %v1218, 5
      %v1221 = vsel %vm991, %v1216, %v1220
      %v1222 = vshrl.u32 %v961, 16
      %v1224 = vrot.slane %v1222, 4
      %v1225 = vor.u32 %v1224, %v1220
      %v1226 = vrot.slane %v1225, 4
      %v1228 = vshll.u32 %v962, 16
      %v1230 = vrot.slane %v1228, 5
      %v1231 = vsel %vm991, %v1226, %v1230
      %s1232 = scalar_lea.vmem %s239, 4
      %v1233 = vld [vmem:[%s1232] sm:$0xf]
      %v1234 = vunpack.c.l.b16 %v1005
      %v1235 = vunpack.c.l.b16 %v1015
      %v1236 = vunpack.c.l.b16 %v1029
      %v1237 = vunpack.c.l.b16 %v1039
      %v1238 = vunpack.c.l.b16 %v1053
      %v1239 = vunpack.c.l.b16 %v1063
      %v1240 = vunpack.c.l.b16 %v1077
      %v1241 = vunpack.c.l.b16 %v1087
      %v1242 = vunpack.c.l.b16 %v1101
      %v1243 = vunpack.c.l.b16 %v1111
      %v1244 = vunpack.c.l.b16 %v1125
      %v1245 = vunpack.c.l.b16 %v1135
      %v1246 = vunpack.c.l.b16 %v1149
      %v1247 = vunpack.c.l.b16 %v1159
      %v1248 = vunpack.c.l.b16 %v1173
      %v1249 = vunpack.c.l.b16 %v1183
      %v1250 = vunpack.c.l.b16 %v1197
      %v1251 = vunpack.c.l.b16 %v1207
      %v1252 = vunpack.c.l.b16 %v1221
      %v1253 = vunpack.c.l.b16 %v1231
      %v1254 = vpack.c.b16 %v1235, %v1234
      %v1255 = vpack.c.b16 %v1237, %v1236
      %v1256 = vpack.c.b16 %v1239, %v1238
      %v1257 = vpack.c.b16 %v1241, %v1240
      %v1258 = vpack.c.b16 %v1243, %v1242
      %v1259 = vpack.c.b16 %v1245, %v1244
      %v1260 = vpack.c.b16 %v1247, %v1246
      %v1261 = vpack.c.b16 %v1249, %v1248
      %v1262 = vpack.c.b16 %v1251, %v1250
      %v1263 = vpack.c.b16 %v1253, %v1252
      %v1265 = vsel %vm372, %v1254, 0
      %v1268 = vsel %vm372, %v1255, 0
      %v1271 = vsel %vm372, %v1256, 0
      %v1274 = vsel %vm372, %v1257, 0
      %v1277 = vsel %vm372, %v1258, 0
      %v1280 = vsel %vm372, %v1259, 0
      %v1283 = vsel %vm372, %v1260, 0
      %v1286 = vsel %vm372, %v1261, 0
      %v1289 = vsel %vm372, %v1262, 0
      %v1292 = vsel %vm372, %v1263, 0
      %v1295 = vsel %vm403, %v1233, 0
      %1297 = vmatprep.subr.bf16.mxu0 0
      %1298 = vmatpush1.bf16.msra.mxu0 %v1295
      %1299 = vmatprep.subr.bf16.mxu0 0
      %1300 = vmatpush1.bf16.msra.mxu0 0
      %1301 = vmatprep.subr.bf16.mxu0 0
      %1302 = vmatpush1.bf16.msra.mxu0 0
      %1303 = vmatprep.subr.bf16.mxu0 0
      %1304 = vmatpush1.bf16.msra.mxu0 0
      %1305 = vmatprep.subr.bf16.mxu0 0
      %1306 = vmatpush1.bf16.msra.mxu0 0
      %1307 = vmatprep.subr.bf16.mxu0 0
      %1308 = vmatpush1.bf16.msra.mxu0 0
      %1309 = vmatprep.subr.bf16.mxu0 0
      %1310 = vmatpush1.bf16.msra.mxu0 0
      %1311 = vmatprep.subr.bf16.mxu0 0
      %1312 = vmatpush1.bf16.msra.mxu0 0
      %1313 = vmatprep.subr.bf16.mxu0 0
      %1314 = vmatpush1.bf16.msra.mxu0 0
      %1315 = vmatprep.subr.bf16.mxu0 0
      %1316 = vmatpush1.bf16.msra.mxu0 0
      %1317 = vmatprep.subr.bf16.mxu0 0
      %1318 = vmatpush1.bf16.msra.mxu0 0
      %1319 = vmatprep.subr.bf16.mxu0 0
      %1320 = vmatpush1.bf16.msra.mxu0 0
      %1321 = vmatprep.subr.bf16.mxu0 0
      %1322 = vmatpush1.bf16.msra.mxu0 0
      %1323 = vmatprep.subr.bf16.mxu0 0
      %1324 = vmatpush1.bf16.msra.mxu0 0
      %1325 = vmatprep.subr.bf16.mxu0 0
      %1326 = vmatpush1.bf16.msra.mxu0 0
      %1327 = vmatprep.subr.bf16.mxu0 0
      %1328 = vmatpush1.bf16.msra.mxu0 0
      %1329 = vmatprep.mubr.bf16.mxu0 0
      %1330 = vmatmul.mubr.bf16.gmra.mrb[0].mxu0 %v1265
      %v1331 = vpop.f32.mrb[0].mxu0
      %v1332 = vadd.f32 0.0, %v1331
      %v1333 = vpop.f32.mrb[0].mxu0
      %v1334 = vpop.f32.mrb[0].mxu0
      %v1335 = vadd.f32 0.0, %v1334
      %v1336 = vpop.f32.mrb[0].mxu0
      %1337 = vmatprep.mubr.bf16.mxu0 0
      %1338 = vmatmul.mubr.bf16.gmra.mrb[0].mxu0 %v1268
      %v1339 = vpop.f32.mrb[0].mxu0
      %v1340 = vadd.f32 0.0, %v1339
      %v1341 = vpop.f32.mrb[0].mxu0
      %v1342 = vpop.f32.mrb[0].mxu0
      %v1343 = vadd.f32 0.0, %v1342
      %v1344 = vpop.f32.mrb[0].mxu0
      %1345 = vmatprep.mubr.bf16.mxu0 0
      %1346 = vmatmul.mubr.bf16.gmra.mrb[0].mxu0 %v1271
      %v1347 = vpop.f32.mrb[0].mxu0
      %v1348 = vadd.f32 0.0, %v1347
      %v1349 = vpop.f32.mrb[0].mxu0
      %v1350 = vpop.f32.mrb[0].mxu0
      %v1351 = vadd.f32 0.0, %v1350
      %v1352 = vpop.f32.mrb[0].mxu0
      %1353 = vmatprep.mubr.bf16.mxu0 0
      %1354 = vmatmul.mubr.bf16.gmra.mrb[0].mxu0 %v1274
      %v1355 = vpop.f32.mrb[0].mxu0
      %v1356 = vadd.f32 0.0, %v1355
      %v1357 = vpop.f32.mrb[0].mxu0
      %v1358 = vpop.f32.mrb[0].mxu0
      %v1359 = vadd.f32 0.0, %v1358
      %v1360 = vpop.f32.mrb[0].mxu0
      %1361 = vmatprep.mubr.bf16.mxu0 0
      %1362 = vmatmul.mubr.bf16.gmra.mrb[0].mxu0 %v1277
      %v1363 = vpop.f32.mrb[0].mxu0
      %v1364 = vadd.f32 0.0, %v1363
      %v1365 = vpop.f32.mrb[0].mxu0
      %v1366 = vpop.f32.mrb[0].mxu0
      %v1367 = vadd.f32 0.0, %v1366
      %v1368 = vpop.f32.mrb[0].mxu0
      %1369 = vmatprep.mubr.bf16.mxu0 0
      %1370 = vmatmul.mubr.bf16.gmra.mrb[0].mxu0 %v1280
      %v1371 = vpop.f32.mrb[0].mxu0
      %v1372 = vadd.f32 0.0, %v1371
      %v1373 = vpop.f32.mrb[0].mxu0
      %v1374 = vpop.f32.mrb[0].mxu0
      %v1375 = vadd.f32 0.0, %v1374
      %v1376 = vpop.f32.mrb[0].mxu0
      %1377 = vmatprep.mubr.bf16.mxu0 0
      %1378 = vmatmul.mubr.bf16.gmra.mrb[0].mxu0 %v1283
      %v1379 = vpop.f32.mrb[0].mxu0
      %v1380 = vadd.f32 0.0, %v1379
      %v1381 = vpop.f32.mrb[0].mxu0
      %v1382 = vpop.f32.mrb[0].mxu0
      %v1383 = vadd.f32 0.0, %v1382
      %v1384 = vpop.f32.mrb[0].mxu0
      %1385 = vmatprep.mubr.bf16.mxu0 0
      %1386 = vmatmul.mubr.bf16.gmra.mrb[0].mxu0 %v1286
      %v1387 = vpop.f32.mrb[0].mxu0
      %v1388 = vadd.f32 0.0, %v1387
      %v1389 = vpop.f32.mrb[0].mxu0
      %v1390 = vpop.f32.mrb[0].mxu0
      %v1391 = vadd.f32 0.0, %v1390
      %v1392 = vpop.f32.mrb[0].mxu0
      %1393 = vmatprep.mubr.bf16.mxu0 0
      %1394 = vmatmul.mubr.bf16.gmra.mrb[0].mxu0 %v1289
      %v1395 = vpop.f32.mrb[0].mxu0
      %v1396 = vadd.f32 0.0, %v1395
      %v1397 = vpop.f32.mrb[0].mxu0
      %v1398 = vpop.f32.mrb[0].mxu0
      %v1399 = vadd.f32 0.0, %v1398
      %v1400 = vpop.f32.mrb[0].mxu0
      %1401 = vmatprep.mubr.bf16.mxu0 0
      %1402 = vmatmul.mubr.bf16.gmra.mrb[0].mxu0 %v1292
      %v1403 = vpop.f32.mrb[0].mxu0
      %v1404 = vadd.f32 0.0, %v1403
      %v1405 = vpop.f32.mrb[0].mxu0
      %v1406 = vpop.f32.mrb[0].mxu0
      %v1407 = vadd.f32 0.0, %v1406
      %v1408 = vpop.f32.mrb[0].mxu0
      %1409 = vdwg.mxu0
      %v1410 = vadd.f32 %v969, %v1332
      %v1411 = vadd.f32 %v970, %v1335
      %v1412 = vadd.f32 %v971, %v1340
      %v1413 = vadd.f32 %v972, %v1343
      %v1414 = vadd.f32 %v973, %v1348
      %v1415 = vadd.f32 %v974, %v1351
      %v1416 = vadd.f32 %v975, %v1356
      %v1417 = vadd.f32 %v976, %v1359
      %v1418 = vadd.f32 %v977, %v1364
      %v1419 = vadd.f32 %v978, %v1367
      %v1420 = vadd.f32 %v979, %v1372
      %v1421 = vadd.f32 %v980, %v1375
      %v1422 = vadd.f32 %v981, %v1380
      %v1423 = vadd.f32 %v982, %v1383
      %v1424 = vadd.f32 %v983, %v1388
      %v1425 = vadd.f32 %v984, %v1391
      %v1426 = vadd.f32 %v985, %v1396
      %v1427 = vadd.f32 %v986, %v1399
      %v1428 = vadd.f32 %v987, %v1404
      %v1429 = vadd.f32 %v988, %v1407
      %1430 = vst.msk [vmem:[#allocation2] sm:$0xff] %vm540, %v1410
      %1431 = vst.msk [vmem:[#allocation2 + $0x8] sm:$0xff] %vm540, %v1411
      %1432 = vst.msk [vmem:[#allocation2 + $0x10] sm:$0xff] %vm540, %v1412
      %1433 = vst.msk [vmem:[#allocation2 + $0x18] sm:$0xff] %vm540, %v1413
      %1434 = vst.msk [vmem:[#allocation2 + $0x20] sm:$0xff] %vm540, %v1414
      %1435 = vst.msk [vmem:[#allocation2 + $0x28] sm:$0xff] %vm540, %v1415
      %1436 = vst.msk [vmem:[#allocation2 + $0x30] sm:$0xff] %vm540, %v1416
      %1437 = vst.msk [vmem:[#allocation2 + $0x38] sm:$0xff] %vm540, %v1417
      %1438 = vst.msk [vmem:[#allocation2 + $0x40] sm:$0xff] %vm540, %v1418
      %1439 = vst.msk [vmem:[#allocation2 + $0x48] sm:$0xff] %vm540, %v1419
      %1440 = vst.msk [vmem:[#allocation2 + $0x50] sm:$0xff] %vm540, %v1420
      %1441 = vst.msk [vmem:[#allocation2 + $0x58] sm:$0xff] %vm540, %v1421
      %1442 = vst.msk [vmem:[#allocation2 + $0x60] sm:$0xff] %vm540, %v1422
      %1443 = vst.msk [vmem:[#allocation2 + $0x68] sm:$0xff] %vm540, %v1423
      %1444 = vst.msk [vmem:[#allocation2 + $0x70] sm:$0xff] %vm540, %v1424
      %1445 = vst.msk [vmem:[#allocation2 + $0x78] sm:$0xff] %vm540, %v1425
      %1446 = vst.msk [vmem:[#allocation2 + $0x80] sm:$0xff] %vm540, %v1426
      %1447 = vst.msk [vmem:[#allocation2 + $0x88] sm:$0xff] %vm540, %v1427
      %1448 = vst.msk [vmem:[#allocation2 + $0x90] sm:$0xff] %vm540, %v1428
      %1449 = vst.msk [vmem:[#allocation2 + $0x98] sm:$0xff] %vm540, %v1429
      %v1450 = vld [vmem:[#allocation2] sm:$0xff]
      %v1451 = vld [vmem:[#allocation2 + $0x8] sm:$0xff]
      %v1452 = vld [vmem:[#allocation2 + $0x10] sm:$0xff]
      %v1453 = vld [vmem:[#allocation2 + $0x18] sm:$0xff]
      %v1454 = vld [vmem:[#allocation2 + $0x20] sm:$0xff]
      %v1455 = vld [vmem:[#allocation2 + $0x28] sm:$0xff]
      %v1456 = vld [vmem:[#allocation2 + $0x30] sm:$0xff]
      %v1457 = vld [vmem:[#allocation2 + $0x38] sm:$0xff]
      %v1458 = vld [vmem:[#allocation2 + $0x40] sm:$0xff]
      %v1459 = vld [vmem:[#allocation2 + $0x48] sm:$0xff]
      %v1460 = vld [vmem:[#allocation2 + $0x50] sm:$0xff]
      %v1461 = vld [vmem:[#allocation2 + $0x58] sm:$0xff]
      %v1462 = vld [vmem:[#allocation2 + $0x60] sm:$0xff]
      %v1463 = vld [vmem:[#allocation2 + $0x68] sm:$0xff]
      %v1464 = vld [vmem:[#allocation2 + $0x70] sm:$0xff]
      %v1465 = vld [vmem:[#allocation2 + $0x78] sm:$0xff]
      %v1466 = vld [vmem:[#allocation2 + $0x80] sm:$0xff]
      %v1467 = vld [vmem:[#allocation2 + $0x88] sm:$0xff]
      %v1468 = vld [vmem:[#allocation2 + $0x90] sm:$0xff]
      %v1469 = vld [vmem:[#allocation2 + $0x98] sm:$0xff]
      %v1471 = vshrl.u32 %v963, 16
      %v1473 = vrot.slane %v1471, 4
      %v1474 = vshll.u32 %v963, 16
      %v1476 = vrot.slane %v1474, 5
      %v1477 = vor.u32 %v1473, %v1476
      %v1478 = vrot.slane %v1477, 4
      %v1480 = vshll.u32 %v964, 16
      %v1482 = vrot.slane %v1480, 5
      %v1483 = vsel %vm991, %v1478, %v1482
      %v1484 = vshrl.u32 %v964, 16
      %v1486 = vrot.slane %v1484, 4
      %v1487 = vor.u32 %v1486, %v1482
      %v1488 = vrot.slane %v1487, 4
      %v1490 = vshll.u32 %v965, 16
      %v1492 = vrot.slane %v1490, 5
      %v1493 = vsel %vm991, %v1488, %v1492
      %s1494 = scalar_lea.vmem %s239, 16
      %v1495 = vld [vmem:[%s1494] sm:$0xf]
      %v1496 = vunpack.c.l.b16 %v1483
      %v1497 = vunpack.c.l.b16 %v1493
      %v1498 = vpack.c.b16 %v1497, %v1496
      %v1500 = vsel %vm372, %v1498, 0
      %v1503 = vsel %vm403, %v1495, 0
      %1505 = vmatprep.subr.bf16.mxu0 0
      %1506 = vmatpush1.bf16.msra.mxu0 %v1503
      %1507 = vmatprep.subr.bf16.mxu0 0
      %1508 = vmatpush1.bf16.msra.mxu0 0
      %1509 = vmatprep.subr.bf16.mxu0 0
      %1510 = vmatpush1.bf16.msra.mxu0 0
      %1511 = vmatprep.subr.bf16.mxu0 0
      %1512 = vmatpush1.bf16.msra.mxu0 0
      %1513 = vmatprep.subr.bf16.mxu0 0
      %1514 = vmatpush1.bf16.msra.mxu0 0
      %1515 = vmatprep.subr.bf16.mxu0 0
      %1516 = vmatpush1.bf16.msra.mxu0 0
      %1517 = vmatprep.subr.bf16.mxu0 0
      %1518 = vmatpush1.bf16.msra.mxu0 0
      %1519 = vmatprep.subr.bf16.mxu0 0
      %1520 = vmatpush1.bf16.msra.mxu0 0
      %1521 = vmatprep.subr.bf16.mxu0 0
      %1522 = vmatpush1.bf16.msra.mxu0 0
      %1523 = vmatprep.subr.bf16.mxu0 0
      %1524 = vmatpush1.bf16.msra.mxu0 0
      %1525 = vmatprep.subr.bf16.mxu0 0
      %1526 = vmatpush1.bf16.msra.mxu0 0
      %1527 = vmatprep.subr.bf16.mxu0 0
      %1528 = vmatpush1.bf16.msra.mxu0 0
      %1529 = vmatprep.subr.bf16.mxu0 0
      %1530 = vmatpush1.bf16.msra.mxu0 0
      %1531 = vmatprep.subr.bf16.mxu0 0
      %1532 = vmatpush1.bf16.msra.mxu0 0
      %1533 = vmatprep.subr.bf16.mxu0 0
      %1534 = vmatpush1.bf16.msra.mxu0 0
      %1535 = vmatprep.subr.bf16.mxu0 0
      %1536 = vmatpush1.bf16.msra.mxu0 0
      %1537 = vmatprep.mubr.bf16.mxu0 0
      %1538 = vmatmul.mubr.bf16.gmra.mrb[0].mxu0 %v1268
      %v1539 = vpop.f32.mrb[0].mxu0
      %v1540 = vadd.f32 0.0, %v1539
      %v1541 = vpop.f32.mrb[0].mxu0
      %v1542 = vpop.f32.mrb[0].mxu0
      %v1543 = vadd.f32 0.0, %v1542
      %v1544 = vpop.f32.mrb[0].mxu0
      %1545 = vmatprep.mubr.bf16.mxu0 0
      %1546 = vmatmul.mubr.bf16.gmra.mrb[0].mxu0 %v1271
      %v1547 = vpop.f32.mrb[0].mxu0
      %v1548 = vadd.f32 0.0, %v1547
      %v1549 = vpop.f32.mrb[0].mxu0
      %v1550 = vpop.f32.mrb[0].mxu0
      %v1551 = vadd.f32 0.0, %v1550
      %v1552 = vpop.f32.mrb[0].mxu0
      %1553 = vmatprep.mubr.bf16.mxu0 0
      %1554 = vmatmul.mubr.bf16.gmra.mrb[0].mxu0 %v1274
      %v1555 = vpop.f32.mrb[0].mxu0
      %v1556 = vadd.f32 0.0, %v1555
      %v1557 = vpop.f32.mrb[0].mxu0
      %v1558 = vpop.f32.mrb[0].mxu0
      %v1559 = vadd.f32 0.0, %v1558
      %v1560 = vpop.f32.mrb[0].mxu0
      %1561 = vmatprep.mubr.bf16.mxu0 0
      %1562 = vmatmul.mubr.bf16.gmra.mrb[0].mxu0 %v1277
      %v1563 = vpop.f32.mrb[0].mxu0
      %v1564 = vadd.f32 0.0, %v1563
      %v1565 = vpop.f32.mrb[0].mxu0
      %v1566 = vpop.f32.mrb[0].mxu0
      %v1567 = vadd.f32 0.0, %v1566
      %v1568 = vpop.f32.mrb[0].mxu0
      %1569 = vmatprep.mubr.bf16.mxu0 0
      %1570 = vmatmul.mubr.bf16.gmra.mrb[0].mxu0 %v1280
      %v1571 = vpop.f32.mrb[0].mxu0
      %v1572 = vadd.f32 0.0, %v1571
      %v1573 = vpop.f32.mrb[0].mxu0
      %v1574 = vpop.f32.mrb[0].mxu0
      %v1575 = vadd.f32 0.0, %v1574
      %v1576 = vpop.f32.mrb[0].mxu0
      %1577 = vmatprep.mubr.bf16.mxu0 0
      %1578 = vmatmul.mubr.bf16.gmra.mrb[0].mxu0 %v1283
      %v1579 = vpop.f32.mrb[0].mxu0
      %v1580 = vadd.f32 0.0, %v1579
      %v1581 = vpop.f32.mrb[0].mxu0
      %v1582 = vpop.f32.mrb[0].mxu0
      %v1583 = vadd.f32 0.0, %v1582
      %v1584 = vpop.f32.mrb[0].mxu0
      %1585 = vmatprep.mubr.bf16.mxu0 0
      %1586 = vmatmul.mubr.bf16.gmra.mrb[0].mxu0 %v1286
      %v1587 = vpop.f32.mrb[0].mxu0
      %v1588 = vadd.f32 0.0, %v1587
      %v1589 = vpop.f32.mrb[0].mxu0
      %v1590 = vpop.f32.mrb[0].mxu0
      %v1591 = vadd.f32 0.0, %v1590
      %v1592 = vpop.f32.mrb[0].mxu0
      %1593 = vmatprep.mubr.bf16.mxu0 0
      %1594 = vmatmul.mubr.bf16.gmra.mrb[0].mxu0 %v1289
      %v1595 = vpop.f32.mrb[0].mxu0
      %v1596 = vadd.f32 0.0, %v1595
      %v1597 = vpop.f32.mrb[0].mxu0
      %v1598 = vpop.f32.mrb[0].mxu0
      %v1599 = vadd.f32 0.0, %v1598
      %v1600 = vpop.f32.mrb[0].mxu0
      %1601 = vmatprep.mubr.bf16.mxu0 0
      %1602 = vmatmul.mubr.bf16.gmra.mrb[0].mxu0 %v1292
      %v1603 = vpop.f32.mrb[0].mxu0
      %v1604 = vadd.f32 0.0, %v1603
      %v1605 = vpop.f32.mrb[0].mxu0
      %v1606 = vpop.f32.mrb[0].mxu0
      %v1607 = vadd.f32 0.0, %v1606
      %v1608 = vpop.f32.mrb[0].mxu0
      %1609 = vmatprep.mubr.bf16.mxu0 0
      %1610 = vmatmul.mubr.bf16.gmra.mrb[0].mxu0 %v1500
      %v1611 = vpop.f32.mrb[0].mxu0
      %v1612 = vadd.f32 0.0, %v1611
      %v1613 = vpop.f32.mrb[0].mxu0
      %v1614 = vpop.f32.mrb[0].mxu0
      %v1615 = vadd.f32 0.0, %v1614
      %v1616 = vpop.f32.mrb[0].mxu0
      %1617 = vdwg.mxu0
      %v1618 = vadd.f32 %v1450, %v1540
      %v1619 = vadd.f32 %v1451, %v1543
      %v1620 = vadd.f32 %v1452, %v1548
      %v1621 = vadd.f32 %v1453, %v1551
      %v1622 = vadd.f32 %v1454, %v1556
      %v1623 = vadd.f32 %v1455, %v1559
      %v1624 = vadd.f32 %v1456, %v1564
      %v1625 = vadd.f32 %v1457, %v1567
      %v1626 = vadd.f32 %v1458, %v1572
      %v1627 = vadd.f32 %v1459, %v1575
      %v1628 = vadd.f32 %v1460, %v1580
      %v1629 = vadd.f32 %v1461, %v1583
      %v1630 = vadd.f32 %v1462, %v1588
      %v1631 = vadd.f32 %v1463, %v1591
      %v1632 = vadd.f32 %v1464, %v1596
      %v1633 = vadd.f32 %v1465, %v1599
      %v1634 = vadd.f32 %v1466, %v1604
      %v1635 = vadd.f32 %v1467, %v1607
      %v1636 = vadd.f32 %v1468, %v1612
      %v1637 = vadd.f32 %v1469, %v1615
      %1638 = vst.msk [vmem:[#allocation2] sm:$0xff] %vm540, %v1618
      %1639 = vst.msk [vmem:[#allocation2 + $0x8] sm:$0xff] %vm540, %v1619
      %1640 = vst.msk [vmem:[#allocation2 + $0x10] sm:$0xff] %vm540, %v1620
      %1641 = vst.msk [vmem:[#allocation2 + $0x18] sm:$0xff] %vm540, %v1621
      %1642 = vst.msk [vmem:[#allocation2 + $0x20] sm:$0xff] %vm540, %v1622
      %1643 = vst.msk [vmem:[#allocation2 + $0x28] sm:$0xff] %vm540, %v1623
      %1644 = vst.msk [vmem:[#allocation2 + $0x30] sm:$0xff] %vm540, %v1624
      %1645 = vst.msk [vmem:[#allocation2 + $0x38] sm:$0xff] %vm540, %v1625
      %1646 = vst.msk [vmem:[#allocation2 + $0x40] sm:$0xff] %vm540, %v1626
      %1647 = vst.msk [vmem:[#allocation2 + $0x48] sm:$0xff] %vm540, %v1627
      %1648 = vst.msk [vmem:[#allocation2 + $0x50] sm:$0xff] %vm540, %v1628
      %1649 = vst.msk [vmem:[#allocation2 + $0x58] sm:$0xff] %vm540, %v1629
      %1650 = vst.msk [vmem:[#allocation2 + $0x60] sm:$0xff] %vm540, %v1630
      %1651 = vst.msk [vmem:[#allocation2 + $0x68] sm:$0xff] %vm540, %v1631
      %1652 = vst.msk [vmem:[#allocation2 + $0x70] sm:$0xff] %vm540, %v1632
      %1653 = vst.msk [vmem:[#allocation2 + $0x78] sm:$0xff] %vm540, %v1633
      %1654 = vst.msk [vmem:[#allocation2 + $0x80] sm:$0xff] %vm540, %v1634
      %1655 = vst.msk [vmem:[#allocation2 + $0x88] sm:$0xff] %vm540, %v1635
      %1656 = vst.msk [vmem:[#allocation2 + $0x90] sm:$0xff] %vm540, %v1636
      %1657 = vst.msk [vmem:[#allocation2 + $0x98] sm:$0xff] %vm540, %v1637
      %v1658 = vld [vmem:[#allocation2] sm:$0xff]
      %v1659 = vld [vmem:[#allocation2 + $0x8] sm:$0xff]
      %v1660 = vld [vmem:[#allocation2 + $0x10] sm:$0xff]
      %v1661 = vld [vmem:[#allocation2 + $0x18] sm:$0xff]
      %v1662 = vld [vmem:[#allocation2 + $0x20] sm:$0xff]
      %v1663 = vld [vmem:[#allocation2 + $0x28] sm:$0xff]
      %v1664 = vld [vmem:[#allocation2 + $0x30] sm:$0xff]
      %v1665 = vld [vmem:[#allocation2 + $0x38] sm:$0xff]
      %v1666 = vld [vmem:[#allocation2 + $0x40] sm:$0xff]
      %v1667 = vld [vmem:[#allocation2 + $0x48] sm:$0xff]
      %v1668 = vld [vmem:[#allocation2 + $0x50] sm:$0xff]
      %v1669 = vld [vmem:[#allocation2 + $0x58] sm:$0xff]
      %v1670 = vld [vmem:[#allocation2 + $0x60] sm:$0xff]
      %v1671 = vld [vmem:[#allocation2 + $0x68] sm:$0xff]
      %v1672 = vld [vmem:[#allocation2 + $0x70] sm:$0xff]
      %v1673 = vld [vmem:[#allocation2 + $0x78] sm:$0xff]
      %v1674 = vld [vmem:[#allocation2 + $0x80] sm:$0xff]
      %v1675 = vld [vmem:[#allocation2 + $0x88] sm:$0xff]
      %v1676 = vld [vmem:[#allocation2 + $0x90] sm:$0xff]
      %v1677 = vld [vmem:[#allocation2 + $0x98] sm:$0xff]
      %v1679 = vshrl.u32 %v966, 16
      %v1681 = vrot.slane %v1679, 4
      %v1682 = vshll.u32 %v966, 16
      %v1684 = vrot.slane %v1682, 5
      %v1685 = vor.u32 %v1681, %v1684
      %v1686 = vrot.slane %v1685, 4
      %v1688 = vshll.u32 %v967, 16
      %v1690 = vrot.slane %v1688, 5
      %v1691 = vsel %vm991, %v1686, %v1690
      %v1692 = vshrl.u32 %v967, 16
      %v1694 = vrot.slane %v1692, 4
      %v1695 = vor.u32 %v1694, %v1690
      %v1696 = vrot.slane %v1695, 4
      %v1698 = vshll.u32 %v968, 16
      %v1700 = vrot.slane %v1698, 5
      %v1701 = vsel %vm991, %v1696, %v1700
      %s1702 = scalar_lea.vmem %s239, 28
      %v1703 = vld [vmem:[%s1702] sm:$0xf]
      %v1704 = vunpack.c.l.b16 %v1691
      %v1705 = vunpack.c.l.b16 %v1701
      %v1706 = vpack.c.b16 %v1705, %v1704
      %v1708 = vsel %vm372, %v1706, 0
      %v1711 = vsel %vm403, %v1703, 0
      %1713 = vmatprep.subr.bf16.mxu0 0
      %1714 = vmatpush1.bf16.msra.mxu0 %v1711
      %1715 = vmatprep.subr.bf16.mxu0 0
      %1716 = vmatpush1.bf16.msra.mxu0 0
      %1717 = vmatprep.subr.bf16.mxu0 0
      %1718 = vmatpush1.bf16.msra.mxu0 0
      %1719 = vmatprep.subr.bf16.mxu0 0
      %1720 = vmatpush1.bf16.msra.mxu0 0
      %1721 = vmatprep.subr.bf16.mxu0 0
      %1722 = vmatpush1.bf16.msra.mxu0 0
      %1723 = vmatprep.subr.bf16.mxu0 0
      %1724 = vmatpush1.bf16.msra.mxu0 0
      %1725 = vmatprep.subr.bf16.mxu0 0
      %1726 = vmatpush1.bf16.msra.mxu0 0
      %1727 = vmatprep.subr.bf16.mxu0 0
      %1728 = vmatpush1.bf16.msra.mxu0 0
      %1729 = vmatprep.subr.bf16.mxu0 0
      %1730 = vmatpush1.bf16.msra.mxu0 0
      %1731 = vmatprep.subr.bf16.mxu0 0
      %1732 = vmatpush1.bf16.msra.mxu0 0
      %1733 = vmatprep.subr.bf16.mxu0 0
      %1734 = vmatpush1.bf16.msra.mxu0 0
      %1735 = vmatprep.subr.bf16.mxu0 0
      %1736 = vmatpush1.bf16.msra.mxu0 0
      %1737 = vmatprep.subr.bf16.mxu0 0
      %1738 = vmatpush1.bf16.msra.mxu0 0
      %1739 = vmatprep.subr.bf16.mxu0 0
      %1740 = vmatpush1.bf16.msra.mxu0 0
      %1741 = vmatprep.subr.bf16.mxu0 0
      %1742 = vmatpush1.bf16.msra.mxu0 0
      %1743 = vmatprep.subr.bf16.mxu0 0
      %1744 = vmatpush1.bf16.msra.mxu0 0
      %1745 = vmatprep.mubr.bf16.mxu0 0
      %1746 = vmatmul.mubr.bf16.gmra.mrb[0].mxu0 %v1271
      %v1747 = vpop.f32.mrb[0].mxu0
      %v1748 = vadd.f32 0.0, %v1747
      %v1749 = vpop.f32.mrb[0].mxu0
      %v1750 = vpop.f32.mrb[0].mxu0
      %v1751 = vadd.f32 0.0, %v1750
      %v1752 = vpop.f32.mrb[0].mxu0
      %1753 = vmatprep.mubr.bf16.mxu0 0
      %1754 = vmatmul.mubr.bf16.gmra.mrb[0].mxu0 %v1274
      %v1755 = vpop.f32.mrb[0].mxu0
      %v1756 = vadd.f32 0.0, %v1755
      %v1757 = vpop.f32.mrb[0].mxu0
      %v1758 = vpop.f32.mrb[0].mxu0
      %v1759 = vadd.f32 0.0, %v1758
      %v1760 = vpop.f32.mrb[0].mxu0
      %1761 = vmatprep.mubr.bf16.mxu0 0
      %1762 = vmatmul.mubr.bf16.gmra.mrb[0].mxu0 %v1277
      %v1763 = vpop.f32.mrb[0].mxu0
      %v1764 = vadd.f32 0.0, %v1763
      %v1765 = vpop.f32.mrb[0].mxu0
      %v1766 = vpop.f32.mrb[0].mxu0
      %v1767 = vadd.f32 0.0, %v1766
      %v1768 = vpop.f32.mrb[0].mxu0
      %1769 = vmatprep.mubr.bf16.mxu0 0
      %1770 = vmatmul.mubr.bf16.gmra.mrb[0].mxu0 %v1280
      %v1771 = vpop.f32.mrb[0].mxu0
      %v1772 = vadd.f32 0.0, %v1771
      %v1773 = vpop.f32.mrb[0].mxu0
      %v1774 = vpop.f32.mrb[0].mxu0
      %v1775 = vadd.f32 0.0, %v1774
      %v1776 = vpop.f32.mrb[0].mxu0
      %1777 = vmatprep.mubr.bf16.mxu0 0
      %1778 = vmatmul.mubr.bf16.gmra.mrb[0].mxu0 %v1283
      %v1779 = vpop.f32.mrb[0].mxu0
      %v1780 = vadd.f32 0.0, %v1779
      %v1781 = vpop.f32.mrb[0].mxu0
      %v1782 = vpop.f32.mrb[0].mxu0
      %v1783 = vadd.f32 0.0, %v1782
      %v1784 = vpop.f32.mrb[0].mxu0
      %1785 = vmatprep.mubr.bf16.mxu0 0
      %1786 = vmatmul.mubr.bf16.gmra.mrb[0].mxu0 %v1286
      %v1787 = vpop.f32.mrb[0].mxu0
      %v1788 = vadd.f32 0.0, %v1787
      %v1789 = vpop.f32.mrb[0].mxu0
      %v1790 = vpop.f32.mrb[0].mxu0
      %v1791 = vadd.f32 0.0, %v1790
      %v1792 = vpop.f32.mrb[0].mxu0
      %1793 = vmatprep.mubr.bf16.mxu0 0
      %1794 = vmatmul.mubr.bf16.gmra.mrb[0].mxu0 %v1289
      %v1795 = vpop.f32.mrb[0].mxu0
      %v1796 = vadd.f32 0.0, %v1795
      %v1797 = vpop.f32.mrb[0].mxu0
      %v1798 = vpop.f32.mrb[0].mxu0
      %v1799 = vadd.f32 0.0, %v1798
      %v1800 = vpop.f32.mrb[0].mxu0
      %1801 = vmatprep.mubr.bf16.mxu0 0
      %1802 = vmatmul.mubr.bf16.gmra.mrb[0].mxu0 %v1292
      %v1803 = vpop.f32.mrb[0].mxu0
      %v1804 = vadd.f32 0.0, %v1803
      %v1805 = vpop.f32.mrb[0].mxu0
      %v1806 = vpop.f32.mrb[0].mxu0
      %v1807 = vadd.f32 0.0, %v1806
      %v1808 = vpop.f32.mrb[0].mxu0
      %1809 = vmatprep.mubr.bf16.mxu0 0
      %1810 = vmatmul.mubr.bf16.gmra.mrb[0].mxu0 %v1500
      %v1811 = vpop.f32.mrb[0].mxu0
      %v1812 = vadd.f32 0.0, %v1811
      %v1813 = vpop.f32.mrb[0].mxu0
      %v1814 = vpop.f32.mrb[0].mxu0
      %v1815 = vadd.f32 0.0, %v1814
      %v1816 = vpop.f32.mrb[0].mxu0
      %1817 = vmatprep.mubr.bf16.mxu0 0
      %1818 = vmatmul.mubr.bf16.gmra.mrb[0].mxu0 %v1708
      %v1819 = vpop.f32.mrb[0].mxu0
      %v1820 = vadd.f32 0.0, %v1819
      %v1821 = vpop.f32.mrb[0].mxu0
      %v1822 = vpop.f32.mrb[0].mxu0
      %v1823 = vadd.f32 0.0, %v1822
      %v1824 = vpop.f32.mrb[0].mxu0
      %1825 = vdwg.mxu0
      %v1826 = vadd.f32 %v1658, %v1748
      %v1827 = vadd.f32 %v1659, %v1751
      %v1828 = vadd.f32 %v1660, %v1756
      %v1829 = vadd.f32 %v1661, %v1759
      %v1830 = vadd.f32 %v1662, %v1764
      %v1831 = vadd.f32 %v1663, %v1767
      %v1832 = vadd.f32 %v1664, %v1772
      %v1833 = vadd.f32 %v1665, %v1775
      %v1834 = vadd.f32 %v1666, %v1780
      %v1835 = vadd.f32 %v1667, %v1783
      %v1836 = vadd.f32 %v1668, %v1788
      %v1837 = vadd.f32 %v1669, %v1791
      %v1838 = vadd.f32 %v1670, %v1796
      %v1839 = vadd.f32 %v1671, %v1799
      %v1840 = vadd.f32 %v1672, %v1804
      %v1841 = vadd.f32 %v1673, %v1807
      %v1842 = vadd.f32 %v1674, %v1812
      %v1843 = vadd.f32 %v1675, %v1815
      %v1844 = vadd.f32 %v1676, %v1820
      %v1845 = vadd.f32 %v1677, %v1823
      %1846 = vst.msk [vmem:[#allocation2] sm:$0xff] %vm540, %v1826
      %1847 = vst.msk [vmem:[#allocation2 + $0x8] sm:$0xff] %vm540, %v1827
      %1848 = vst.msk [vmem:[#allocation2 + $0x10] sm:$0xff] %vm540, %v1828
      %1849 = vst.msk [vmem:[#allocation2 + $0x18] sm:$0xff] %vm540, %v1829
      %1850 = vst.msk [vmem:[#allocation2 + $0x20] sm:$0xff] %vm540, %v1830
      %1851 = vst.msk [vmem:[#allocation2 + $0x28] sm:$0xff] %vm540, %v1831
      %1852 = vst.msk [vmem:[#allocation2 + $0x30] sm:$0xff] %vm540, %v1832
      %1853 = vst.msk [vmem:[#allocation2 + $0x38] sm:$0xff] %vm540, %v1833
      %1854 = vst.msk [vmem:[#allocation2 + $0x40] sm:$0xff] %vm540, %v1834
      %1855 = vst.msk [vmem:[#allocation2 + $0x48] sm:$0xff] %vm540, %v1835
      %1856 = vst.msk [vmem:[#allocation2 + $0x50] sm:$0xff] %vm540, %v1836
      %1857 = vst.msk [vmem:[#allocation2 + $0x58] sm:$0xff] %vm540, %v1837
      %1858 = vst.msk [vmem:[#allocation2 + $0x60] sm:$0xff] %vm540, %v1838
      %1859 = vst.msk [vmem:[#allocation2 + $0x68] sm:$0xff] %vm540, %v1839
      %1860 = vst.msk [vmem:[#allocation2 + $0x70] sm:$0xff] %vm540, %v1840
      %1861 = vst.msk [vmem:[#allocation2 + $0x78] sm:$0xff] %vm540, %v1841
      %1862 = vst.msk [vmem:[#allocation2 + $0x80] sm:$0xff] %vm540, %v1842
      %1863 = vst.msk [vmem:[#allocation2 + $0x88] sm:$0xff] %vm540, %v1843
      %1864 = vst.msk [vmem:[#allocation2 + $0x90] sm:$0xff] %vm540, %v1844
      %1865 = vst.msk [vmem:[#allocation2 + $0x98] sm:$0xff] %vm540, %v1845
      %v1866 = vld [vmem:[%s232] sm:$0xe]
      %v1867 = vld [vmem:[%s232 + $0x4] sm:$0xf]
      %v1868 = vld [vmem:[%s232 + $0x8] sm:$0x1]
      %v1869 = vld [vmem:[%s232 + $0xc] sm:$0xe]
      %v1870 = vld [vmem:[%s232 + $0x10] sm:$0xf]
      %v1871 = vld [vmem:[%s232 + $0x14] sm:$0x1]
      %v1872 = vld [vmem:[%s232 + $0x18] sm:$0xe]
      %v1873 = vld [vmem:[%s232 + $0x1c] sm:$0xf]
      %v1874 = vld [vmem:[%s232 + $0x20] sm:$0x1]
      %v1875 = vld [vmem:[%s232 + $0x24] sm:$0xe]
      %v1876 = vld [vmem:[%s232 + $0x28] sm:$0xf]
      %v1877 = vld [vmem:[%s232 + $0x2c] sm:$0x1]
      %v1878 = vld [vmem:[%s232 + $0x30] sm:$0xe]
      %v1879 = vld [vmem:[%s232 + $0x34] sm:$0xf]
      %v1880 = vld [vmem:[%s232 + $0x38] sm:$0x1]
      %v1881 = vld [vmem:[%s232 + $0x3c] sm:$0xe]
      %v1882 = vld [vmem:[%s232 + $0x40] sm:$0xf]
      %v1883 = vld [vmem:[%s232 + $0x44] sm:$0x1]
      %v1884 = vld [vmem:[%s232 + $0x48] sm:$0xe]
      %v1885 = vld [vmem:[%s232 + $0x4c] sm:$0xf]
      %v1886 = vld [vmem:[%s232 + $0x50] sm:$0x1]
      %v1887 = vld [vmem:[%s232 + $0x54] sm:$0xe]
      %v1888 = vld [vmem:[%s232 + $0x58] sm:$0xf]
      %v1889 = vld [vmem:[%s232 + $0x5c] sm:$0x1]
      %v1890 = vld [vmem:[%s232 + $0x60] sm:$0xe]
      %v1891 = vld [vmem:[%s232 + $0x64] sm:$0xf]
      %v1892 = vld [vmem:[%s232 + $0x68] sm:$0x1]
      %v1893 = vld [vmem:[%s232 + $0x6c] sm:$0xe]
      %v1894 = vld [vmem:[%s232 + $0x70] sm:$0xf]
      %v1895 = vld [vmem:[%s232 + $0x74] sm:$0x1]
      %v1896 = vld [vmem:[%s232 + $0x78] sm:$0xe]
      %v1897 = vld [vmem:[%s232 + $0x7c] sm:$0xf]
      %v1898 = vld [vmem:[%s232 + $0x80] sm:$0x1]
      %v1899 = vld [vmem:[%s232 + $0x84] sm:$0xe]
      %v1900 = vld [vmem:[%s232 + $0x88] sm:$0xf]
      %v1901 = vld [vmem:[%s232 + $0x8c] sm:$0x1]
      %v1902 = vld [vmem:[#allocation2] sm:$0xff]
      %v1903 = vld [vmem:[#allocation2 + $0x8] sm:$0xff]
      %v1904 = vld [vmem:[#allocation2 + $0x10] sm:$0xff]
      %v1905 = vld [vmem:[#allocation2 + $0x18] sm:$0xff]
      %v1906 = vld [vmem:[#allocation2 + $0x20] sm:$0xff]
      %v1907 = vld [vmem:[#allocation2 + $0x28] sm:$0xff]
      %v1908 = vld [vmem:[#allocation2 + $0x30] sm:$0xff]
      %v1909 = vld [vmem:[#allocation2 + $0x38] sm:$0xff]
      %v1910 = vld [vmem:[#allocation2 + $0x40] sm:$0xff]
      %v1911 = vld [vmem:[#allocation2 + $0x48] sm:$0xff]
      %v1912 = vld [vmem:[#allocation2 + $0x50] sm:$0xff]
      %v1913 = vld [vmem:[#allocation2 + $0x58] sm:$0xff]
      %v1914 = vld [vmem:[#allocation2 + $0x60] sm:$0xff]
      %v1915 = vld [vmem:[#allocation2 + $0x68] sm:$0xff]
      %v1916 = vld [vmem:[#allocation2 + $0x70] sm:$0xff]
      %v1917 = vld [vmem:[#allocation2 + $0x78] sm:$0xff]
      %v1918 = vld [vmem:[#allocation2 + $0x80] sm:$0xff]
      %v1919 = vld [vmem:[#allocation2 + $0x88] sm:$0xff]
      %v1920 = vld [vmem:[#allocation2 + $0x90] sm:$0xff]
      %v1921 = vld [vmem:[#allocation2 + $0x98] sm:$0xff]
      %vm1952 = vcmask 1042432
      %vm1953 = vcmask 1046532
      %vm1954 = vmor %vm1952, %vm1953
      %v1955 = vrot.slane %v1866, 5
      %v1956 = vrot.slane %v1955, 4
      %v1957 = vrot.slane %v1867, 5
      %v1958 = vsel %vm1954, %v1956, %v1957
      %v1959 = vrot.slane %v1957, 4
      %v1960 = vrot.slane %v1868, 5
      %v1961 = vsel %vm1954, %v1959, %v1960
      %v1962 = vrot.slane %v1869, 5
      %v1963 = vrot.slane %v1962, 4
      %v1964 = vrot.slane %v1870, 5
      %v1965 = vsel %vm1954, %v1963, %v1964
      %v1966 = vrot.slane %v1964, 4
      %v1967 = vrot.slane %v1871, 5
      %v1968 = vsel %vm1954, %v1966, %v1967
      %v1969 = vrot.slane %v1872, 5
      %v1970 = vrot.slane %v1969, 4
      %v1971 = vrot.slane %v1873, 5
      %v1972 = vsel %vm1954, %v1970, %v1971
      %v1973 = vrot.slane %v1971, 4
      %v1974 = vrot.slane %v1874, 5
      %v1975 = vsel %vm1954, %v1973, %v1974
      %v1976 = vrot.slane %v1875, 5
      %v1977 = vrot.slane %v1976, 4
      %v1978 = vrot.slane %v1876, 5
      %v1979 = vsel %vm1954, %v1977, %v1978
      %v1980 = vrot.slane %v1978, 4
      %v1981 = vrot.slane %v1877, 5
      %v1982 = vsel %vm1954, %v1980, %v1981
      %v1983 = vrot.slane %v1878, 5
      %v1984 = vrot.slane %v1983, 4
      %v1985 = vrot.slane %v1879, 5
      %v1986 = vsel %vm1954, %v1984, %v1985
      %v1987 = vrot.slane %v1985, 4
      %v1988 = vrot.slane %v1880, 5
      %v1989 = vsel %vm1954, %v1987, %v1988
      %v1990 = vrot.slane %v1881, 5
      %v1991 = vrot.slane %v1990, 4
      %v1992 = vrot.slane %v1882, 5
      %v1993 = vsel %vm1954, %v1991, %v1992
      %v1994 = vrot.slane %v1992, 4
      %v1995 = vrot.slane %v1883, 5
      %v1996 = vsel %vm1954, %v1994, %v1995
      %v1997 = vrot.slane %v1884, 5
      %v1998 = vrot.slane %v1997, 4
      %v1999 = vrot.slane %v1885, 5
      %v2000 = vsel %vm1954, %v1998, %v1999
      %v2001 = vrot.slane %v1999, 4
      %v2002 = vrot.slane %v1886, 5
      %v2003 = vsel %vm1954, %v2001, %v2002
      %v2004 = vrot.slane %v1887, 5
      %v2005 = vrot.slane %v2004, 4
      %v2006 = vrot.slane %v1888, 5
      %v2007 = vsel %vm1954, %v2005, %v2006
      %v2008 = vrot.slane %v2006, 4
      %v2009 = vrot.slane %v1889, 5
      %v2010 = vsel %vm1954, %v2008, %v2009
      %v2011 = vrot.slane %v1890, 5
      %v2012 = vrot.slane %v2011, 4
      %v2013 = vrot.slane %v1891, 5
      %v2014 = vsel %vm1954, %v2012, %v2013
      %v2015 = vrot.slane %v2013, 4
      %v2016 = vrot.slane %v1892, 5
      %v2017 = vsel %vm1954, %v2015, %v2016
      %v2018 = vrot.slane %v1893, 5
      %v2019 = vrot.slane %v2018, 4
      %v2020 = vrot.slane %v1894, 5
      %v2021 = vsel %vm1954, %v2019, %v2020
      %v2022 = vrot.slane %v2020, 4
      %v2023 = vrot.slane %v1895, 5
      %v2024 = vsel %vm1954, %v2022, %v2023
      %s2025 = scalar_lea.vmem %s239, 8
      %v2026 = vld [vmem:[%s2025] sm:$0xf]
      %v2027 = vunpack.c.l.b16 %v1958
      %v2028 = vunpack.c.l.b16 %v1961
      %v2029 = vunpack.c.l.b16 %v1965
      %v2030 = vunpack.c.l.b16 %v1968
      %v2031 = vunpack.c.l.b16 %v1972
      %v2032 = vunpack.c.l.b16 %v1975
      %v2033 = vunpack.c.l.b16 %v1979
      %v2034 = vunpack.c.l.b16 %v1982
      %v2035 = vunpack.c.l.b16 %v1986
      %v2036 = vunpack.c.l.b16 %v1989
      %v2037 = vunpack.c.l.b16 %v1993
      %v2038 = vunpack.c.l.b16 %v1996
      %v2039 = vunpack.c.l.b16 %v2000
      %v2040 = vunpack.c.l.b16 %v2003
      %v2041 = vunpack.c.l.b16 %v2007
      %v2042 = vunpack.c.l.b16 %v2010
      %v2043 = vunpack.c.l.b16 %v2014
      %v2044 = vunpack.c.l.b16 %v2017
      %v2045 = vunpack.c.l.b16 %v2021
      %v2046 = vunpack.c.l.b16 %v2024
      %v2047 = vpack.c.b16 %v2028, %v2027
      %v2048 = vpack.c.b16 %v2030, %v2029
      %v2049 = vpack.c.b16 %v2032, %v2031
      %v2050 = vpack.c.b16 %v2034, %v2033
      %v2051 = vpack.c.b16 %v2036, %v2035
      %v2052 = vpack.c.b16 %v2038, %v2037
      %v2053 = vpack.c.b16 %v2040, %v2039
      %v2054 = vpack.c.b16 %v2042, %v2041
      %v2055 = vpack.c.b16 %v2044, %v2043
      %v2056 = vpack.c.b16 %v2046, %v2045
      %v2058 = vsel %vm372, %v2047, 0
      %v2061 = vsel %vm372, %v2048, 0
      %v2064 = vsel %vm372, %v2049, 0
      %v2067 = vsel %vm372, %v2050, 0
      %v2070 = vsel %vm372, %v2051, 0
      %v2073 = vsel %vm372, %v2052, 0
      %v2076 = vsel %vm372, %v2053, 0
      %v2079 = vsel %vm372, %v2054, 0
      %v2082 = vsel %vm372, %v2055, 0
      %v2085 = vsel %vm372, %v2056, 0
      %v2088 = vsel %vm403, %v2026, 0
      %2090 = vmatprep.subr.bf16.mxu0 0
      %2091 = vmatpush1.bf16.msra.mxu0 %v2088
      %2092 = vmatprep.subr.bf16.mxu0 0
      %2093 = vmatpush1.bf16.msra.mxu0 0
      %2094 = vmatprep.subr.bf16.mxu0 0
      %2095 = vmatpush1.bf16.msra.mxu0 0
      %2096 = vmatprep.subr.bf16.mxu0 0
      %2097 = vmatpush1.bf16.msra.mxu0 0
      %2098 = vmatprep.subr.bf16.mxu0 0
      %2099 = vmatpush1.bf16.msra.mxu0 0
      %2100 = vmatprep.subr.bf16.mxu0 0
      %2101 = vmatpush1.bf16.msra.mxu0 0
      %2102 = vmatprep.subr.bf16.mxu0 0
      %2103 = vmatpush1.bf16.msra.mxu0 0
      %2104 = vmatprep.subr.bf16.mxu0 0
      %2105 = vmatpush1.bf16.msra.mxu0 0
      %2106 = vmatprep.subr.bf16.mxu0 0
      %2107 = vmatpush1.bf16.msra.mxu0 0
      %2108 = vmatprep.subr.bf16.mxu0 0
      %2109 = vmatpush1.bf16.msra.mxu0 0
      %2110 = vmatprep.subr.bf16.mxu0 0
      %2111 = vmatpush1.bf16.msra.mxu0 0
      %2112 = vmatprep.subr.bf16.mxu0 0
      %2113 = vmatpush1.bf16.msra.mxu0 0
      %2114 = vmatprep.subr.bf16.mxu0 0
      %2115 = vmatpush1.bf16.msra.mxu0 0
      %2116 = vmatprep.subr.bf16.mxu0 0
      %2117 = vmatpush1.bf16.msra.mxu0 0
      %2118 = vmatprep.subr.bf16.mxu0 0
      %2119 = vmatpush1.bf16.msra.mxu0 0
      %2120 = vmatprep.subr.bf16.mxu0 0
      %2121 = vmatpush1.bf16.msra.mxu0 0
      %2122 = vmatprep.mubr.bf16.mxu0 0
      %2123 = vmatmul.mubr.bf16.gmra.mrb[0].mxu0 %v2058
      %v2124 = vpop.f32.mrb[0].mxu0
      %v2125 = vadd.f32 0.0, %v2124
      %v2126 = vpop.f32.mrb[0].mxu0
      %v2127 = vpop.f32.mrb[0].mxu0
      %v2128 = vadd.f32 0.0, %v2127
      %v2129 = vpop.f32.mrb[0].mxu0
      %2130 = vmatprep.mubr.bf16.mxu0 0
      %2131 = vmatmul.mubr.bf16.gmra.mrb[0].mxu0 %v2061
      %v2132 = vpop.f32.mrb[0].mxu0
      %v2133 = vadd.f32 0.0, %v2132
      %v2134 = vpop.f32.mrb[0].mxu0
      %v2135 = vpop.f32.mrb[0].mxu0
      %v2136 = vadd.f32 0.0, %v2135
      %v2137 = vpop.f32.mrb[0].mxu0
      %2138 = vmatprep.mubr.bf16.mxu0 0
      %2139 = vmatmul.mubr.bf16.gmra.mrb[0].mxu0 %v2064
      %v2140 = vpop.f32.mrb[0].mxu0
      %v2141 = vadd.f32 0.0, %v2140
      %v2142 = vpop.f32.mrb[0].mxu0
      %v2143 = vpop.f32.mrb[0].mxu0
      %v2144 = vadd.f32 0.0, %v2143
      %v2145 = vpop.f32.mrb[0].mxu0
      %2146 = vmatprep.mubr.bf16.mxu0 0
      %2147 = vmatmul.mubr.bf16.gmra.mrb[0].mxu0 %v2067
      %v2148 = vpop.f32.mrb[0].mxu0
      %v2149 = vadd.f32 0.0, %v2148
      %v2150 = vpop.f32.mrb[0].mxu0
      %v2151 = vpop.f32.mrb[0].mxu0
      %v2152 = vadd.f32 0.0, %v2151
      %v2153 = vpop.f32.mrb[0].mxu0
      %2154 = vmatprep.mubr.bf16.mxu0 0
      %2155 = vmatmul.mubr.bf16.gmra.mrb[0].mxu0 %v2070
      %v2156 = vpop.f32.mrb[0].mxu0
      %v2157 = vadd.f32 0.0, %v2156
      %v2158 = vpop.f32.mrb[0].mxu0
      %v2159 = vpop.f32.mrb[0].mxu0
      %v2160 = vadd.f32 0.0, %v2159
      %v2161 = vpop.f32.mrb[0].mxu0
      %2162 = vmatprep.mubr.bf16.mxu0 0
      %2163 = vmatmul.mubr.bf16.gmra.mrb[0].mxu0 %v2073
      %v2164 = vpop.f32.mrb[0].mxu0
      %v2165 = vadd.f32 0.0, %v2164
      %v2166 = vpop.f32.mrb[0].mxu0
      %v2167 = vpop.f32.mrb[0].mxu0
      %v2168 = vadd.f32 0.0, %v2167
      %v2169 = vpop.f32.mrb[0].mxu0
      %2170 = vmatprep.mubr.bf16.mxu0 0
      %2171 = vmatmul.mubr.bf16.gmra.mrb[0].mxu0 %v2076
      %v2172 = vpop.f32.mrb[0].mxu0
      %v2173 = vadd.f32 0.0, %v2172
      %v2174 = vpop.f32.mrb[0].mxu0
      %v2175 = vpop.f32.mrb[0].mxu0
      %v2176 = vadd.f32 0.0, %v2175
      %v2177 = vpop.f32.mrb[0].mxu0
      %2178 = vmatprep.mubr.bf16.mxu0 0
      %2179 = vmatmul.mubr.bf16.gmra.mrb[0].mxu0 %v2079
      %v2180 = vpop.f32.mrb[0].mxu0
      %v2181 = vadd.f32 0.0, %v2180
      %v2182 = vpop.f32.mrb[0].mxu0
      %v2183 = vpop.f32.mrb[0].mxu0
      %v2184 = vadd.f32 0.0, %v2183
      %v2185 = vpop.f32.mrb[0].mxu0
      %2186 = vmatprep.mubr.bf16.mxu0 0
      %2187 = vmatmul.mubr.bf16.gmra.mrb[0].mxu0 %v2082
      %v2188 = vpop.f32.mrb[0].mxu0
      %v2189 = vadd.f32 0.0, %v2188
      %v2190 = vpop.f32.mrb[0].mxu0
      %v2191 = vpop.f32.mrb[0].mxu0
      %v2192 = vadd.f32 0.0, %v2191
      %v2193 = vpop.f32.mrb[0].mxu0
      %2194 = vmatprep.mubr.bf16.mxu0 0
      %2195 = vmatmul.mubr.bf16.gmra.mrb[0].mxu0 %v2085
      %v2196 = vpop.f32.mrb[0].mxu0
      %v2197 = vadd.f32 0.0, %v2196
      %v2198 = vpop.f32.mrb[0].mxu0
      %v2199 = vpop.f32.mrb[0].mxu0
      %v2200 = vadd.f32 0.0, %v2199
      %v2201 = vpop.f32.mrb[0].mxu0
      %2202 = vdwg.mxu0
      %v2203 = vadd.f32 %v1902, %v2125
      %v2204 = vadd.f32 %v1903, %v2128
      %v2205 = vadd.f32 %v1904, %v2133
      %v2206 = vadd.f32 %v1905, %v2136
      %v2207 = vadd.f32 %v1906, %v2141
      %v2208 = vadd.f32 %v1907, %v2144
      %v2209 = vadd.f32 %v1908, %v2149
      %v2210 = vadd.f32 %v1909, %v2152
      %v2211 = vadd.f32 %v1910, %v2157
      %v2212 = vadd.f32 %v1911, %v2160
      %v2213 = vadd.f32 %v1912, %v2165
      %v2214 = vadd.f32 %v1913, %v2168
      %v2215 = vadd.f32 %v1914, %v2173
      %v2216 = vadd.f32 %v1915, %v2176
      %v2217 = vadd.f32 %v1916, %v2181
      %v2218 = vadd.f32 %v1917, %v2184
      %v2219 = vadd.f32 %v1918, %v2189
      %v2220 = vadd.f32 %v1919, %v2192
      %v2221 = vadd.f32 %v1920, %v2197
      %v2222 = vadd.f32 %v1921, %v2200
      %2223 = vst.msk [vmem:[#allocation2] sm:$0xff] %vm540, %v2203
      %2224 = vst.msk [vmem:[#allocation2 + $0x8] sm:$0xff] %vm540, %v2204
      %2225 = vst.msk [vmem:[#allocation2 + $0x10] sm:$0xff] %vm540, %v2205
      %2226 = vst.msk [vmem:[#allocation2 + $0x18] sm:$0xff] %vm540, %v2206
      %2227 = vst.msk [vmem:[#allocation2 + $0x20] sm:$0xff] %vm540, %v2207
      %2228 = vst.msk [vmem:[#allocation2 + $0x28] sm:$0xff] %vm540, %v2208
      %2229 = vst.msk [vmem:[#allocation2 + $0x30] sm:$0xff] %vm540, %v2209
      %2230 = vst.msk [vmem:[#allocation2 + $0x38] sm:$0xff] %vm540, %v2210
      %2231 = vst.msk [vmem:[#allocation2 + $0x40] sm:$0xff] %vm540, %v2211
      %2232 = vst.msk [vmem:[#allocation2 + $0x48] sm:$0xff] %vm540, %v2212
      %2233 = vst.msk [vmem:[#allocation2 + $0x50] sm:$0xff] %vm540, %v2213
      %2234 = vst.msk [vmem:[#allocation2 + $0x58] sm:$0xff] %vm540, %v2214
      %2235 = vst.msk [vmem:[#allocation2 + $0x60] sm:$0xff] %vm540, %v2215
      %2236 = vst.msk [vmem:[#allocation2 + $0x68] sm:$0xff] %vm540, %v2216
      %2237 = vst.msk [vmem:[#allocation2 + $0x70] sm:$0xff] %vm540, %v2217
      %2238 = vst.msk [vmem:[#allocation2 + $0x78] sm:$0xff] %vm540, %v2218
      %2239 = vst.msk [vmem:[#allocation2 + $0x80] sm:$0xff] %vm540, %v2219
      %2240 = vst.msk [vmem:[#allocation2 + $0x88] sm:$0xff] %vm540, %v2220
      %2241 = vst.msk [vmem:[#allocation2 + $0x90] sm:$0xff] %vm540, %v2221
      %2242 = vst.msk [vmem:[#allocation2 + $0x98] sm:$0xff] %vm540, %v2222
      %v2243 = vld [vmem:[#allocation2] sm:$0xff]
      %v2244 = vld [vmem:[#allocation2 + $0x8] sm:$0xff]
      %v2245 = vld [vmem:[#allocation2 + $0x10] sm:$0xff]
      %v2246 = vld [vmem:[#allocation2 + $0x18] sm:$0xff]
      %v2247 = vld [vmem:[#allocation2 + $0x20] sm:$0xff]
      %v2248 = vld [vmem:[#allocation2 + $0x28] sm:$0xff]
      %v2249 = vld [vmem:[#allocation2 + $0x30] sm:$0xff]
      %v2250 = vld [vmem:[#allocation2 + $0x38] sm:$0xff]
      %v2251 = vld [vmem:[#allocation2 + $0x40] sm:$0xff]
      %v2252 = vld [vmem:[#allocation2 + $0x48] sm:$0xff]
      %v2253 = vld [vmem:[#allocation2 + $0x50] sm:$0xff]
      %v2254 = vld [vmem:[#allocation2 + $0x58] sm:$0xff]
      %v2255 = vld [vmem:[#allocation2 + $0x60] sm:$0xff]
      %v2256 = vld [vmem:[#allocation2 + $0x68] sm:$0xff]
      %v2257 = vld [vmem:[#allocation2 + $0x70] sm:$0xff]
      %v2258 = vld [vmem:[#allocation2 + $0x78] sm:$0xff]
      %v2259 = vld [vmem:[#allocation2 + $0x80] sm:$0xff]
      %v2260 = vld [vmem:[#allocation2 + $0x88] sm:$0xff]
      %v2261 = vld [vmem:[#allocation2 + $0x90] sm:$0xff]
      %v2262 = vld [vmem:[#allocation2 + $0x98] sm:$0xff]
      %v2266 = vrot.slane %v1896, 5
      %v2267 = vrot.slane %v2266, 4
      %v2268 = vrot.slane %v1897, 5
      %v2269 = vsel %vm1954, %v2267, %v2268
      %v2270 = vrot.slane %v2268, 4
      %v2271 = vrot.slane %v1898, 5
      %v2272 = vsel %vm1954, %v2270, %v2271
      %s2273 = scalar_lea.vmem %s239, 20
      %v2274 = vld [vmem:[%s2273] sm:$0xf]
      %v2275 = vunpack.c.l.b16 %v2269
      %v2276 = vunpack.c.l.b16 %v2272
      %v2277 = vpack.c.b16 %v2276, %v2275
      %v2279 = vsel %vm372, %v2277, 0
      %v2282 = vsel %vm403, %v2274, 0
      %2284 = vmatprep.subr.bf16.mxu0 0
      %2285 = vmatpush1.bf16.msra.mxu0 %v2282
      %2286 = vmatprep.subr.bf16.mxu0 0
      %2287 = vmatpush1.bf16.msra.mxu0 0
      %2288 = vmatprep.subr.bf16.mxu0 0
      %2289 = vmatpush1.bf16.msra.mxu0 0
      %2290 = vmatprep.subr.bf16.mxu0 0
      %2291 = vmatpush1.bf16.msra.mxu0 0
      %2292 = vmatprep.subr.bf16.mxu0 0
      %2293 = vmatpush1.bf16.msra.mxu0 0
      %2294 = vmatprep.subr.bf16.mxu0 0
      %2295 = vmatpush1.bf16.msra.mxu0 0
      %2296 = vmatprep.subr.bf16.mxu0 0
      %2297 = vmatpush1.bf16.msra.mxu0 0
      %2298 = vmatprep.subr.bf16.mxu0 0
      %2299 = vmatpush1.bf16.msra.mxu0 0
      %2300 = vmatprep.subr.bf16.mxu0 0
      %2301 = vmatpush1.bf16.msra.mxu0 0
      %2302 = vmatprep.subr.bf16.mxu0 0
      %2303 = vmatpush1.bf16.msra.mxu0 0
      %2304 = vmatprep.subr.bf16.mxu0 0
      %2305 = vmatpush1.bf16.msra.mxu0 0
      %2306 = vmatprep.subr.bf16.mxu0 0
      %2307 = vmatpush1.bf16.msra.mxu0 0
      %2308 = vmatprep.subr.bf16.mxu0 0
      %2309 = vmatpush1.bf16.msra.mxu0 0
      %2310 = vmatprep.subr.bf16.mxu0 0
      %2311 = vmatpush1.bf16.msra.mxu0 0
      %2312 = vmatprep.subr.bf16.mxu0 0
      %2313 = vmatpush1.bf16.msra.mxu0 0
      %2314 = vmatprep.subr.bf16.mxu0 0
      %2315 = vmatpush1.bf16.msra.mxu0 0
      %2316 = vmatprep.mubr.bf16.mxu0 0
      %2317 = vmatmul.mubr.bf16.gmra.mrb[0].mxu0 %v2061
      %v2318 = vpop.f32.mrb[0].mxu0
      %v2319 = vadd.f32 0.0, %v2318
      %v2320 = vpop.f32.mrb[0].mxu0
      %v2321 = vpop.f32.mrb[0].mxu0
      %v2322 = vadd.f32 0.0, %v2321
      %v2323 = vpop.f32.mrb[0].mxu0
      %2324 = vmatprep.mubr.bf16.mxu0 0
      %2325 = vmatmul.mubr.bf16.gmra.mrb[0].mxu0 %v2064
      %v2326 = vpop.f32.mrb[0].mxu0
      %v2327 = vadd.f32 0.0, %v2326
      %v2328 = vpop.f32.mrb[0].mxu0
      %v2329 = vpop.f32.mrb[0].mxu0
      %v2330 = vadd.f32 0.0, %v2329
      %v2331 = vpop.f32.mrb[0].mxu0
      %2332 = vmatprep.mubr.bf16.mxu0 0
      %2333 = vmatmul.mubr.bf16.gmra.mrb[0].mxu0 %v2067
      %v2334 = vpop.f32.mrb[0].mxu0
      %v2335 = vadd.f32 0.0, %v2334
      %v2336 = vpop.f32.mrb[0].mxu0
      %v2337 = vpop.f32.mrb[0].mxu0
      %v2338 = vadd.f32 0.0, %v2337
      %v2339 = vpop.f32.mrb[0].mxu0
      %2340 = vmatprep.mubr.bf16.mxu0 0
      %2341 = vmatmul.mubr.bf16.gmra.mrb[0].mxu0 %v2070
      %v2342 = vpop.f32.mrb[0].mxu0
      %v2343 = vadd.f32 0.0, %v2342
      %v2344 = vpop.f32.mrb[0].mxu0
      %v2345 = vpop.f32.mrb[0].mxu0
      %v2346 = vadd.f32 0.0, %v2345
      %v2347 = vpop.f32.mrb[0].mxu0
      %2348 = vmatprep.mubr.bf16.mxu0 0
      %2349 = vmatmul.mubr.bf16.gmra.mrb[0].mxu0 %v2073
      %v2350 = vpop.f32.mrb[0].mxu0
      %v2351 = vadd.f32 0.0, %v2350
      %v2352 = vpop.f32.mrb[0].mxu0
      %v2353 = vpop.f32.mrb[0].mxu0
      %v2354 = vadd.f32 0.0, %v2353
      %v2355 = vpop.f32.mrb[0].mxu0
      %2356 = vmatprep.mubr.bf16.mxu0 0
      %2357 = vmatmul.mubr.bf16.gmra.mrb[0].mxu0 %v2076
      %v2358 = vpop.f32.mrb[0].mxu0
      %v2359 = vadd.f32 0.0, %v2358
      %v2360 = vpop.f32.mrb[0].mxu0
      %v2361 = vpop.f32.mrb[0].mxu0
      %v2362 = vadd.f32 0.0, %v2361
      %v2363 = vpop.f32.mrb[0].mxu0
      %2364 = vmatprep.mubr.bf16.mxu0 0
      %2365 = vmatmul.mubr.bf16.gmra.mrb[0].mxu0 %v2079
      %v2366 = vpop.f32.mrb[0].mxu0
      %v2367 = vadd.f32 0.0, %v2366
      %v2368 = vpop.f32.mrb[0].mxu0
      %v2369 = vpop.f32.mrb[0].mxu0
      %v2370 = vadd.f32 0.0, %v2369
      %v2371 = vpop.f32.mrb[0].mxu0
      %2372 = vmatprep.mubr.bf16.mxu0 0
      %2373 = vmatmul.mubr.bf16.gmra.mrb[0].mxu0 %v2082
      %v2374 = vpop.f32.mrb[0].mxu0
      %v2375 = vadd.f32 0.0, %v2374
      %v2376 = vpop.f32.mrb[0].mxu0
      %v2377 = vpop.f32.mrb[0].mxu0
      %v2378 = vadd.f32 0.0, %v2377
      %v2379 = vpop.f32.mrb[0].mxu0
      %2380 = vmatprep.mubr.bf16.mxu0 0
      %2381 = vmatmul.mubr.bf16.gmra.mrb[0].mxu0 %v2085
      %v2382 = vpop.f32.mrb[0].mxu0
      %v2383 = vadd.f32 0.0, %v2382
      %v2384 = vpop.f32.mrb[0].mxu0
      %v2385 = vpop.f32.mrb[0].mxu0
      %v2386 = vadd.f32 0.0, %v2385
      %v2387 = vpop.f32.mrb[0].mxu0
      %2388 = vmatprep.mubr.bf16.mxu0 0
      %2389 = vmatmul.mubr.bf16.gmra.mrb[0].mxu0 %v2279
      %v2390 = vpop.f32.mrb[0].mxu0
      %v2391 = vadd.f32 0.0, %v2390
      %v2392 = vpop.f32.mrb[0].mxu0
      %v2393 = vpop.f32.mrb[0].mxu0
      %v2394 = vadd.f32 0.0, %v2393
      %v2395 = vpop.f32.mrb[0].mxu0
      %2396 = vdwg.mxu0
      %v2397 = vadd.f32 %v2243, %v2319
      %v2398 = vadd.f32 %v2244, %v2322
      %v2399 = vadd.f32 %v2245, %v2327
      %v2400 = vadd.f32 %v2246, %v2330
      %v2401 = vadd.f32 %v2247, %v2335
      %v2402 = vadd.f32 %v2248, %v2338
      %v2403 = vadd.f32 %v2249, %v2343
      %v2404 = vadd.f32 %v2250, %v2346
      %v2405 = vadd.f32 %v2251, %v2351
      %v2406 = vadd.f32 %v2252, %v2354
      %v2407 = vadd.f32 %v2253, %v2359
      %v2408 = vadd.f32 %v2254, %v2362
      %v2409 = vadd.f32 %v2255, %v2367
      %v2410 = vadd.f32 %v2256, %v2370
      %v2411 = vadd.f32 %v2257, %v2375
      %v2412 = vadd.f32 %v2258, %v2378
      %v2413 = vadd.f32 %v2259, %v2383
      %v2414 = vadd.f32 %v2260, %v2386
      %v2415 = vadd.f32 %v2261, %v2391
      %v2416 = vadd.f32 %v2262, %v2394
      %2417 = vst.msk [vmem:[#allocation2] sm:$0xff] %vm540, %v2397
      %2418 = vst.msk [vmem:[#allocation2 + $0x8] sm:$0xff] %vm540, %v2398
      %2419 = vst.msk [vmem:[#allocation2 + $0x10] sm:$0xff] %vm540, %v2399
      %2420 = vst.msk [vmem:[#allocation2 + $0x18] sm:$0xff] %vm540, %v2400
      %2421 = vst.msk [vmem:[#allocation2 + $0x20] sm:$0xff] %vm540, %v2401
      %2422 = vst.msk [vmem:[#allocation2 + $0x28] sm:$0xff] %vm540, %v2402
      %2423 = vst.msk [vmem:[#allocation2 + $0x30] sm:$0xff] %vm540, %v2403
      %2424 = vst.msk [vmem:[#allocation2 + $0x38] sm:$0xff] %vm540, %v2404
      %2425 = vst.msk [vmem:[#allocation2 + $0x40] sm:$0xff] %vm540, %v2405
      %2426 = vst.msk [vmem:[#allocation2 + $0x48] sm:$0xff] %vm540, %v2406
      %2427 = vst.msk [vmem:[#allocation2 + $0x50] sm:$0xff] %vm540, %v2407
      %2428 = vst.msk [vmem:[#allocation2 + $0x58] sm:$0xff] %vm540, %v2408
      %2429 = vst.msk [vmem:[#allocation2 + $0x60] sm:$0xff] %vm540, %v2409
      %2430 = vst.msk [vmem:[#allocation2 + $0x68] sm:$0xff] %vm540, %v2410
      %2431 = vst.msk [vmem:[#allocation2 + $0x70] sm:$0xff] %vm540, %v2411
      %2432 = vst.msk [vmem:[#allocation2 + $0x78] sm:$0xff] %vm540, %v2412
      %2433 = vst.msk [vmem:[#allocation2 + $0x80] sm:$0xff] %vm540, %v2413
      %2434 = vst.msk [vmem:[#allocation2 + $0x88] sm:$0xff] %vm540, %v2414
      %2435 = vst.msk [vmem:[#allocation2 + $0x90] sm:$0xff] %vm540, %v2415
      %2436 = vst.msk [vmem:[#allocation2 + $0x98] sm:$0xff] %vm540, %v2416
      %v2437 = vld [vmem:[#allocation2] sm:$0xff]
      %v2438 = vld [vmem:[#allocation2 + $0x8] sm:$0xff]
      %v2439 = vld [vmem:[#allocation2 + $0x10] sm:$0xff]
      %v2440 = vld [vmem:[#allocation2 + $0x18] sm:$0xff]
      %v2441 = vld [vmem:[#allocation2 + $0x20] sm:$0xff]
      %v2442 = vld [vmem:[#allocation2 + $0x28] sm:$0xff]
      %v2443 = vld [vmem:[#allocation2 + $0x30] sm:$0xff]
      %v2444 = vld [vmem:[#allocation2 + $0x38] sm:$0xff]
      %v2445 = vld [vmem:[#allocation2 + $0x40] sm:$0xff]
      %v2446 = vld [vmem:[#allocation2 + $0x48] sm:$0xff]
      %v2447 = vld [vmem:[#allocation2 + $0x50] sm:$0xff]
      %v2448 = vld [vmem:[#allocation2 + $0x58] sm:$0xff]
      %v2449 = vld [vmem:[#allocation2 + $0x60] sm:$0xff]
      %v2450 = vld [vmem:[#allocation2 + $0x68] sm:$0xff]
      %v2451 = vld [vmem:[#allocation2 + $0x70] sm:$0xff]
      %v2452 = vld [vmem:[#allocation2 + $0x78] sm:$0xff]
      %v2453 = vld [vmem:[#allocation2 + $0x80] sm:$0xff]
      %v2454 = vld [vmem:[#allocation2 + $0x88] sm:$0xff]
      %v2455 = vld [vmem:[#allocation2 + $0x90] sm:$0xff]
      %v2456 = vld [vmem:[#allocation2 + $0x98] sm:$0xff]
      %v2460 = vrot.slane %v1899, 5
      %v2461 = vrot.slane %v2460, 4
      %v2462 = vrot.slane %v1900, 5
      %v2463 = vsel %vm1954, %v2461, %v2462
      %v2464 = vrot.slane %v2462, 4
      %v2465 = vrot.slane %v1901, 5
      %v2466 = vsel %vm1954, %v2464, %v2465
      %s2467 = scalar_lea.vmem %s239, 32
      %v2468 = vld [vmem:[%s2467] sm:$0xf]
      %v2469 = vunpack.c.l.b16 %v2463
      %v2470 = vunpack.c.l.b16 %v2466
      %v2471 = vpack.c.b16 %v2470, %v2469
      %v2473 = vsel %vm372, %v2471, 0
      %v2476 = vsel %vm403, %v2468, 0
      %2478 = vmatprep.subr.bf16.mxu0 0
      %2479 = vmatpush1.bf16.msra.mxu0 %v2476
      %2480 = vmatprep.subr.bf16.mxu0 0
      %2481 = vmatpush1.bf16.msra.mxu0 0
      %2482 = vmatprep.subr.bf16.mxu0 0
      %2483 = vmatpush1.bf16.msra.mxu0 0
      %2484 = vmatprep.subr.bf16.mxu0 0
      %2485 = vmatpush1.bf16.msra.mxu0 0
      %2486 = vmatprep.subr.bf16.mxu0 0
      %2487 = vmatpush1.bf16.msra.mxu0 0
      %2488 = vmatprep.subr.bf16.mxu0 0
      %2489 = vmatpush1.bf16.msra.mxu0 0
      %2490 = vmatprep.subr.bf16.mxu0 0
      %2491 = vmatpush1.bf16.msra.mxu0 0
      %2492 = vmatprep.subr.bf16.mxu0 0
      %2493 = vmatpush1.bf16.msra.mxu0 0
      %2494 = vmatprep.subr.bf16.mxu0 0
      %2495 = vmatpush1.bf16.msra.mxu0 0
      %2496 = vmatprep.subr.bf16.mxu0 0
      %2497 = vmatpush1.bf16.msra.mxu0 0
      %2498 = vmatprep.subr.bf16.mxu0 0
      %2499 = vmatpush1.bf16.msra.mxu0 0
      %2500 = vmatprep.subr.bf16.mxu0 0
      %2501 = vmatpush1.bf16.msra.mxu0 0
      %2502 = vmatprep.subr.bf16.mxu0 0
      %2503 = vmatpush1.bf16.msra.mxu0 0
      %2504 = vmatprep.subr.bf16.mxu0 0
      %2505 = vmatpush1.bf16.msra.mxu0 0
      %2506 = vmatprep.subr.bf16.mxu0 0
      %2507 = vmatpush1.bf16.msra.mxu0 0
      %2508 = vmatprep.subr.bf16.mxu0 0
      %2509 = vmatpush1.bf16.msra.mxu0 0
      %2510 = vmatprep.mubr.bf16.mxu0 0
      %2511 = vmatmul.mubr.bf16.gmra.mrb[0].mxu0 %v2064
      %v2512 = vpop.f32.mrb[0].mxu0
      %v2513 = vadd.f32 0.0, %v2512
      %v2514 = vpop.f32.mrb[0].mxu0
      %v2515 = vpop.f32.mrb[0].mxu0
      %v2516 = vadd.f32 0.0, %v2515
      %v2517 = vpop.f32.mrb[0].mxu0
      %2518 = vmatprep.mubr.bf16.mxu0 0
      %2519 = vmatmul.mubr.bf16.gmra.mrb[0].mxu0 %v2067
      %v2520 = vpop.f32.mrb[0].mxu0
      %v2521 = vadd.f32 0.0, %v2520
      %v2522 = vpop.f32.mrb[0].mxu0
      %v2523 = vpop.f32.mrb[0].mxu0
      %v2524 = vadd.f32 0.0, %v2523
      %v2525 = vpop.f32.mrb[0].mxu0
      %2526 = vmatprep.mubr.bf16.mxu0 0
      %2527 = vmatmul.mubr.bf16.gmra.mrb[0].mxu0 %v2070
      %v2528 = vpop.f32.mrb[0].mxu0
      %v2529 = vadd.f32 0.0, %v2528
      %v2530 = vpop.f32.mrb[0].mxu0
      %v2531 = vpop.f32.mrb[0].mxu0
      %v2532 = vadd.f32 0.0, %v2531
      %v2533 = vpop.f32.mrb[0].mxu0
      %2534 = vmatprep.mubr.bf16.mxu0 0
      %2535 = vmatmul.mubr.bf16.gmra.mrb[0].mxu0 %v2073
      %v2536 = vpop.f32.mrb[0].mxu0
      %v2537 = vadd.f32 0.0, %v2536
      %v2538 = vpop.f32.mrb[0].mxu0
      %v2539 = vpop.f32.mrb[0].mxu0
      %v2540 = vadd.f32 0.0, %v2539
      %v2541 = vpop.f32.mrb[0].mxu0
      %2542 = vmatprep.mubr.bf16.mxu0 0
      %2543 = vmatmul.mubr.bf16.gmra.mrb[0].mxu0 %v2076
      %v2544 = vpop.f32.mrb[0].mxu0
      %v2545 = vadd.f32 0.0, %v2544
      %v2546 = vpop.f32.mrb[0].mxu0
      %v2547 = vpop.f32.mrb[0].mxu0
      %v2548 = vadd.f32 0.0, %v2547
      %v2549 = vpop.f32.mrb[0].mxu0
      %2550 = vmatprep.mubr.bf16.mxu0 0
      %2551 = vmatmul.mubr.bf16.gmra.mrb[0].mxu0 %v2079
      %v2552 = vpop.f32.mrb[0].mxu0
      %v2553 = vadd.f32 0.0, %v2552
      %v2554 = vpop.f32.mrb[0].mxu0
      %v2555 = vpop.f32.mrb[0].mxu0
      %v2556 = vadd.f32 0.0, %v2555
      %v2557 = vpop.f32.mrb[0].mxu0
      %2558 = vmatprep.mubr.bf16.mxu0 0
      %2559 = vmatmul.mubr.bf16.gmra.mrb[0].mxu0 %v2082
      %v2560 = vpop.f32.mrb[0].mxu0
      %v2561 = vadd.f32 0.0, %v2560
      %v2562 = vpop.f32.mrb[0].mxu0
      %v2563 = vpop.f32.mrb[0].mxu0
      %v2564 = vadd.f32 0.0, %v2563
      %v2565 = vpop.f32.mrb[0].mxu0
      %2566 = vmatprep.mubr.bf16.mxu0 0
      %2567 = vmatmul.mubr.bf16.gmra.mrb[0].mxu0 %v2085
      %v2568 = vpop.f32.mrb[0].mxu0
      %v2569 = vadd.f32 0.0, %v2568
      %v2570 = vpop.f32.mrb[0].mxu0
      %v2571 = vpop.f32.mrb[0].mxu0
      %v2572 = vadd.f32 0.0, %v2571
      %v2573 = vpop.f32.mrb[0].mxu0
      %2574 = vmatprep.mubr.bf16.mxu0 0
      %2575 = vmatmul.mubr.bf16.gmra.mrb[0].mxu0 %v2279
      %v2576 = vpop.f32.mrb[0].mxu0
      %v2577 = vadd.f32 0.0, %v2576
      %v2578 = vpop.f32.mrb[0].mxu0
      %v2579 = vpop.f32.mrb[0].mxu0
      %v2580 = vadd.f32 0.0, %v2579
      %v2581 = vpop.f32.mrb[0].mxu0
      %2582 = vmatprep.mubr.bf16.mxu0 0
      %2583 = vmatmul.mubr.bf16.gmra.mrb[0].mxu0 %v2473
      %v2584 = vpop.f32.mrb[0].mxu0
      %v2585 = vadd.f32 0.0, %v2584
      %v2586 = vpop.f32.mrb[0].mxu0
      %v2587 = vpop.f32.mrb[0].mxu0
      %v2588 = vadd.f32 0.0, %v2587
      %v2589 = vpop.f32.mrb[0].mxu0
      %2590 = vdwg.mxu0
      %v2591 = vadd.f32 %v2437, %v2513
      %v2592 = vadd.f32 %v2438, %v2516
      %v2593 = vadd.f32 %v2439, %v2521
      %v2594 = vadd.f32 %v2440, %v2524
      %v2595 = vadd.f32 %v2441, %v2529
      %v2596 = vadd.f32 %v2442, %v2532
      %v2597 = vadd.f32 %v2443, %v2537
      %v2598 = vadd.f32 %v2444, %v2540
      %v2599 = vadd.f32 %v2445, %v2545
      %v2600 = vadd.f32 %v2446, %v2548
      %v2601 = vadd.f32 %v2447, %v2553
      %v2602 = vadd.f32 %v2448, %v2556
      %v2603 = vadd.f32 %v2449, %v2561
      %v2604 = vadd.f32 %v2450, %v2564
      %v2605 = vadd.f32 %v2451, %v2569
      %v2606 = vadd.f32 %v2452, %v2572
      %v2607 = vadd.f32 %v2453, %v2577
      %v2608 = vadd.f32 %v2454, %v2580
      %v2609 = vadd.f32 %v2455, %v2585
      %v2610 = vadd.f32 %v2456, %v2588
      %2611 = vst.msk [vmem:[#allocation2] sm:$0xff] %vm540, %v2591
      %2612 = vst.msk [vmem:[#allocation2 + $0x8] sm:$0xff] %vm540, %v2592
      %2613 = vst.msk [vmem:[#allocation2 + $0x10] sm:$0xff] %vm540, %v2593
      %2614 = vst.msk [vmem:[#allocation2 + $0x18] sm:$0xff] %vm540, %v2594
      %2615 = vst.msk [vmem:[#allocation2 + $0x20] sm:$0xff] %vm540, %v2595
      %2616 = vst.msk [vmem:[#allocation2 + $0x28] sm:$0xff] %vm540, %v2596
      %2617 = vst.msk [vmem:[#allocation2 + $0x30] sm:$0xff] %vm540, %v2597
      %2618 = vst.msk [vmem:[#allocation2 + $0x38] sm:$0xff] %vm540, %v2598
      %2619 = vst.msk [vmem:[#allocation2 + $0x40] sm:$0xff] %vm540, %v2599
      %2620 = vst.msk [vmem:[#allocation2 + $0x48] sm:$0xff] %vm540, %v2600
      %2621 = vst.msk [vmem:[#allocation2 + $0x50] sm:$0xff] %vm540, %v2601
      %2622 = vst.msk [vmem:[#allocation2 + $0x58] sm:$0xff] %vm540, %v2602
      %2623 = vst.msk [vmem:[#allocation2 + $0x60] sm:$0xff] %vm540, %v2603
      %2624 = vst.msk [vmem:[#allocation2 + $0x68] sm:$0xff] %vm540, %v2604
      %2625 = vst.msk [vmem:[#allocation2 + $0x70] sm:$0xff] %vm540, %v2605
      %2626 = vst.msk [vmem:[#allocation2 + $0x78] sm:$0xff] %vm540, %v2606
      %2627 = vst.msk [vmem:[#allocation2 + $0x80] sm:$0xff] %vm540, %v2607
      %2628 = vst.msk [vmem:[#allocation2 + $0x88] sm:$0xff] %vm540, %v2608
      %2629 = vst.msk [vmem:[#allocation2 + $0x90] sm:$0xff] %vm540, %v2609
      %2630 = vst.msk [vmem:[#allocation2 + $0x98] sm:$0xff] %vm540, %v2610
      // Predicated region
      $region37: #{tpu_custom_call.1} parent=31 // pred_check
        %p2631 = pneg %p252
      $region38: #{tpu_custom_call.1} parent=31 // pred_check_branch
        %2633 = sbr.rel (%p2631) target = $region40
      $region39: #{tpu_custom_call.1} parent=31 // pred_region
        %v2634 = vld [vmem:[#allocation2] sm:$0xff]
        %v2635 = vld [vmem:[#allocation2 + $0x8] sm:$0xff]
        %v2636 = vld [vmem:[#allocation2 + $0x10] sm:$0xff]
        %v2637 = vld [vmem:[#allocation2 + $0x18] sm:$0xff]
        %v2638 = vld [vmem:[#allocation2 + $0x20] sm:$0xff]
        %v2639 = vld [vmem:[#allocation2 + $0x28] sm:$0xff]
        %v2640 = vld [vmem:[#allocation2 + $0x30] sm:$0xff]
        %v2641 = vld [vmem:[#allocation2 + $0x38] sm:$0xff]
        %v2642 = vld [vmem:[#allocation2 + $0x40] sm:$0xff]
        %v2643 = vld [vmem:[#allocation2 + $0x48] sm:$0xff]
        %v2644 = vld [vmem:[#allocation2 + $0x50] sm:$0xff]
        %v2645 = vld [vmem:[#allocation2 + $0x58] sm:$0xff]
        %v2646 = vld [vmem:[#allocation2 + $0x60] sm:$0xff]
        %v2647 = vld [vmem:[#allocation2 + $0x68] sm:$0xff]
        %v2648 = vld [vmem:[#allocation2 + $0x70] sm:$0xff]
        %v2649 = vld [vmem:[#allocation2 + $0x78] sm:$0xff]
        %v2650 = vld [vmem:[#allocation2 + $0x80] sm:$0xff]
        %v2651 = vld [vmem:[#allocation2 + $0x88] sm:$0xff]
        %v2652 = vld [vmem:[#allocation2 + $0x90] sm:$0xff]
        %v2653 = vld [vmem:[#allocation2 + $0x98] sm:$0xff]
        %v2654 = vld [vmem:[%s242] sm:$0x1]
        %v2656 = vlaneseq
        %v2657 = vshrl.u32 %v2656, 7
        %v2658 = vsub.s32 0, %v2657
        %v2659 = vrot.slane %v2654, %v2658
        %v2661 = vadd.f32 %v2634, %v2659
        %v2662 = vadd.f32 %v2635, %v2659
        %v2663 = vadd.f32 %v2636, %v2659
        %v2664 = vadd.f32 %v2637, %v2659
        %v2665 = vadd.f32 %v2638, %v2659
        %v2666 = vadd.f32 %v2639, %v2659
        %v2667 = vadd.f32 %v2640, %v2659
        %v2668 = vadd.f32 %v2641, %v2659
        %v2669 = vadd.f32 %v2642, %v2659
        %v2670 = vadd.f32 %v2643, %v2659
        %v2671 = vadd.f32 %v2644, %v2659
        %v2672 = vadd.f32 %v2645, %v2659
        %v2673 = vadd.f32 %v2646, %v2659
        %v2674 = vadd.f32 %v2647, %v2659
        %v2675 = vadd.f32 %v2648, %v2659
        %v2676 = vadd.f32 %v2649, %v2659
        %v2677 = vadd.f32 %v2650, %v2659
        %v2678 = vadd.f32 %v2651, %v2659
        %v2679 = vadd.f32 %v2652, %v2659
        %v2680 = vadd.f32 %v2653, %v2659
        %v2681 = vpack.c.bf16 %v2662, %v2661
        %v2682 = vpack.c.bf16 %v2664, %v2663
        %v2683 = vpack.c.bf16 %v2666, %v2665
        %v2684 = vpack.c.bf16 %v2668, %v2667
        %v2685 = vpack.c.bf16 %v2670, %v2669
        %v2686 = vpack.c.bf16 %v2672, %v2671
        %v2687 = vpack.c.bf16 %v2674, %v2673
        %v2688 = vpack.c.bf16 %v2676, %v2675
        %v2689 = vpack.c.bf16 %v2678, %v2677
        %v2690 = vpack.c.bf16 %v2680, %v2679
        %v2701 = vunpack.c.l.b16 %v2681
        %v2702 = vunpack.c.h.b16 %v2681
        %v2703 = vunpack.c.l.b16 %v2682
        %v2704 = vunpack.c.h.b16 %v2682
        %v2705 = vunpack.c.l.b16 %v2683
        %v2706 = vunpack.c.h.b16 %v2683
        %v2707 = vunpack.c.l.b16 %v2684
        %v2708 = vunpack.c.h.b16 %v2684
        %v2709 = vunpack.c.l.b16 %v2685
        %v2710 = vunpack.c.h.b16 %v2685
        %v2711 = vunpack.c.l.b16 %v2686
        %v2712 = vunpack.c.h.b16 %v2686
        %v2713 = vunpack.c.l.b16 %v2687
        %v2714 = vunpack.c.h.b16 %v2687
        %v2715 = vunpack.c.l.b16 %v2688
        %v2716 = vunpack.c.h.b16 %v2688
        %v2717 = vunpack.c.l.b16 %v2689
        %v2718 = vunpack.c.h.b16 %v2689
        %v2719 = vunpack.c.l.b16 %v2690
        %v2720 = vunpack.c.h.b16 %v2690
        %v2721 = vpack.c.b16 %v2701, %v2701
        %v2722 = vpack.c.b16 %v2702, %v2702
        %v2723 = vpack.c.b16 %v2703, %v2703
        %v2724 = vpack.c.b16 %v2704, %v2704
        %v2725 = vpack.c.b16 %v2705, %v2705
        %v2726 = vpack.c.b16 %v2706, %v2706
        %v2727 = vpack.c.b16 %v2707, %v2707
        %v2728 = vpack.c.b16 %v2708, %v2708
        %v2729 = vpack.c.b16 %v2709, %v2709
        %v2730 = vpack.c.b16 %v2710, %v2710
        %v2731 = vpack.c.b16 %v2711, %v2711
        %v2732 = vpack.c.b16 %v2712, %v2712
        %v2733 = vpack.c.b16 %v2713, %v2713
        %v2734 = vpack.c.b16 %v2714, %v2714
        %v2735 = vpack.c.b16 %v2715, %v2715
        %v2736 = vpack.c.b16 %v2716, %v2716
        %v2737 = vpack.c.b16 %v2717, %v2717
        %v2738 = vpack.c.b16 %v2718, %v2718
        %v2739 = vpack.c.b16 %v2719, %v2719
        %v2740 = vpack.c.b16 %v2720, %v2720
        %vm2761 = vcmask 125952
        %2762 = vst.msk [vmem:[%s250] sm:$0xf] %vm2761, %v2721
        %vm2763 = vcmask 122880
        %2764 = vst.msk [vmem:[%s250 + $0x4] sm:$0x1] %vm2763, %v2722
        %2765 = vst.msk [vmem:[%s250 + $0x8] sm:$0xf] %vm2761, %v2723
        %2766 = vst.msk [vmem:[%s250 + $0xc] sm:$0x1] %vm2763, %v2724
        %2767 = vst.msk [vmem:[%s250 + $0x10] sm:$0xf] %vm2761, %v2725
        %2768 = vst.msk [vmem:[%s250 + $0x14] sm:$0x1] %vm2763, %v2726
        %2769 = vst.msk [vmem:[%s250 + $0x18] sm:$0xf] %vm2761, %v2727
        %2770 = vst.msk [vmem:[%s250 + $0x1c] sm:$0x1] %vm2763, %v2728
        %2771 = vst.msk [vmem:[%s250 + $0x20] sm:$0xf] %vm2761, %v2729
        %2772 = vst.msk [vmem:[%s250 + $0x24] sm:$0x1] %vm2763, %v2730
        %2773 = vst.msk [vmem:[%s250 + $0x28] sm:$0xf] %vm2761, %v2731
        %2774 = vst.msk [vmem:[%s250 + $0x2c] sm:$0x1] %vm2763, %v2732
        %2775 = vst.msk [vmem:[%s250 + $0x30] sm:$0xf] %vm2761, %v2733
        %2776 = vst.msk [vmem:[%s250 + $0x34] sm:$0x1] %vm2763, %v2734
        %2777 = vst.msk [vmem:[%s250 + $0x38] sm:$0xf] %vm2761, %v2735
        %2778 = vst.msk [vmem:[%s250 + $0x3c] sm:$0x1] %vm2763, %v2736
        %2779 = vst.msk [vmem:[%s250 + $0x40] sm:$0xf] %vm2761, %v2737
        %2780 = vst.msk [vmem:[%s250 + $0x44] sm:$0x1] %vm2763, %v2738
        %2781 = vst.msk [vmem:[%s250 + $0x48] sm:$0xf] %vm2761, %v2739
        %2782 = vst.msk [vmem:[%s250 + $0x4c] sm:$0x1] %vm2763, %v2740
      $region40: #{tpu_custom_call.1} parent=31 // pred_fallthru
        _
      %p2783 = scmp.lt.s32.totalorder %s19, 1
      %s2784 = scalar_select %p2783, %s19, 1
      %p2785 = scmp.lt.s32.totalorder %s20, 0
      %s2786 = scalar_select %p2785, %s20, 0
      %s2787 = smul.addr %s2784, 20
      %s2788 = sadd.s32 %s2786, %s2787
      %s2789 = smul.addr %s2788, 4
      %s2790 = scalar_lea.vmem %s3, %s2789
      // Predicated region
      $region41: #{tpu_custom_call.1} parent=31 // pred_check
        %p2791 = pneg %p135
      $region42: #{tpu_custom_call.1} parent=31 // pred_check_branch
        %2793 = sbr.rel (%p2791) target = $region44
      $region43: #{tpu_custom_call.1} parent=31 // pred_region
        _
      $region44: #{tpu_custom_call.1} parent=31 // pred_fallthru
        _
    $region32: #{tpu_custom_call.1} parent=5 // pred_fallthru
      _
    %p2794 = scmp.le.s32.totalorder 2, %s9
    // Predicated region
    $region45: #{tpu_custom_call.1} parent=5 // pred_check
      %p2795 = pneg %p2794
    $region46: #{tpu_custom_call.1} parent=5 // pred_check_branch
      %2797 = sbr.rel (%p2795) target = $region48
    $region47: #{tpu_custom_call.1} parent=5 // pred_region
      %s2798 = ssub.s32 %s9, 2
      // Predicated region
      $region49: #{tpu_custom_call.1} parent=47 // pred_check
        %p2799 = pneg %p141
      $region50: #{tpu_custom_call.1} parent=47 // pred_check_branch
        %2801 = sbr.rel (%p2799) target = $region52
      $region51: #{tpu_custom_call.1} parent=47 // pred_region
        %p2802 = scmp.lt.s32.totalorder %s22, 1
        %s2803 = scalar_select %p2802, %s22, 1
        %p2804 = scmp.lt.s32.totalorder %s23, 0
        %s2805 = scalar_select %p2804, %s23, 0
        %s2806 = smul.addr %s2803, 20
        %s2807 = sadd.s32 %s2805, %s2806
        %s2808 = smul.addr %s2807, 4
        %s2809 = scalar_lea.vmem %s3, %s2808
      $region52: #{tpu_custom_call.1} parent=47 // pred_fallthru
        _
    $region48: #{tpu_custom_call.1} parent=5 // pred_fallthru
      _
  $region6: #{tpu_custom_call.1} parent=0 // loop_footer
    %s13 = sadd.s32 1, %s9
  $region7: #{tpu_custom_call.1} parent=0 // loop_footer_branch
    %8 = sbr.rel target = $region3
  $region8: #{tpu_custom_call.1} parent=0 // loop_exit
    _

</llo_original>
